<compile_context>
chip_gen: v6e
topology: v6e:2x2x1
jax: 0.10.0
libtpu: 0.0.40
codegen_flags: <defaults>
</compile_context>

<pallas_src>
import functools

import jax
import jax.numpy as jnp
from jax import lax
from jax.experimental import pallas as pl
from jax.experimental.pallas import tpu as pltpu

KSIZE = 7
PAD = 3            # padding = 3 when kernel_size == 7 (matches the PyTorch module)
LANE = 128
SUBLANE = 8
STRIP = 512        # lane-strip width for pass 1 / pass 2 (bounds vreg pressure)


def _round_up(a, b):
    return (a + b - 1) // b * b


def _spatial_attention_kernel(w_ref, x_ref, o_ref,
                              avgf_sc, maxf_sc, attf_sc,
                              avg2d_sc, max2d_sc, att2d_sc,
                              *, C, H, W, Ht, Wp, CK):
    """One batch element per grid step.

    w_ref     : SMEM (2*KSIZE*KSIZE,) f32   flattened conv weight (OIHW, O=1)
    x_ref     : VMEM (C, H*W)               input slab (lane-dense flat spatial)
    o_ref     : VMEM (C, H*W)               output slab
    avgf_sc / maxf_sc / attf_sc : VMEM (1, H*W) f32   flat feature / attention
    avg2d_sc / max2d_sc         : VMEM (Ht, Wp) f32   zero-padded 2-D features
    att2d_sc                    : VMEM (H,  Wp) f32   2-D attention map
    """
    f32 = jnp.float32
    HW = H * W
    n_full = C // CK
    rem = C - n_full * CK
    c_tail = n_full * CK
    inv_c = 1.0 / C
    strips = [(s0, min(STRIP, HW - s0)) for s0 in range(0, HW, STRIP)]

    # ---- pass 1: channel mean / max over lane strips (lane-dense loads) -----
    for s0, sw in strips:
        sum_s = jnp.zeros((1, sw), f32)
        max_s = jnp.full((1, sw), -jnp.inf, f32)

        if n_full > 0:
            def body(i, carry, s0=s0, sw=sw):
                s, m = carry
                c0 = i * CK if isinstance(i, int) else pl.multiple_of(i * CK, CK)
                blk = x_ref[pl.ds(c0, CK), s0:s0 + sw].astype(f32)
                return s + blk, jnp.maximum(m, blk)

            init = (jnp.zeros((CK, sw), f32), jnp.full((CK, sw), -jnp.inf, f32))
            if n_full <= 8:                      # short loops: fully unrolled
                carry = init
                for i in range(n_full):
                    carry = body(i, carry)
            else:
                carry = lax.fori_loop(0, n_full, body, init, unroll=4)
            sum_s = jnp.sum(carry[0], axis=0, keepdims=True)
            max_s = jnp.max(carry[1], axis=0, keepdims=True)

        if rem > 0:                              # tail starts 8-sublane aligned
            tail = x_ref[c_tail:C, s0:s0 + sw].astype(f32)
            sum_s = sum_s + jnp.sum(tail, axis=0, keepdims=True)
            max_s = jnp.maximum(max_s, jnp.max(tail, axis=0, keepdims=True))

        avgf_sc[0:1, s0:s0 + sw] = sum_s * inv_c
        maxf_sc[0:1, s0:s0 + sw] = max_s

    # ---- flat (1, HW) -> zero-padded 2-D (Ht, Wp) feature tiles --------------
    # Rows live at [PAD, PAD+H); cols at [0, W).  Everything else stays zero so
    # the conv's border handling is free (no masks, no jnp.where).
    avg2d_sc[...] = jnp.zeros_like(avg2d_sc)
    max2d_sc[...] = jnp.zeros_like(max2d_sc)
    for i in range(H):
        avg2d_sc[PAD + i:PAD + i + 1, 0:W] = avgf_sc[0:1, i * W:(i + 1) * W]
        max2d_sc[PAD + i:PAD + i + 1, 0:W] = maxf_sc[0:1, i * W:(i + 1) * W]

    # ---- 7x7 conv (2 -> 1 ch, zero pad 3) + sigmoid on dense 2-D tiles -------
    vregs = max(1, ((H + SUBLANE - 1) // SUBLANE) * (Wp // LANE))
    n_acc = 4 if vregs <= 4 else (2 if vregs <= 12 else 1)   # break dep chain
    accs = [jnp.zeros((H, Wp), f32) for _ in range(n_acc)]
    t = 0
    for cin, feat_ref in ((0, avg2d_sc), (1, max2d_sc)):
        for dh in range(-PAD, PAD + 1):
            # Row-shifted window: fh[i, :] = padded_feat[i + dh, :].
            r0 = PAD + dh
            fh = feat_ref[r0:r0 + H, :]
            for dw in range(-PAD, PAD + 1):
                # Lane roll: v[i, j] = padded_feat[i + dh, (j + dw) mod Wp];
                # wrap lands on zero-padded columns, so padding is exact.
                v = pltpu.roll(fh, shift=(-dw) % Wp, axis=1) if dw != 0 else fh
                wv = w_ref[cin * KSIZE * KSIZE + (dh + PAD) * KSIZE + (dw + PAD)]
                accs[t % n_acc] = accs[t % n_acc] + wv * v
                t += 1
    conv = accs[0]
    for a in accs[1:]:
        conv = conv + a
    att2d_sc[...] = jax.nn.sigmoid(conv)

    # ---- 2-D attention map back to the flat lane-dense layout ----------------
    for i in range(H):
        attf_sc[0:1, i * W:(i + 1) * W] = att2d_sc[i:i + 1, 0:W]

    # ---- pass 2: rescale x (lane-dense loads/stores, aligned chunks) ---------
    x_dt = x_ref.dtype
    for s0, sw in strips:
        att_s = attf_sc[0:1, s0:s0 + sw].astype(x_dt)
        if n_full > 0:
            att_b = jnp.broadcast_to(att_s, (CK, sw))   # hoisted out of C loop

            def body2(i, carry, s0=s0, sw=sw, att_b=att_b):
                c0 = i * CK if isinstance(i, int) else pl.multiple_of(i * CK, CK)
                o_ref[pl.ds(c0, CK), s0:s0 + sw] = (
                    x_ref[pl.ds(c0, CK), s0:s0 + sw] * att_b
                ).astype(o_ref.dtype)
                return carry

            if n_full <= 8:
                for i in range(n_full):
                    body2(i, 0)
            else:
                lax.fori_loop(0, n_full, body2, 0, unroll=4)

        if rem > 0:
            o_ref[c_tail:C, s0:s0 + sw] = (
                x_ref[c_tail:C, s0:s0 + sw] * att_s
            ).astype(o_ref.dtype)


def spatial_attention(x, conv_weight):
    """x: (N, C, H, W), conv_weight: (1, 2, KSIZE, KSIZE) -> (N, C, H, W)."""
    N, C, H, W = x.shape
    HW = H * W
    Ht = _round_up(H + 2 * PAD, SUBLANE)   # padded rows of the 2-D conv tile
    Wp = _round_up(W + PAD, LANE)          # padded cols (roll wrap hits zeros)
    CK = 8 if jnp.dtype(x.dtype).itemsize >= 4 else 16

    # Free reshapes (merge of trailing dims): no HBM copies around the kernel.
    x_flat = x.reshape(N, C, HW)
    w_flat = conv_weight.reshape(-1).astype(jnp.float32)      # (2*7*7,)

    kernel = functools.partial(_spatial_attention_kernel,
                               C=C, H=H, W=W, Ht=Ht, Wp=Wp, CK=CK)

    slab_bytes = C * HW * jnp.dtype(x.dtype).itemsize
    scratch_bytes = 4 * (3 * SUBLANE * _round_up(HW, LANE) + (2 * Ht + H) * Wp)
    vmem_limit = int(min(128 * 1024 * 1024,
                         max(32 * 1024 * 1024,
                             4 * slab_bytes + scratch_bytes + (4 << 20))))

    out_flat = pl.pallas_call(
        kernel,
        out_shape=jax.ShapeDtypeStruct((N, C, HW), x.dtype),
        grid=(N,),
        in_specs=[
            pl.BlockSpec(memory_space=pltpu.MemorySpace.SMEM),   # conv weights
            pl.BlockSpec((None, C, HW), lambda b: (b, 0, 0)),    # x slab
        ],
        out_specs=pl.BlockSpec((None, C, HW), lambda b: (b, 0, 0)),
        scratch_shapes=[
            pltpu.VMEM((1, HW), jnp.float32),    # avg (flat)
            pltpu.VMEM((1, HW), jnp.float32),    # max (flat)
            pltpu.VMEM((1, HW), jnp.float32),    # attention (flat)
            pltpu.VMEM((Ht, Wp), jnp.float32),   # avg (2-D, zero padded)
            pltpu.VMEM((Ht, Wp), jnp.float32),   # max (2-D, zero padded)
            pltpu.VMEM((H, Wp), jnp.float32),    # attention (2-D)
        ],
        compiler_params=pltpu.CompilerParams(
            dimension_semantics=("parallel",),   # batch steps are independent
            vmem_limit_bytes=vmem_limit,
        ),
        # NOTE: input_output_aliases={1: 0} saves an HBM buffer when the caller
        # no longer needs x; not used here because the test re-reads x.
    )(w_flat, x_flat)

    return out_flat.reshape(N, C, H, W)


def _reference(x, conv_weight):
    """Pure-JAX reference matching the PyTorch forward exactly."""
    avg = jnp.mean(x, axis=1, keepdims=True)
    mx = jnp.max(x, axis=1, keepdims=True)
    feats = jnp.concatenate([avg, mx], axis=1)
    conv = jax.lax.conv_general_dilated(
        feats.astype(jnp.float32),
        conv_weight.astype(jnp.float32),
        window_strides=(1, 1),
        padding=[(PAD, PAD), (PAD, PAD)],
        dimension_numbers=("NCHW", "OIHW", "NCHW"),
        precision=jax.lax.Precision.HIGHEST,
    )
    return x * jax.nn.sigmoid(conv)


if __name__ == "__main__":
    key = jax.random.PRNGKey(0)
    kx, kw = jax.random.split(key)

    # Small shapes consistent with the module: NCHW image batch.
    N, C, H, W = 2, 4, 16, 16
    x = jax.random.normal(kx, (N, C, H, W), dtype=jnp.float32)

    # Deterministic conv weight, shape (out=1, in=2, 7, 7), no bias
    # (PyTorch-style uniform init bound = 1/sqrt(fan_in)).
    fan_in = 2 * KSIZE * KSIZE
    bound = 1.0 / jnp.sqrt(jnp.float32(fan_in))
    conv_weight = jax.random.uniform(
        kw, (1, 2, KSIZE, KSIZE), dtype=jnp.float32, minval=-bound, maxval=bound
    )

    out = spatial_attention(x, conv_weight)
    out = jax.block_until_ready(out)

    ref = _reference(x, conv_weight)
    assert out.shape == x.shape and out.dtype == x.dtype
    assert jnp.allclose(out, ref, atol=1e-5, rtol=1e-5), (
        float(jnp.max(jnp.abs(out - ref)))
    )

    print("KERNEL_OK")
</pallas_src>

<mosaic_0001>
module attributes {stable_mosaic.version = 11 : i64} {
  func.func @_spatial_attention_kernel(%arg0: i32, %arg1: memref<98xf32, #tpu.memory_space<smem>>, %arg2: memref<1x4x256xf32, #tpu.memory_space<vmem>>, %arg3: memref<1x4x256xf32, #tpu.memory_space<vmem>>, %arg4: memref<1x256xf32, #tpu.memory_space<vmem>>, %arg5: memref<1x256xf32, #tpu.memory_space<vmem>>, %arg6: memref<1x256xf32, #tpu.memory_space<vmem>>, %arg7: memref<24x128xf32, #tpu.memory_space<vmem>>, %arg8: memref<24x128xf32, #tpu.memory_space<vmem>>, %arg9: memref<16x128xf32, #tpu.memory_space<vmem>>) attributes {dimension_semantics = [#tpu.dimension_semantics<parallel>], iteration_bounds = array<i64: 2>, scalar_prefetch = 0 : i64, scratch_operands = 6 : i64, tpu.core_type = #tpu.core_type<tc>, window_params = [{transform_indices = @transform_0, window_bounds = array<i64: 98>}, {transform_indices = @transform_1, window_bounds = array<i64: 1, 4, 256>}, {transform_indices = @transform_2, window_bounds = array<i64: 1, 4, 256>}]} {
    %cst = arith.constant 0.000000e+00 : f32
    %0 = vector.broadcast %cst : f32 to vector<1x256xf32>
    %cst_0 = arith.constant 0xFF800000 : f32
    %1 = vector.broadcast %cst_0 : f32 to vector<1x256xf32>
    %c0 = arith.constant 0 : index
    %c0_1 = arith.constant 0 : index
    %c0_2 = arith.constant 0 : index
    %2 = vector.load %arg2[%c0, %c0_1, %c0_2] : memref<1x4x256xf32, #tpu.memory_space<vmem>>, vector<1x4x256xf32>
    %3 = vector.shape_cast %2 : vector<1x4x256xf32> to vector<4x256xf32>
    %cst_3 = arith.constant dense<0.000000e+00> : vector<256xf32>
    %4 = vector.multi_reduction <add>, %3, %cst_3 [0] : vector<4x256xf32> to vector<256xf32>
    %5 = vector.shape_cast %4 : vector<256xf32> to vector<1x256xf32>
    %6 = arith.addf %0, %5 : vector<1x256xf32>
    %cst_4 = arith.constant dense<0xFF800000> : vector<256xf32>
    %7 = vector.multi_reduction <maximumf>, %3, %cst_4 [0] : vector<4x256xf32> to vector<256xf32>
    %8 = vector.shape_cast %7 : vector<256xf32> to vector<1x256xf32>
    %9 = arith.maximumf %1, %8 : vector<1x256xf32>
    %cst_5 = arith.constant 2.500000e-01 : f32
    %10 = vector.broadcast %cst_5 : f32 to vector<1x256xf32>
    %11 = arith.mulf %6, %10 : vector<1x256xf32>
    %c0_6 = arith.constant 0 : index
    %c0_7 = arith.constant 0 : index
    %12 = vector.load %arg4[%c0_6, %c0_7] : memref<1x256xf32, #tpu.memory_space<vmem>>, vector<1x256xf32>
    tpu.vector_store %arg4[%c0_6, %c0_7], %11 {strides = array<i32>} : memref<1x256xf32, #tpu.memory_space<vmem>>, vector<1x256xf32>,
    %c0_8 = arith.constant 0 : index
    %c0_9 = arith.constant 0 : index
    %13 = vector.load %arg5[%c0_8, %c0_9] : memref<1x256xf32, #tpu.memory_space<vmem>>, vector<1x256xf32>
    tpu.vector_store %arg5[%c0_8, %c0_9], %9 {strides = array<i32>} : memref<1x256xf32, #tpu.memory_space<vmem>>, vector<1x256xf32>,
    %cst_10 = arith.constant 0.000000e+00 : f32
    %14 = vector.broadcast %cst_10 : f32 to vector<24x128xf32>
    %c0_11 = arith.constant 0 : index
    %c0_12 = arith.constant 0 : index
    %15 = vector.load %arg7[%c0_11, %c0_12] : memref<24x128xf32, #tpu.memory_space<vmem>>, vector<24x128xf32>
    tpu.vector_store %arg7[%c0_11, %c0_12], %14 {strides = array<i32>} : memref<24x128xf32, #tpu.memory_space<vmem>>, vector<24x128xf32>,
    %cst_13 = arith.constant 0.000000e+00 : f32
    %16 = vector.broadcast %cst_13 : f32 to vector<24x128xf32>
    %c0_14 = arith.constant 0 : index
    %c0_15 = arith.constant 0 : index
    %17 = vector.load %arg8[%c0_14, %c0_15] : memref<24x128xf32, #tpu.memory_space<vmem>>, vector<24x128xf32>
    tpu.vector_store %arg8[%c0_14, %c0_15], %16 {strides = array<i32>} : memref<24x128xf32, #tpu.memory_space<vmem>>, vector<24x128xf32>,
    %c0_16 = arith.constant 0 : index
    %c0_17 = arith.constant 0 : index
    %18 = vector.load %arg4[%c0_16, %c0_17] : memref<1x256xf32, #tpu.memory_space<vmem>>, vector<1x16xf32>
    %c3 = arith.constant 3 : index
    %c0_18 = arith.constant 0 : index
    %19 = vector.load %arg7[%c3, %c0_18] : memref<24x128xf32, #tpu.memory_space<vmem>>, vector<1x16xf32>
    tpu.vector_store %arg7[%c3, %c0_18], %18 {strides = array<i32>} : memref<24x128xf32, #tpu.memory_space<vmem>>, vector<1x16xf32>,
    %c0_19 = arith.constant 0 : index
    %c0_20 = arith.constant 0 : index
    %20 = vector.load %arg5[%c0_19, %c0_20] : memref<1x256xf32, #tpu.memory_space<vmem>>, vector<1x16xf32>
    %c3_21 = arith.constant 3 : index
    %c0_22 = arith.constant 0 : index
    %21 = vector.load %arg8[%c3_21, %c0_22] : memref<24x128xf32, #tpu.memory_space<vmem>>, vector<1x16xf32>
    tpu.vector_store %arg8[%c3_21, %c0_22], %20 {strides = array<i32>} : memref<24x128xf32, #tpu.memory_space<vmem>>, vector<1x16xf32>,
    %c0_23 = arith.constant 0 : index
    %c16 = arith.constant 16 : index
    %22 = vector.load %arg4[%c0_23, %c16] : memref<1x256xf32, #tpu.memory_space<vmem>>, vector<1x16xf32>
    %c4 = arith.constant 4 : index
    %c0_24 = arith.constant 0 : index
    %23 = vector.load %arg7[%c4, %c0_24] : memref<24x128xf32, #tpu.memory_space<vmem>>, vector<1x16xf32>
    tpu.vector_store %arg7[%c4, %c0_24], %22 {strides = array<i32>} : memref<24x128xf32, #tpu.memory_space<vmem>>, vector<1x16xf32>,
    %c0_25 = arith.constant 0 : index
    %c16_26 = arith.constant 16 : index
    %24 = vector.load %arg5[%c0_25, %c16_26] : memref<1x256xf32, #tpu.memory_space<vmem>>, vector<1x16xf32>
    %c4_27 = arith.constant 4 : index
    %c0_28 = arith.constant 0 : index
    %25 = vector.load %arg8[%c4_27, %c0_28] : memref<24x128xf32, #tpu.memory_space<vmem>>, vector<1x16xf32>
    tpu.vector_store %arg8[%c4_27, %c0_28], %24 {strides = array<i32>} : memref<24x128xf32, #tpu.memory_space<vmem>>, vector<1x16xf32>,
    %c0_29 = arith.constant 0 : index
    %c32 = arith.constant 32 : index
    %26 = vector.load %arg4[%c0_29, %c32] : memref<1x256xf32, #tpu.memory_space<vmem>>, vector<1x16xf32>
    %c5 = arith.constant 5 : index
    %c0_30 = arith.constant 0 : index
    %27 = vector.load %arg7[%c5, %c0_30] : memref<24x128xf32, #tpu.memory_space<vmem>>, vector<1x16xf32>
    tpu.vector_store %arg7[%c5, %c0_30], %26 {strides = array<i32>} : memref<24x128xf32, #tpu.memory_space<vmem>>, vector<1x16xf32>,
    %c0_31 = arith.constant 0 : index
    %c32_32 = arith.constant 32 : index
    %28 = vector.load %arg5[%c0_31, %c32_32] : memref<1x256xf32, #tpu.memory_space<vmem>>, vector<1x16xf32>
    %c5_33 = arith.constant 5 : index
    %c0_34 = arith.constant 0 : index
    %29 = vector.load %arg8[%c5_33, %c0_34] : memref<24x128xf32, #tpu.memory_space<vmem>>, vector<1x16xf32>
    tpu.vector_store %arg8[%c5_33, %c0_34], %28 {strides = array<i32>} : memref<24x128xf32, #tpu.memory_space<vmem>>, vector<1x16xf32>,
    %c0_35 = arith.constant 0 : index
    %c48 = arith.constant 48 : index
    %30 = vector.load %arg4[%c0_35, %c48] : memref<1x256xf32, #tpu.memory_space<vmem>>, vector<1x16xf32>
    %c6 = arith.constant 6 : index
    %c0_36 = arith.constant 0 : index
    %31 = vector.load %arg7[%c6, %c0_36] : memref<24x128xf32, #tpu.memory_space<vmem>>, vector<1x16xf32>
    tpu.vector_store %arg7[%c6, %c0_36], %30 {strides = array<i32>} : memref<24x128xf32, #tpu.memory_space<vmem>>, vector<1x16xf32>,
    %c0_37 = arith.constant 0 : index
    %c48_38 = arith.constant 48 : index
    %32 = vector.load %arg5[%c0_37, %c48_38] : memref<1x256xf32, #tpu.memory_space<vmem>>, vector<1x16xf32>
    %c6_39 = arith.constant 6 : index
    %c0_40 = arith.constant 0 : index
    %33 = vector.load %arg8[%c6_39, %c0_40] : memref<24x128xf32, #tpu.memory_space<vmem>>, vector<1x16xf32>
    tpu.vector_store %arg8[%c6_39, %c0_40], %32 {strides = array<i32>} : memref<24x128xf32, #tpu.memory_space<vmem>>, vector<1x16xf32>,
    %c0_41 = arith.constant 0 : index
    %c64 = arith.constant 64 : index
    %34 = vector.load %arg4[%c0_41, %c64] : memref<1x256xf32, #tpu.memory_space<vmem>>, vector<1x16xf32>
    %c7 = arith.constant 7 : index
    %c0_42 = arith.constant 0 : index
    %35 = vector.load %arg7[%c7, %c0_42] : memref<24x128xf32, #tpu.memory_space<vmem>>, vector<1x16xf32>
    tpu.vector_store %arg7[%c7, %c0_42], %34 {strides = array<i32>} : memref<24x128xf32, #tpu.memory_space<vmem>>, vector<1x16xf32>,
    %c0_43 = arith.constant 0 : index
    %c64_44 = arith.constant 64 : index
    %36 = vector.load %arg5[%c0_43, %c64_44] : memref<1x256xf32, #tpu.memory_space<vmem>>, vector<1x16xf32>
    %c7_45 = arith.constant 7 : index
    %c0_46 = arith.constant 0 : index
    %37 = vector.load %arg8[%c7_45, %c0_46] : memref<24x128xf32, #tpu.memory_space<vmem>>, vector<1x16xf32>
    tpu.vector_store %arg8[%c7_45, %c0_46], %36 {strides = array<i32>} : memref<24x128xf32, #tpu.memory_space<vmem>>, vector<1x16xf32>,
    %c0_47 = arith.constant 0 : index
    %c80 = arith.constant 80 : index
    %38 = vector.load %arg4[%c0_47, %c80] : memref<1x256xf32, #tpu.memory_space<vmem>>, vector<1x16xf32>
    %c8 = arith.constant 8 : index
    %c0_48 = arith.constant 0 : index
    %39 = vector.load %arg7[%c8, %c0_48] : memref<24x128xf32, #tpu.memory_space<vmem>>, vector<1x16xf32>
    tpu.vector_store %arg7[%c8, %c0_48], %38 {strides = array<i32>} : memref<24x128xf32, #tpu.memory_space<vmem>>, vector<1x16xf32>,
    %c0_49 = arith.constant 0 : index
    %c80_50 = arith.constant 80 : index
    %40 = vector.load %arg5[%c0_49, %c80_50] : memref<1x256xf32, #tpu.memory_space<vmem>>, vector<1x16xf32>
    %c8_51 = arith.constant 8 : index
    %c0_52 = arith.constant 0 : index
    %41 = vector.load %arg8[%c8_51, %c0_52] : memref<24x128xf32, #tpu.memory_space<vmem>>, vector<1x16xf32>
    tpu.vector_store %arg8[%c8_51, %c0_52], %40 {strides = array<i32>} : memref<24x128xf32, #tpu.memory_space<vmem>>, vector<1x16xf32>,
    %c0_53 = arith.constant 0 : index
    %c96 = arith.constant 96 : index
    %42 = vector.load %arg4[%c0_53, %c96] : memref<1x256xf32, #tpu.memory_space<vmem>>, vector<1x16xf32>
    %c9 = arith.constant 9 : index
    %c0_54 = arith.constant 0 : index
    %43 = vector.load %arg7[%c9, %c0_54] : memref<24x128xf32, #tpu.memory_space<vmem>>, vector<1x16xf32>
    tpu.vector_store %arg7[%c9, %c0_54], %42 {strides = array<i32>} : memref<24x128xf32, #tpu.memory_space<vmem>>, vector<1x16xf32>,
    %c0_55 = arith.constant 0 : index
    %c96_56 = arith.constant 96 : index
    %44 = vector.load %arg5[%c0_55, %c96_56] : memref<1x256xf32, #tpu.memory_space<vmem>>, vector<1x16xf32>
    %c9_57 = arith.constant 9 : index
    %c0_58 = arith.constant 0 : index
    %45 = vector.load %arg8[%c9_57, %c0_58] : memref<24x128xf32, #tpu.memory_space<vmem>>, vector<1x16xf32>
    tpu.vector_store %arg8[%c9_57, %c0_58], %44 {strides = array<i32>} : memref<24x128xf32, #tpu.memory_space<vmem>>, vector<1x16xf32>,
    %c0_59 = arith.constant 0 : index
    %c112 = arith.constant 112 : index
    %46 = vector.load %arg4[%c0_59, %c112] : memref<1x256xf32, #tpu.memory_space<vmem>>, vector<1x16xf32>
    %c10 = arith.constant 10 : index
    %c0_60 = arith.constant 0 : index
    %47 = vector.load %arg7[%c10, %c0_60] : memref<24x128xf32, #tpu.memory_space<vmem>>, vector<1x16xf32>
    tpu.vector_store %arg7[%c10, %c0_60], %46 {strides = array<i32>} : memref<24x128xf32, #tpu.memory_space<vmem>>, vector<1x16xf32>,
    %c0_61 = arith.constant 0 : index
    %c112_62 = arith.constant 112 : index
    %48 = vector.load %arg5[%c0_61, %c112_62] : memref<1x256xf32, #tpu.memory_space<vmem>>, vector<1x16xf32>
    %c10_63 = arith.constant 10 : index
    %c0_64 = arith.constant 0 : index
    %49 = vector.load %arg8[%c10_63, %c0_64] : memref<24x128xf32, #tpu.memory_space<vmem>>, vector<1x16xf32>
    tpu.vector_store %arg8[%c10_63, %c0_64], %48 {strides = array<i32>} : memref<24x128xf32, #tpu.memory_space<vmem>>, vector<1x16xf32>,
    %c0_65 = arith.constant 0 : index
    %c128 = arith.constant 128 : index
    %50 = vector.load %arg4[%c0_65, %c128] : memref<1x256xf32, #tpu.memory_space<vmem>>, vector<1x16xf32>
    %c11 = arith.constant 11 : index
    %c0_66 = arith.constant 0 : index
    %51 = vector.load %arg7[%c11, %c0_66] : memref<24x128xf32, #tpu.memory_space<vmem>>, vector<1x16xf32>
    tpu.vector_store %arg7[%c11, %c0_66], %50 {strides = array<i32>} : memref<24x128xf32, #tpu.memory_space<vmem>>, vector<1x16xf32>,
    %c0_67 = arith.constant 0 : index
    %c128_68 = arith.constant 128 : index
    %52 = vector.load %arg5[%c0_67, %c128_68] : memref<1x256xf32, #tpu.memory_space<vmem>>, vector<1x16xf32>
    %c11_69 = arith.constant 11 : index
    %c0_70 = arith.constant 0 : index
    %53 = vector.load %arg8[%c11_69, %c0_70] : memref<24x128xf32, #tpu.memory_space<vmem>>, vector<1x16xf32>
    tpu.vector_store %arg8[%c11_69, %c0_70], %52 {strides = array<i32>} : memref<24x128xf32, #tpu.memory_space<vmem>>, vector<1x16xf32>,
    %c0_71 = arith.constant 0 : index
    %c144 = arith.constant 144 : index
    %54 = vector.load %arg4[%c0_71, %c144] : memref<1x256xf32, #tpu.memory_space<vmem>>, vector<1x16xf32>
    %c12 = arith.constant 12 : index
    %c0_72 = arith.constant 0 : index
    %55 = vector.load %arg7[%c12, %c0_72] : memref<24x128xf32, #tpu.memory_space<vmem>>, vector<1x16xf32>
    tpu.vector_store %arg7[%c12, %c0_72], %54 {strides = array<i32>} : memref<24x128xf32, #tpu.memory_space<vmem>>, vector<1x16xf32>,
    %c0_73 = arith.constant 0 : index
    %c144_74 = arith.constant 144 : index
    %56 = vector.load %arg5[%c0_73, %c144_74] : memref<1x256xf32, #tpu.memory_space<vmem>>, vector<1x16xf32>
    %c12_75 = arith.constant 12 : index
    %c0_76 = arith.constant 0 : index
    %57 = vector.load %arg8[%c12_75, %c0_76] : memref<24x128xf32, #tpu.memory_space<vmem>>, vector<1x16xf32>
    tpu.vector_store %arg8[%c12_75, %c0_76], %56 {strides = array<i32>} : memref<24x128xf32, #tpu.memory_space<vmem>>, vector<1x16xf32>,
    %c0_77 = arith.constant 0 : index
    %c160 = arith.constant 160 : index
    %58 = vector.load %arg4[%c0_77, %c160] : memref<1x256xf32, #tpu.memory_space<vmem>>, vector<1x16xf32>
    %c13 = arith.constant 13 : index
    %c0_78 = arith.constant 0 : index
    %59 = vector.load %arg7[%c13, %c0_78] : memref<24x128xf32, #tpu.memory_space<vmem>>, vector<1x16xf32>
    tpu.vector_store %arg7[%c13, %c0_78], %58 {strides = array<i32>} : memref<24x128xf32, #tpu.memory_space<vmem>>, vector<1x16xf32>,
    %c0_79 = arith.constant 0 : index
    %c160_80 = arith.constant 160 : index
    %60 = vector.load %arg5[%c0_79, %c160_80] : memref<1x256xf32, #tpu.memory_space<vmem>>, vector<1x16xf32>
    %c13_81 = arith.constant 13 : index
    %c0_82 = arith.constant 0 : index
    %61 = vector.load %arg8[%c13_81, %c0_82] : memref<24x128xf32, #tpu.memory_space<vmem>>, vector<1x16xf32>
    tpu.vector_store %arg8[%c13_81, %c0_82], %60 {strides = array<i32>} : memref<24x128xf32, #tpu.memory_space<vmem>>, vector<1x16xf32>,
    %c0_83 = arith.constant 0 : index
    %c176 = arith.constant 176 : index
    %62 = vector.load %arg4[%c0_83, %c176] : memref<1x256xf32, #tpu.memory_space<vmem>>, vector<1x16xf32>
    %c14 = arith.constant 14 : index
    %c0_84 = arith.constant 0 : index
    %63 = vector.load %arg7[%c14, %c0_84] : memref<24x128xf32, #tpu.memory_space<vmem>>, vector<1x16xf32>
    tpu.vector_store %arg7[%c14, %c0_84], %62 {strides = array<i32>} : memref<24x128xf32, #tpu.memory_space<vmem>>, vector<1x16xf32>,
    %c0_85 = arith.constant 0 : index
    %c176_86 = arith.constant 176 : index
    %64 = vector.load %arg5[%c0_85, %c176_86] : memref<1x256xf32, #tpu.memory_space<vmem>>, vector<1x16xf32>
    %c14_87 = arith.constant 14 : index
    %c0_88 = arith.constant 0 : index
    %65 = vector.load %arg8[%c14_87, %c0_88] : memref<24x128xf32, #tpu.memory_space<vmem>>, vector<1x16xf32>
    tpu.vector_store %arg8[%c14_87, %c0_88], %64 {strides = array<i32>} : memref<24x128xf32, #tpu.memory_space<vmem>>, vector<1x16xf32>,
    %c0_89 = arith.constant 0 : index
    %c192 = arith.constant 192 : index
    %66 = vector.load %arg4[%c0_89, %c192] : memref<1x256xf32, #tpu.memory_space<vmem>>, vector<1x16xf32>
    %c15 = arith.constant 15 : index
    %c0_90 = arith.constant 0 : index
    %67 = vector.load %arg7[%c15, %c0_90] : memref<24x128xf32, #tpu.memory_space<vmem>>, vector<1x16xf32>
    tpu.vector_store %arg7[%c15, %c0_90], %66 {strides = array<i32>} : memref<24x128xf32, #tpu.memory_space<vmem>>, vector<1x16xf32>,
    %c0_91 = arith.constant 0 : index
    %c192_92 = arith.constant 192 : index
    %68 = vector.load %arg5[%c0_91, %c192_92] : memref<1x256xf32, #tpu.memory_space<vmem>>, vector<1x16xf32>
    %c15_93 = arith.constant 15 : index
    %c0_94 = arith.constant 0 : index
    %69 = vector.load %arg8[%c15_93, %c0_94] : memref<24x128xf32, #tpu.memory_space<vmem>>, vector<1x16xf32>
    tpu.vector_store %arg8[%c15_93, %c0_94], %68 {strides = array<i32>} : memref<24x128xf32, #tpu.memory_space<vmem>>, vector<1x16xf32>,
    %c0_95 = arith.constant 0 : index
    %c208 = arith.constant 208 : index
    %70 = vector.load %arg4[%c0_95, %c208] : memref<1x256xf32, #tpu.memory_space<vmem>>, vector<1x16xf32>
    %c16_96 = arith.constant 16 : index
    %c0_97 = arith.constant 0 : index
    %71 = vector.load %arg7[%c16_96, %c0_97] : memref<24x128xf32, #tpu.memory_space<vmem>>, vector<1x16xf32>
    tpu.vector_store %arg7[%c16_96, %c0_97], %70 {strides = array<i32>} : memref<24x128xf32, #tpu.memory_space<vmem>>, vector<1x16xf32>,
    %c0_98 = arith.constant 0 : index
    %c208_99 = arith.constant 208 : index
    %72 = vector.load %arg5[%c0_98, %c208_99] : memref<1x256xf32, #tpu.memory_space<vmem>>, vector<1x16xf32>
    %c16_100 = arith.constant 16 : index
    %c0_101 = arith.constant 0 : index
    %73 = vector.load %arg8[%c16_100, %c0_101] : memref<24x128xf32, #tpu.memory_space<vmem>>, vector<1x16xf32>
    tpu.vector_store %arg8[%c16_100, %c0_101], %72 {strides = array<i32>} : memref<24x128xf32, #tpu.memory_space<vmem>>, vector<1x16xf32>,
    %c0_102 = arith.constant 0 : index
    %c224 = arith.constant 224 : index
    %74 = vector.load %arg4[%c0_102, %c224] : memref<1x256xf32, #tpu.memory_space<vmem>>, vector<1x16xf32>
    %c17 = arith.constant 17 : index
    %c0_103 = arith.constant 0 : index
    %75 = vector.load %arg7[%c17, %c0_103] : memref<24x128xf32, #tpu.memory_space<vmem>>, vector<1x16xf32>
    tpu.vector_store %arg7[%c17, %c0_103], %74 {strides = array<i32>} : memref<24x128xf32, #tpu.memory_space<vmem>>, vector<1x16xf32>,
    %c0_104 = arith.constant 0 : index
    %c224_105 = arith.constant 224 : index
    %76 = vector.load %arg5[%c0_104, %c224_105] : memref<1x256xf32, #tpu.memory_space<vmem>>, vector<1x16xf32>
    %c17_106 = arith.constant 17 : index
    %c0_107 = arith.constant 0 : index
    %77 = vector.load %arg8[%c17_106, %c0_107] : memref<24x128xf32, #tpu.memory_space<vmem>>, vector<1x16xf32>
    tpu.vector_store %arg8[%c17_106, %c0_107], %76 {strides = array<i32>} : memref<24x128xf32, #tpu.memory_space<vmem>>, vector<1x16xf32>,
    %c0_108 = arith.constant 0 : index
    %c240 = arith.constant 240 : index
    %78 = vector.load %arg4[%c0_108, %c240] : memref<1x256xf32, #tpu.memory_space<vmem>>, vector<1x16xf32>
    %c18 = arith.constant 18 : index
    %c0_109 = arith.constant 0 : index
    %79 = vector.load %arg7[%c18, %c0_109] : memref<24x128xf32, #tpu.memory_space<vmem>>, vector<1x16xf32>
    tpu.vector_store %arg7[%c18, %c0_109], %78 {strides = array<i32>} : memref<24x128xf32, #tpu.memory_space<vmem>>, vector<1x16xf32>,
    %c0_110 = arith.constant 0 : index
    %c240_111 = arith.constant 240 : index
    %80 = vector.load %arg5[%c0_110, %c240_111] : memref<1x256xf32, #tpu.memory_space<vmem>>, vector<1x16xf32>
    %c18_112 = arith.constant 18 : index
    %c0_113 = arith.constant 0 : index
    %81 = vector.load %arg8[%c18_112, %c0_113] : memref<24x128xf32, #tpu.memory_space<vmem>>, vector<1x16xf32>
    tpu.vector_store %arg8[%c18_112, %c0_113], %80 {strides = array<i32>} : memref<24x128xf32, #tpu.memory_space<vmem>>, vector<1x16xf32>,
    %cst_114 = arith.constant 0.000000e+00 : f32
    %82 = vector.broadcast %cst_114 : f32 to vector<16x128xf32>
    %cst_115 = arith.constant 0.000000e+00 : f32
    %83 = vector.broadcast %cst_115 : f32 to vector<16x128xf32>
    %cst_116 = arith.constant 0.000000e+00 : f32
    %84 = vector.broadcast %cst_116 : f32 to vector<16x128xf32>
    %cst_117 = arith.constant 0.000000e+00 : f32
    %85 = vector.broadcast %cst_117 : f32 to vector<16x128xf32>
    %c0_118 = arith.constant 0 : index
    %c0_119 = arith.constant 0 : index
    %86 = vector.load %arg7[%c0_118, %c0_119] : memref<24x128xf32, #tpu.memory_space<vmem>>, vector<16x128xf32>
    %c3_i32 = arith.constant 3 : i32
    %87 = tpu.dynamic_rotate %86 by %c3_i32 dim 1 : vector<16x128xf32>, i32 -> vector<16x128xf32>
    %c0_120 = arith.constant 0 : index
    %88 = memref.load %arg1[%c0_120] : memref<98xf32, #tpu.memory_space<smem>>
    %89 = vector.broadcast %88 : f32 to vector<16x128xf32>
    %90 = arith.mulf %89, %87 : vector<16x128xf32>
    %91 = arith.addf %82, %90 : vector<16x128xf32>
    %c2_i32 = arith.constant 2 : i32
    %92 = tpu.dynamic_rotate %86 by %c2_i32 dim 1 : vector<16x128xf32>, i32 -> vector<16x128xf32>
    %c1 = arith.constant 1 : index
    %93 = memref.load %arg1[%c1] : memref<98xf32, #tpu.memory_space<smem>>
    %94 = vector.broadcast %93 : f32 to vector<16x128xf32>
    %95 = arith.mulf %94, %92 : vector<16x128xf32>
    %96 = arith.addf %83, %95 : vector<16x128xf32>
    %c1_i32 = arith.constant 1 : i32
    %97 = tpu.dynamic_rotate %86 by %c1_i32 dim 1 : vector<16x128xf32>, i32 -> vector<16x128xf32>
    %c2 = arith.constant 2 : index
    %98 = memref.load %arg1[%c2] : memref<98xf32, #tpu.memory_space<smem>>
    %99 = vector.broadcast %98 : f32 to vector<16x128xf32>
    %100 = arith.mulf %99, %97 : vector<16x128xf32>
    %101 = arith.addf %84, %100 : vector<16x128xf32>
    %c3_121 = arith.constant 3 : index
    %102 = memref.load %arg1[%c3_121] : memref<98xf32, #tpu.memory_space<smem>>
    %103 = vector.broadcast %102 : f32 to vector<16x128xf32>
    %104 = arith.mulf %103, %86 : vector<16x128xf32>
    %105 = arith.addf %85, %104 : vector<16x128xf32>
    %c127_i32 = arith.constant 127 : i32
    %106 = tpu.dynamic_rotate %86 by %c127_i32 dim 1 : vector<16x128xf32>, i32 -> vector<16x128xf32>
    %c4_122 = arith.constant 4 : index
    %107 = memref.load %arg1[%c4_122] : memref<98xf32, #tpu.memory_space<smem>>
    %108 = vector.broadcast %107 : f32 to vector<16x128xf32>
    %109 = arith.mulf %108, %106 : vector<16x128xf32>
    %110 = arith.addf %91, %109 : vector<16x128xf32>
    %c126_i32 = arith.constant 126 : i32
    %111 = tpu.dynamic_rotate %86 by %c126_i32 dim 1 : vector<16x128xf32>, i32 -> vector<16x128xf32>
    %c5_123 = arith.constant 5 : index
    %112 = memref.load %arg1[%c5_123] : memref<98xf32, #tpu.memory_space<smem>>
    %113 = vector.broadcast %112 : f32 to vector<16x128xf32>
    %114 = arith.mulf %113, %111 : vector<16x128xf32>
    %115 = arith.addf %96, %114 : vector<16x128xf32>
    %c125_i32 = arith.constant 125 : i32
    %116 = tpu.dynamic_rotate %86 by %c125_i32 dim 1 : vector<16x128xf32>, i32 -> vector<16x128xf32>
    %c6_124 = arith.constant 6 : index
    %117 = memref.load %arg1[%c6_124] : memref<98xf32, #tpu.memory_space<smem>>
    %118 = vector.broadcast %117 : f32 to vector<16x128xf32>
    %119 = arith.mulf %118, %116 : vector<16x128xf32>
    %120 = arith.addf %101, %119 : vector<16x128xf32>
    %c1_125 = arith.constant 1 : index
    %c0_126 = arith.constant 0 : index
    %121 = vector.load %arg7[%c1_125, %c0_126] : memref<24x128xf32, #tpu.memory_space<vmem>>, vector<16x128xf32>
    %c3_i32_127 = arith.constant 3 : i32
    %122 = tpu.dynamic_rotate %121 by %c3_i32_127 dim 1 : vector<16x128xf32>, i32 -> vector<16x128xf32>
    %c7_128 = arith.constant 7 : index
    %123 = memref.load %arg1[%c7_128] : memref<98xf32, #tpu.memory_space<smem>>
    %124 = vector.broadcast %123 : f32 to vector<16x128xf32>
    %125 = arith.mulf %124, %122 : vector<16x128xf32>
    %126 = arith.addf %105, %125 : vector<16x128xf32>
    %c2_i32_129 = arith.constant 2 : i32
    %127 = tpu.dynamic_rotate %121 by %c2_i32_129 dim 1 : vector<16x128xf32>, i32 -> vector<16x128xf32>
    %c8_130 = arith.constant 8 : index
    %128 = memref.load %arg1[%c8_130] : memref<98xf32, #tpu.memory_space<smem>>
    %129 = vector.broadcast %128 : f32 to vector<16x128xf32>
    %130 = arith.mulf %129, %127 : vector<16x128xf32>
    %131 = arith.addf %110, %130 : vector<16x128xf32>
    %c1_i32_131 = arith.constant 1 : i32
    %132 = tpu.dynamic_rotate %121 by %c1_i32_131 dim 1 : vector<16x128xf32>, i32 -> vector<16x128xf32>
    %c9_132 = arith.constant 9 : index
    %133 = memref.load %arg1[%c9_132] : memref<98xf32, #tpu.memory_space<smem>>
    %134 = vector.broadcast %133 : f32 to vector<16x128xf32>
    %135 = arith.mulf %134, %132 : vector<16x128xf32>
    %136 = arith.addf %115, %135 : vector<16x128xf32>
    %c10_133 = arith.constant 10 : index
    %137 = memref.load %arg1[%c10_133] : memref<98xf32, #tpu.memory_space<smem>>
    %138 = vector.broadcast %137 : f32 to vector<16x128xf32>
    %139 = arith.mulf %138, %121 : vector<16x128xf32>
    %140 = arith.addf %120, %139 : vector<16x128xf32>
    %c127_i32_134 = arith.constant 127 : i32
    %141 = tpu.dynamic_rotate %121 by %c127_i32_134 dim 1 : vector<16x128xf32>, i32 -> vector<16x128xf32>
    %c11_135 = arith.constant 11 : index
    %142 = memref.load %arg1[%c11_135] : memref<98xf32, #tpu.memory_space<smem>>
    %143 = vector.broadcast %142 : f32 to vector<16x128xf32>
    %144 = arith.mulf %143, %141 : vector<16x128xf32>
    %145 = arith.addf %126, %144 : vector<16x128xf32>
    %c126_i32_136 = arith.constant 126 : i32
    %146 = tpu.dynamic_rotate %121 by %c126_i32_136 dim 1 : vector<16x128xf32>, i32 -> vector<16x128xf32>
    %c12_137 = arith.constant 12 : index
    %147 = memref.load %arg1[%c12_137] : memref<98xf32, #tpu.memory_space<smem>>
    %148 = vector.broadcast %147 : f32 to vector<16x128xf32>
    %149 = arith.mulf %148, %146 : vector<16x128xf32>
    %150 = arith.addf %131, %149 : vector<16x128xf32>
    %c125_i32_138 = arith.constant 125 : i32
    %151 = tpu.dynamic_rotate %121 by %c125_i32_138 dim 1 : vector<16x128xf32>, i32 -> vector<16x128xf32>
    %c13_139 = arith.constant 13 : index
    %152 = memref.load %arg1[%c13_139] : memref<98xf32, #tpu.memory_space<smem>>
    %153 = vector.broadcast %152 : f32 to vector<16x128xf32>
    %154 = arith.mulf %153, %151 : vector<16x128xf32>
    %155 = arith.addf %136, %154 : vector<16x128xf32>
    %c2_140 = arith.constant 2 : index
    %c0_141 = arith.constant 0 : index
    %156 = vector.load %arg7[%c2_140, %c0_141] : memref<24x128xf32, #tpu.memory_space<vmem>>, vector<16x128xf32>
    %c3_i32_142 = arith.constant 3 : i32
    %157 = tpu.dynamic_rotate %156 by %c3_i32_142 dim 1 : vector<16x128xf32>, i32 -> vector<16x128xf32>
    %c14_143 = arith.constant 14 : index
    %158 = memref.load %arg1[%c14_143] : memref<98xf32, #tpu.memory_space<smem>>
    %159 = vector.broadcast %158 : f32 to vector<16x128xf32>
    %160 = arith.mulf %159, %157 : vector<16x128xf32>
    %161 = arith.addf %140, %160 : vector<16x128xf32>
    %c2_i32_144 = arith.constant 2 : i32
    %162 = tpu.dynamic_rotate %156 by %c2_i32_144 dim 1 : vector<16x128xf32>, i32 -> vector<16x128xf32>
    %c15_145 = arith.constant 15 : index
    %163 = memref.load %arg1[%c15_145] : memref<98xf32, #tpu.memory_space<smem>>
    %164 = vector.broadcast %163 : f32 to vector<16x128xf32>
    %165 = arith.mulf %164, %162 : vector<16x128xf32>
    %166 = arith.addf %145, %165 : vector<16x128xf32>
    %c1_i32_146 = arith.constant 1 : i32
    %167 = tpu.dynamic_rotate %156 by %c1_i32_146 dim 1 : vector<16x128xf32>, i32 -> vector<16x128xf32>
    %c16_147 = arith.constant 16 : index
    %168 = memref.load %arg1[%c16_147] : memref<98xf32, #tpu.memory_space<smem>>
    %169 = vector.broadcast %168 : f32 to vector<16x128xf32>
    %170 = arith.mulf %169, %167 : vector<16x128xf32>
    %171 = arith.addf %150, %170 : vector<16x128xf32>
    %c17_148 = arith.constant 17 : index
    %172 = memref.load %arg1[%c17_148] : memref<98xf32, #tpu.memory_space<smem>>
    %173 = vector.broadcast %172 : f32 to vector<16x128xf32>
    %174 = arith.mulf %173, %156 : vector<16x128xf32>
    %175 = arith.addf %155, %174 : vector<16x128xf32>
    %c127_i32_149 = arith.constant 127 : i32
    %176 = tpu.dynamic_rotate %156 by %c127_i32_149 dim 1 : vector<16x128xf32>, i32 -> vector<16x128xf32>
    %c18_150 = arith.constant 18 : index
    %177 = memref.load %arg1[%c18_150] : memref<98xf32, #tpu.memory_space<smem>>
    %178 = vector.broadcast %177 : f32 to vector<16x128xf32>
    %179 = arith.mulf %178, %176 : vector<16x128xf32>
    %180 = arith.addf %161, %179 : vector<16x128xf32>
    %c126_i32_151 = arith.constant 126 : i32
    %181 = tpu.dynamic_rotate %156 by %c126_i32_151 dim 1 : vector<16x128xf32>, i32 -> vector<16x128xf32>
    %c19 = arith.constant 19 : index
    %182 = memref.load %arg1[%c19] : memref<98xf32, #tpu.memory_space<smem>>
    %183 = vector.broadcast %182 : f32 to vector<16x128xf32>
    %184 = arith.mulf %183, %181 : vector<16x128xf32>
    %185 = arith.addf %166, %184 : vector<16x128xf32>
    %c125_i32_152 = arith.constant 125 : i32
    %186 = tpu.dynamic_rotate %156 by %c125_i32_152 dim 1 : vector<16x128xf32>, i32 -> vector<16x128xf32>
    %c20 = arith.constant 20 : index
    %187 = memref.load %arg1[%c20] : memref<98xf32, #tpu.memory_space<smem>>
    %188 = vector.broadcast %187 : f32 to vector<16x128xf32>
    %189 = arith.mulf %188, %186 : vector<16x128xf32>
    %190 = arith.addf %171, %189 : vector<16x128xf32>
    %c3_153 = arith.constant 3 : index
    %c0_154 = arith.constant 0 : index
    %191 = vector.load %arg7[%c3_153, %c0_154] : memref<24x128xf32, #tpu.memory_space<vmem>>, vector<16x128xf32>
    %c3_i32_155 = arith.constant 3 : i32
    %192 = tpu.dynamic_rotate %191 by %c3_i32_155 dim 1 : vector<16x128xf32>, i32 -> vector<16x128xf32>
    %c21 = arith.constant 21 : index
    %193 = memref.load %arg1[%c21] : memref<98xf32, #tpu.memory_space<smem>>
    %194 = vector.broadcast %193 : f32 to vector<16x128xf32>
    %195 = arith.mulf %194, %192 : vector<16x128xf32>
    %196 = arith.addf %175, %195 : vector<16x128xf32>
    %c2_i32_156 = arith.constant 2 : i32
    %197 = tpu.dynamic_rotate %191 by %c2_i32_156 dim 1 : vector<16x128xf32>, i32 -> vector<16x128xf32>
    %c22 = arith.constant 22 : index
    %198 = memref.load %arg1[%c22] : memref<98xf32, #tpu.memory_space<smem>>
    %199 = vector.broadcast %198 : f32 to vector<16x128xf32>
    %200 = arith.mulf %199, %197 : vector<16x128xf32>
    %201 = arith.addf %180, %200 : vector<16x128xf32>
    %c1_i32_157 = arith.constant 1 : i32
    %202 = tpu.dynamic_rotate %191 by %c1_i32_157 dim 1 : vector<16x128xf32>, i32 -> vector<16x128xf32>
    %c23 = arith.constant 23 : index
    %203 = memref.load %arg1[%c23] : memref<98xf32, #tpu.memory_space<smem>>
    %204 = vector.broadcast %203 : f32 to vector<16x128xf32>
    %205 = arith.mulf %204, %202 : vector<16x128xf32>
    %206 = arith.addf %185, %205 : vector<16x128xf32>
    %c24 = arith.constant 24 : index
    %207 = memref.load %arg1[%c24] : memref<98xf32, #tpu.memory_space<smem>>
    %208 = vector.broadcast %207 : f32 to vector<16x128xf32>
    %209 = arith.mulf %208, %191 : vector<16x128xf32>
    %210 = arith.addf %190, %209 : vector<16x128xf32>
    %c127_i32_158 = arith.constant 127 : i32
    %211 = tpu.dynamic_rotate %191 by %c127_i32_158 dim 1 : vector<16x128xf32>, i32 -> vector<16x128xf32>
    %c25 = arith.constant 25 : index
    %212 = memref.load %arg1[%c25] : memref<98xf32, #tpu.memory_space<smem>>
    %213 = vector.broadcast %212 : f32 to vector<16x128xf32>
    %214 = arith.mulf %213, %211 : vector<16x128xf32>
    %215 = arith.addf %196, %214 : vector<16x128xf32>
    %c126_i32_159 = arith.constant 126 : i32
    %216 = tpu.dynamic_rotate %191 by %c126_i32_159 dim 1 : vector<16x128xf32>, i32 -> vector<16x128xf32>
    %c26 = arith.constant 26 : index
    %217 = memref.load %arg1[%c26] : memref<98xf32, #tpu.memory_space<smem>>
    %218 = vector.broadcast %217 : f32 to vector<16x128xf32>
    %219 = arith.mulf %218, %216 : vector<16x128xf32>
    %220 = arith.addf %201, %219 : vector<16x128xf32>
    %c125_i32_160 = arith.constant 125 : i32
    %221 = tpu.dynamic_rotate %191 by %c125_i32_160 dim 1 : vector<16x128xf32>, i32 -> vector<16x128xf32>
    %c27 = arith.constant 27 : index
    %222 = memref.load %arg1[%c27] : memref<98xf32, #tpu.memory_space<smem>>
    %223 = vector.broadcast %222 : f32 to vector<16x128xf32>
    %224 = arith.mulf %223, %221 : vector<16x128xf32>
    %225 = arith.addf %206, %224 : vector<16x128xf32>
    %c4_161 = arith.constant 4 : index
    %c0_162 = arith.constant 0 : index
    %226 = vector.load %arg7[%c4_161, %c0_162] : memref<24x128xf32, #tpu.memory_space<vmem>>, vector<16x128xf32>
    %c3_i32_163 = arith.constant 3 : i32
    %227 = tpu.dynamic_rotate %226 by %c3_i32_163 dim 1 : vector<16x128xf32>, i32 -> vector<16x128xf32>
    %c28 = arith.constant 28 : index
    %228 = memref.load %arg1[%c28] : memref<98xf32, #tpu.memory_space<smem>>
    %229 = vector.broadcast %228 : f32 to vector<16x128xf32>
    %230 = arith.mulf %229, %227 : vector<16x128xf32>
    %231 = arith.addf %210, %230 : vector<16x128xf32>
    %c2_i32_164 = arith.constant 2 : i32
    %232 = tpu.dynamic_rotate %226 by %c2_i32_164 dim 1 : vector<16x128xf32>, i32 -> vector<16x128xf32>
    %c29 = arith.constant 29 : index
    %233 = memref.load %arg1[%c29] : memref<98xf32, #tpu.memory_space<smem>>
    %234 = vector.broadcast %233 : f32 to vector<16x128xf32>
    %235 = arith.mulf %234, %232 : vector<16x128xf32>
    %236 = arith.addf %215, %235 : vector<16x128xf32>
    %c1_i32_165 = arith.constant 1 : i32
    %237 = tpu.dynamic_rotate %226 by %c1_i32_165 dim 1 : vector<16x128xf32>, i32 -> vector<16x128xf32>
    %c30 = arith.constant 30 : index
    %238 = memref.load %arg1[%c30] : memref<98xf32, #tpu.memory_space<smem>>
    %239 = vector.broadcast %238 : f32 to vector<16x128xf32>
    %240 = arith.mulf %239, %237 : vector<16x128xf32>
    %241 = arith.addf %220, %240 : vector<16x128xf32>
    %c31 = arith.constant 31 : index
    %242 = memref.load %arg1[%c31] : memref<98xf32, #tpu.memory_space<smem>>
    %243 = vector.broadcast %242 : f32 to vector<16x128xf32>
    %244 = arith.mulf %243, %226 : vector<16x128xf32>
    %245 = arith.addf %225, %244 : vector<16x128xf32>
    %c127_i32_166 = arith.constant 127 : i32
    %246 = tpu.dynamic_rotate %226 by %c127_i32_166 dim 1 : vector<16x128xf32>, i32 -> vector<16x128xf32>
    %c32_167 = arith.constant 32 : index
    %247 = memref.load %arg1[%c32_167] : memref<98xf32, #tpu.memory_space<smem>>
    %248 = vector.broadcast %247 : f32 to vector<16x128xf32>
    %249 = arith.mulf %248, %246 : vector<16x128xf32>
    %250 = arith.addf %231, %249 : vector<16x128xf32>
    %c126_i32_168 = arith.constant 126 : i32
    %251 = tpu.dynamic_rotate %226 by %c126_i32_168 dim 1 : vector<16x128xf32>, i32 -> vector<16x128xf32>
    %c33 = arith.constant 33 : index
    %252 = memref.load %arg1[%c33] : memref<98xf32, #tpu.memory_space<smem>>
    %253 = vector.broadcast %252 : f32 to vector<16x128xf32>
    %254 = arith.mulf %253, %251 : vector<16x128xf32>
    %255 = arith.addf %236, %254 : vector<16x128xf32>
    %c125_i32_169 = arith.constant 125 : i32
    %256 = tpu.dynamic_rotate %226 by %c125_i32_169 dim 1 : vector<16x128xf32>, i32 -> vector<16x128xf32>
    %c34 = arith.constant 34 : index
    %257 = memref.load %arg1[%c34] : memref<98xf32, #tpu.memory_space<smem>>
    %258 = vector.broadcast %257 : f32 to vector<16x128xf32>
    %259 = arith.mulf %258, %256 : vector<16x128xf32>
    %260 = arith.addf %241, %259 : vector<16x128xf32>
    %c5_170 = arith.constant 5 : index
    %c0_171 = arith.constant 0 : index
    %261 = vector.load %arg7[%c5_170, %c0_171] : memref<24x128xf32, #tpu.memory_space<vmem>>, vector<16x128xf32>
    %c3_i32_172 = arith.constant 3 : i32
    %262 = tpu.dynamic_rotate %261 by %c3_i32_172 dim 1 : vector<16x128xf32>, i32 -> vector<16x128xf32>
    %c35 = arith.constant 35 : index
    %263 = memref.load %arg1[%c35] : memref<98xf32, #tpu.memory_space<smem>>
    %264 = vector.broadcast %263 : f32 to vector<16x128xf32>
    %265 = arith.mulf %264, %262 : vector<16x128xf32>
    %266 = arith.addf %245, %265 : vector<16x128xf32>
    %c2_i32_173 = arith.constant 2 : i32
    %267 = tpu.dynamic_rotate %261 by %c2_i32_173 dim 1 : vector<16x128xf32>, i32 -> vector<16x128xf32>
    %c36 = arith.constant 36 : index
    %268 = memref.load %arg1[%c36] : memref<98xf32, #tpu.memory_space<smem>>
    %269 = vector.broadcast %268 : f32 to vector<16x128xf32>
    %270 = arith.mulf %269, %267 : vector<16x128xf32>
    %271 = arith.addf %250, %270 : vector<16x128xf32>
    %c1_i32_174 = arith.constant 1 : i32
    %272 = tpu.dynamic_rotate %261 by %c1_i32_174 dim 1 : vector<16x128xf32>, i32 -> vector<16x128xf32>
    %c37 = arith.constant 37 : index
    %273 = memref.load %arg1[%c37] : memref<98xf32, #tpu.memory_space<smem>>
    %274 = vector.broadcast %273 : f32 to vector<16x128xf32>
    %275 = arith.mulf %274, %272 : vector<16x128xf32>
    %276 = arith.addf %255, %275 : vector<16x128xf32>
    %c38 = arith.constant 38 : index
    %277 = memref.load %arg1[%c38] : memref<98xf32, #tpu.memory_space<smem>>
    %278 = vector.broadcast %277 : f32 to vector<16x128xf32>
    %279 = arith.mulf %278, %261 : vector<16x128xf32>
    %280 = arith.addf %260, %279 : vector<16x128xf32>
    %c127_i32_175 = arith.constant 127 : i32
    %281 = tpu.dynamic_rotate %261 by %c127_i32_175 dim 1 : vector<16x128xf32>, i32 -> vector<16x128xf32>
    %c39 = arith.constant 39 : index
    %282 = memref.load %arg1[%c39] : memref<98xf32, #tpu.memory_space<smem>>
    %283 = vector.broadcast %282 : f32 to vector<16x128xf32>
    %284 = arith.mulf %283, %281 : vector<16x128xf32>
    %285 = arith.addf %266, %284 : vector<16x128xf32>
    %c126_i32_176 = arith.constant 126 : i32
    %286 = tpu.dynamic_rotate %261 by %c126_i32_176 dim 1 : vector<16x128xf32>, i32 -> vector<16x128xf32>
    %c40 = arith.constant 40 : index
    %287 = memref.load %arg1[%c40] : memref<98xf32, #tpu.memory_space<smem>>
    %288 = vector.broadcast %287 : f32 to vector<16x128xf32>
    %289 = arith.mulf %288, %286 : vector<16x128xf32>
    %290 = arith.addf %271, %289 : vector<16x128xf32>
    %c125_i32_177 = arith.constant 125 : i32
    %291 = tpu.dynamic_rotate %261 by %c125_i32_177 dim 1 : vector<16x128xf32>, i32 -> vector<16x128xf32>
    %c41 = arith.constant 41 : index
    %292 = memref.load %arg1[%c41] : memref<98xf32, #tpu.memory_space<smem>>
    %293 = vector.broadcast %292 : f32 to vector<16x128xf32>
    %294 = arith.mulf %293, %291 : vector<16x128xf32>
    %295 = arith.addf %276, %294 : vector<16x128xf32>
    %c6_178 = arith.constant 6 : index
    %c0_179 = arith.constant 0 : index
    %296 = vector.load %arg7[%c6_178, %c0_179] : memref<24x128xf32, #tpu.memory_space<vmem>>, vector<16x128xf32>
    %c3_i32_180 = arith.constant 3 : i32
    %297 = tpu.dynamic_rotate %296 by %c3_i32_180 dim 1 : vector<16x128xf32>, i32 -> vector<16x128xf32>
    %c42 = arith.constant 42 : index
    %298 = memref.load %arg1[%c42] : memref<98xf32, #tpu.memory_space<smem>>
    %299 = vector.broadcast %298 : f32 to vector<16x128xf32>
    %300 = arith.mulf %299, %297 : vector<16x128xf32>
    %301 = arith.addf %280, %300 : vector<16x128xf32>
    %c2_i32_181 = arith.constant 2 : i32
    %302 = tpu.dynamic_rotate %296 by %c2_i32_181 dim 1 : vector<16x128xf32>, i32 -> vector<16x128xf32>
    %c43 = arith.constant 43 : index
    %303 = memref.load %arg1[%c43] : memref<98xf32, #tpu.memory_space<smem>>
    %304 = vector.broadcast %303 : f32 to vector<16x128xf32>
    %305 = arith.mulf %304, %302 : vector<16x128xf32>
    %306 = arith.addf %285, %305 : vector<16x128xf32>
    %c1_i32_182 = arith.constant 1 : i32
    %307 = tpu.dynamic_rotate %296 by %c1_i32_182 dim 1 : vector<16x128xf32>, i32 -> vector<16x128xf32>
    %c44 = arith.constant 44 : index
    %308 = memref.load %arg1[%c44] : memref<98xf32, #tpu.memory_space<smem>>
    %309 = vector.broadcast %308 : f32 to vector<16x128xf32>
    %310 = arith.mulf %309, %307 : vector<16x128xf32>
    %311 = arith.addf %290, %310 : vector<16x128xf32>
    %c45 = arith.constant 45 : index
    %312 = memref.load %arg1[%c45] : memref<98xf32, #tpu.memory_space<smem>>
    %313 = vector.broadcast %312 : f32 to vector<16x128xf32>
    %314 = arith.mulf %313, %296 : vector<16x128xf32>
    %315 = arith.addf %295, %314 : vector<16x128xf32>
    %c127_i32_183 = arith.constant 127 : i32
    %316 = tpu.dynamic_rotate %296 by %c127_i32_183 dim 1 : vector<16x128xf32>, i32 -> vector<16x128xf32>
    %c46 = arith.constant 46 : index
    %317 = memref.load %arg1[%c46] : memref<98xf32, #tpu.memory_space<smem>>
    %318 = vector.broadcast %317 : f32 to vector<16x128xf32>
    %319 = arith.mulf %318, %316 : vector<16x128xf32>
    %320 = arith.addf %301, %319 : vector<16x128xf32>
    %c126_i32_184 = arith.constant 126 : i32
    %321 = tpu.dynamic_rotate %296 by %c126_i32_184 dim 1 : vector<16x128xf32>, i32 -> vector<16x128xf32>
    %c47 = arith.constant 47 : index
    %322 = memref.load %arg1[%c47] : memref<98xf32, #tpu.memory_space<smem>>
    %323 = vector.broadcast %322 : f32 to vector<16x128xf32>
    %324 = arith.mulf %323, %321 : vector<16x128xf32>
    %325 = arith.addf %306, %324 : vector<16x128xf32>
    %c125_i32_185 = arith.constant 125 : i32
    %326 = tpu.dynamic_rotate %296 by %c125_i32_185 dim 1 : vector<16x128xf32>, i32 -> vector<16x128xf32>
    %c48_186 = arith.constant 48 : index
    %327 = memref.load %arg1[%c48_186] : memref<98xf32, #tpu.memory_space<smem>>
    %328 = vector.broadcast %327 : f32 to vector<16x128xf32>
    %329 = arith.mulf %328, %326 : vector<16x128xf32>
    %330 = arith.addf %311, %329 : vector<16x128xf32>
    %c0_187 = arith.constant 0 : index
    %c0_188 = arith.constant 0 : index
    %331 = vector.load %arg8[%c0_187, %c0_188] : memref<24x128xf32, #tpu.memory_space<vmem>>, vector<16x128xf32>
    %c3_i32_189 = arith.constant 3 : i32
    %332 = tpu.dynamic_rotate %331 by %c3_i32_189 dim 1 : vector<16x128xf32>, i32 -> vector<16x128xf32>
    %c49 = arith.constant 49 : index
    %333 = memref.load %arg1[%c49] : memref<98xf32, #tpu.memory_space<smem>>
    %334 = vector.broadcast %333 : f32 to vector<16x128xf32>
    %335 = arith.mulf %334, %332 : vector<16x128xf32>
    %336 = arith.addf %315, %335 : vector<16x128xf32>
    %c2_i32_190 = arith.constant 2 : i32
    %337 = tpu.dynamic_rotate %331 by %c2_i32_190 dim 1 : vector<16x128xf32>, i32 -> vector<16x128xf32>
    %c50 = arith.constant 50 : index
    %338 = memref.load %arg1[%c50] : memref<98xf32, #tpu.memory_space<smem>>
    %339 = vector.broadcast %338 : f32 to vector<16x128xf32>
    %340 = arith.mulf %339, %337 : vector<16x128xf32>
    %341 = arith.addf %320, %340 : vector<16x128xf32>
    %c1_i32_191 = arith.constant 1 : i32
    %342 = tpu.dynamic_rotate %331 by %c1_i32_191 dim 1 : vector<16x128xf32>, i32 -> vector<16x128xf32>
    %c51 = arith.constant 51 : index
    %343 = memref.load %arg1[%c51] : memref<98xf32, #tpu.memory_space<smem>>
    %344 = vector.broadcast %343 : f32 to vector<16x128xf32>
    %345 = arith.mulf %344, %342 : vector<16x128xf32>
    %346 = arith.addf %325, %345 : vector<16x128xf32>
    %c52 = arith.constant 52 : index
    %347 = memref.load %arg1[%c52] : memref<98xf32, #tpu.memory_space<smem>>
    %348 = vector.broadcast %347 : f32 to vector<16x128xf32>
    %349 = arith.mulf %348, %331 : vector<16x128xf32>
    %350 = arith.addf %330, %349 : vector<16x128xf32>
    %c127_i32_192 = arith.constant 127 : i32
    %351 = tpu.dynamic_rotate %331 by %c127_i32_192 dim 1 : vector<16x128xf32>, i32 -> vector<16x128xf32>
    %c53 = arith.constant 53 : index
    %352 = memref.load %arg1[%c53] : memref<98xf32, #tpu.memory_space<smem>>
    %353 = vector.broadcast %352 : f32 to vector<16x128xf32>
    %354 = arith.mulf %353, %351 : vector<16x128xf32>
    %355 = arith.addf %336, %354 : vector<16x128xf32>
    %c126_i32_193 = arith.constant 126 : i32
    %356 = tpu.dynamic_rotate %331 by %c126_i32_193 dim 1 : vector<16x128xf32>, i32 -> vector<16x128xf32>
    %c54 = arith.constant 54 : index
    %357 = memref.load %arg1[%c54] : memref<98xf32, #tpu.memory_space<smem>>
    %358 = vector.broadcast %357 : f32 to vector<16x128xf32>
    %359 = arith.mulf %358, %356 : vector<16x128xf32>
    %360 = arith.addf %341, %359 : vector<16x128xf32>
    %c125_i32_194 = arith.constant 125 : i32
    %361 = tpu.dynamic_rotate %331 by %c125_i32_194 dim 1 : vector<16x128xf32>, i32 -> vector<16x128xf32>
    %c55 = arith.constant 55 : index
    %362 = memref.load %arg1[%c55] : memref<98xf32, #tpu.memory_space<smem>>
    %363 = vector.broadcast %362 : f32 to vector<16x128xf32>
    %364 = arith.mulf %363, %361 : vector<16x128xf32>
    %365 = arith.addf %346, %364 : vector<16x128xf32>
    %c1_195 = arith.constant 1 : index
    %c0_196 = arith.constant 0 : index
    %366 = vector.load %arg8[%c1_195, %c0_196] : memref<24x128xf32, #tpu.memory_space<vmem>>, vector<16x128xf32>
    %c3_i32_197 = arith.constant 3 : i32
    %367 = tpu.dynamic_rotate %366 by %c3_i32_197 dim 1 : vector<16x128xf32>, i32 -> vector<16x128xf32>
    %c56 = arith.constant 56 : index
    %368 = memref.load %arg1[%c56] : memref<98xf32, #tpu.memory_space<smem>>
    %369 = vector.broadcast %368 : f32 to vector<16x128xf32>
    %370 = arith.mulf %369, %367 : vector<16x128xf32>
    %371 = arith.addf %350, %370 : vector<16x128xf32>
    %c2_i32_198 = arith.constant 2 : i32
    %372 = tpu.dynamic_rotate %366 by %c2_i32_198 dim 1 : vector<16x128xf32>, i32 -> vector<16x128xf32>
    %c57 = arith.constant 57 : index
    %373 = memref.load %arg1[%c57] : memref<98xf32, #tpu.memory_space<smem>>
    %374 = vector.broadcast %373 : f32 to vector<16x128xf32>
    %375 = arith.mulf %374, %372 : vector<16x128xf32>
    %376 = arith.addf %355, %375 : vector<16x128xf32>
    %c1_i32_199 = arith.constant 1 : i32
    %377 = tpu.dynamic_rotate %366 by %c1_i32_199 dim 1 : vector<16x128xf32>, i32 -> vector<16x128xf32>
    %c58 = arith.constant 58 : index
    %378 = memref.load %arg1[%c58] : memref<98xf32, #tpu.memory_space<smem>>
    %379 = vector.broadcast %378 : f32 to vector<16x128xf32>
    %380 = arith.mulf %379, %377 : vector<16x128xf32>
    %381 = arith.addf %360, %380 : vector<16x128xf32>
    %c59 = arith.constant 59 : index
    %382 = memref.load %arg1[%c59] : memref<98xf32, #tpu.memory_space<smem>>
    %383 = vector.broadcast %382 : f32 to vector<16x128xf32>
    %384 = arith.mulf %383, %366 : vector<16x128xf32>
    %385 = arith.addf %365, %384 : vector<16x128xf32>
    %c127_i32_200 = arith.constant 127 : i32
    %386 = tpu.dynamic_rotate %366 by %c127_i32_200 dim 1 : vector<16x128xf32>, i32 -> vector<16x128xf32>
    %c60 = arith.constant 60 : index
    %387 = memref.load %arg1[%c60] : memref<98xf32, #tpu.memory_space<smem>>
    %388 = vector.broadcast %387 : f32 to vector<16x128xf32>
    %389 = arith.mulf %388, %386 : vector<16x128xf32>
    %390 = arith.addf %371, %389 : vector<16x128xf32>
    %c126_i32_201 = arith.constant 126 : i32
    %391 = tpu.dynamic_rotate %366 by %c126_i32_201 dim 1 : vector<16x128xf32>, i32 -> vector<16x128xf32>
    %c61 = arith.constant 61 : index
    %392 = memref.load %arg1[%c61] : memref<98xf32, #tpu.memory_space<smem>>
    %393 = vector.broadcast %392 : f32 to vector<16x128xf32>
    %394 = arith.mulf %393, %391 : vector<16x128xf32>
    %395 = arith.addf %376, %394 : vector<16x128xf32>
    %c125_i32_202 = arith.constant 125 : i32
    %396 = tpu.dynamic_rotate %366 by %c125_i32_202 dim 1 : vector<16x128xf32>, i32 -> vector<16x128xf32>
    %c62 = arith.constant 62 : index
    %397 = memref.load %arg1[%c62] : memref<98xf32, #tpu.memory_space<smem>>
    %398 = vector.broadcast %397 : f32 to vector<16x128xf32>
    %399 = arith.mulf %398, %396 : vector<16x128xf32>
    %400 = arith.addf %381, %399 : vector<16x128xf32>
    %c2_203 = arith.constant 2 : index
    %c0_204 = arith.constant 0 : index
    %401 = vector.load %arg8[%c2_203, %c0_204] : memref<24x128xf32, #tpu.memory_space<vmem>>, vector<16x128xf32>
    %c3_i32_205 = arith.constant 3 : i32
    %402 = tpu.dynamic_rotate %401 by %c3_i32_205 dim 1 : vector<16x128xf32>, i32 -> vector<16x128xf32>
    %c63 = arith.constant 63 : index
    %403 = memref.load %arg1[%c63] : memref<98xf32, #tpu.memory_space<smem>>
    %404 = vector.broadcast %403 : f32 to vector<16x128xf32>
    %405 = arith.mulf %404, %402 : vector<16x128xf32>
    %406 = arith.addf %385, %405 : vector<16x128xf32>
    %c2_i32_206 = arith.constant 2 : i32
    %407 = tpu.dynamic_rotate %401 by %c2_i32_206 dim 1 : vector<16x128xf32>, i32 -> vector<16x128xf32>
    %c64_207 = arith.constant 64 : index
    %408 = memref.load %arg1[%c64_207] : memref<98xf32, #tpu.memory_space<smem>>
    %409 = vector.broadcast %408 : f32 to vector<16x128xf32>
    %410 = arith.mulf %409, %407 : vector<16x128xf32>
    %411 = arith.addf %390, %410 : vector<16x128xf32>
    %c1_i32_208 = arith.constant 1 : i32
    %412 = tpu.dynamic_rotate %401 by %c1_i32_208 dim 1 : vector<16x128xf32>, i32 -> vector<16x128xf32>
    %c65 = arith.constant 65 : index
    %413 = memref.load %arg1[%c65] : memref<98xf32, #tpu.memory_space<smem>>
    %414 = vector.broadcast %413 : f32 to vector<16x128xf32>
    %415 = arith.mulf %414, %412 : vector<16x128xf32>
    %416 = arith.addf %395, %415 : vector<16x128xf32>
    %c66 = arith.constant 66 : index
    %417 = memref.load %arg1[%c66] : memref<98xf32, #tpu.memory_space<smem>>
    %418 = vector.broadcast %417 : f32 to vector<16x128xf32>
    %419 = arith.mulf %418, %401 : vector<16x128xf32>
    %420 = arith.addf %400, %419 : vector<16x128xf32>
    %c127_i32_209 = arith.constant 127 : i32
    %421 = tpu.dynamic_rotate %401 by %c127_i32_209 dim 1 : vector<16x128xf32>, i32 -> vector<16x128xf32>
    %c67 = arith.constant 67 : index
    %422 = memref.load %arg1[%c67] : memref<98xf32, #tpu.memory_space<smem>>
    %423 = vector.broadcast %422 : f32 to vector<16x128xf32>
    %424 = arith.mulf %423, %421 : vector<16x128xf32>
    %425 = arith.addf %406, %424 : vector<16x128xf32>
    %c126_i32_210 = arith.constant 126 : i32
    %426 = tpu.dynamic_rotate %401 by %c126_i32_210 dim 1 : vector<16x128xf32>, i32 -> vector<16x128xf32>
    %c68 = arith.constant 68 : index
    %427 = memref.load %arg1[%c68] : memref<98xf32, #tpu.memory_space<smem>>
    %428 = vector.broadcast %427 : f32 to vector<16x128xf32>
    %429 = arith.mulf %428, %426 : vector<16x128xf32>
    %430 = arith.addf %411, %429 : vector<16x128xf32>
    %c125_i32_211 = arith.constant 125 : i32
    %431 = tpu.dynamic_rotate %401 by %c125_i32_211 dim 1 : vector<16x128xf32>, i32 -> vector<16x128xf32>
    %c69 = arith.constant 69 : index
    %432 = memref.load %arg1[%c69] : memref<98xf32, #tpu.memory_space<smem>>
    %433 = vector.broadcast %432 : f32 to vector<16x128xf32>
    %434 = arith.mulf %433, %431 : vector<16x128xf32>
    %435 = arith.addf %416, %434 : vector<16x128xf32>
    %c3_212 = arith.constant 3 : index
    %c0_213 = arith.constant 0 : index
    %436 = vector.load %arg8[%c3_212, %c0_213] : memref<24x128xf32, #tpu.memory_space<vmem>>, vector<16x128xf32>
    %c3_i32_214 = arith.constant 3 : i32
    %437 = tpu.dynamic_rotate %436 by %c3_i32_214 dim 1 : vector<16x128xf32>, i32 -> vector<16x128xf32>
    %c70 = arith.constant 70 : index
    %438 = memref.load %arg1[%c70] : memref<98xf32, #tpu.memory_space<smem>>
    %439 = vector.broadcast %438 : f32 to vector<16x128xf32>
    %440 = arith.mulf %439, %437 : vector<16x128xf32>
    %441 = arith.addf %420, %440 : vector<16x128xf32>
    %c2_i32_215 = arith.constant 2 : i32
    %442 = tpu.dynamic_rotate %436 by %c2_i32_215 dim 1 : vector<16x128xf32>, i32 -> vector<16x128xf32>
    %c71 = arith.constant 71 : index
    %443 = memref.load %arg1[%c71] : memref<98xf32, #tpu.memory_space<smem>>
    %444 = vector.broadcast %443 : f32 to vector<16x128xf32>
    %445 = arith.mulf %444, %442 : vector<16x128xf32>
    %446 = arith.addf %425, %445 : vector<16x128xf32>
    %c1_i32_216 = arith.constant 1 : i32
    %447 = tpu.dynamic_rotate %436 by %c1_i32_216 dim 1 : vector<16x128xf32>, i32 -> vector<16x128xf32>
    %c72 = arith.constant 72 : index
    %448 = memref.load %arg1[%c72] : memref<98xf32, #tpu.memory_space<smem>>
    %449 = vector.broadcast %448 : f32 to vector<16x128xf32>
    %450 = arith.mulf %449, %447 : vector<16x128xf32>
    %451 = arith.addf %430, %450 : vector<16x128xf32>
    %c73 = arith.constant 73 : index
    %452 = memref.load %arg1[%c73] : memref<98xf32, #tpu.memory_space<smem>>
    %453 = vector.broadcast %452 : f32 to vector<16x128xf32>
    %454 = arith.mulf %453, %436 : vector<16x128xf32>
    %455 = arith.addf %435, %454 : vector<16x128xf32>
    %c127_i32_217 = arith.constant 127 : i32
    %456 = tpu.dynamic_rotate %436 by %c127_i32_217 dim 1 : vector<16x128xf32>, i32 -> vector<16x128xf32>
    %c74 = arith.constant 74 : index
    %457 = memref.load %arg1[%c74] : memref<98xf32, #tpu.memory_space<smem>>
    %458 = vector.broadcast %457 : f32 to vector<16x128xf32>
    %459 = arith.mulf %458, %456 : vector<16x128xf32>
    %460 = arith.addf %441, %459 : vector<16x128xf32>
    %c126_i32_218 = arith.constant 126 : i32
    %461 = tpu.dynamic_rotate %436 by %c126_i32_218 dim 1 : vector<16x128xf32>, i32 -> vector<16x128xf32>
    %c75 = arith.constant 75 : index
    %462 = memref.load %arg1[%c75] : memref<98xf32, #tpu.memory_space<smem>>
    %463 = vector.broadcast %462 : f32 to vector<16x128xf32>
    %464 = arith.mulf %463, %461 : vector<16x128xf32>
    %465 = arith.addf %446, %464 : vector<16x128xf32>
    %c125_i32_219 = arith.constant 125 : i32
    %466 = tpu.dynamic_rotate %436 by %c125_i32_219 dim 1 : vector<16x128xf32>, i32 -> vector<16x128xf32>
    %c76 = arith.constant 76 : index
    %467 = memref.load %arg1[%c76] : memref<98xf32, #tpu.memory_space<smem>>
    %468 = vector.broadcast %467 : f32 to vector<16x128xf32>
    %469 = arith.mulf %468, %466 : vector<16x128xf32>
    %470 = arith.addf %451, %469 : vector<16x128xf32>
    %c4_220 = arith.constant 4 : index
    %c0_221 = arith.constant 0 : index
    %471 = vector.load %arg8[%c4_220, %c0_221] : memref<24x128xf32, #tpu.memory_space<vmem>>, vector<16x128xf32>
    %c3_i32_222 = arith.constant 3 : i32
    %472 = tpu.dynamic_rotate %471 by %c3_i32_222 dim 1 : vector<16x128xf32>, i32 -> vector<16x128xf32>
    %c77 = arith.constant 77 : index
    %473 = memref.load %arg1[%c77] : memref<98xf32, #tpu.memory_space<smem>>
    %474 = vector.broadcast %473 : f32 to vector<16x128xf32>
    %475 = arith.mulf %474, %472 : vector<16x128xf32>
    %476 = arith.addf %455, %475 : vector<16x128xf32>
    %c2_i32_223 = arith.constant 2 : i32
    %477 = tpu.dynamic_rotate %471 by %c2_i32_223 dim 1 : vector<16x128xf32>, i32 -> vector<16x128xf32>
    %c78 = arith.constant 78 : index
    %478 = memref.load %arg1[%c78] : memref<98xf32, #tpu.memory_space<smem>>
    %479 = vector.broadcast %478 : f32 to vector<16x128xf32>
    %480 = arith.mulf %479, %477 : vector<16x128xf32>
    %481 = arith.addf %460, %480 : vector<16x128xf32>
    %c1_i32_224 = arith.constant 1 : i32
    %482 = tpu.dynamic_rotate %471 by %c1_i32_224 dim 1 : vector<16x128xf32>, i32 -> vector<16x128xf32>
    %c79 = arith.constant 79 : index
    %483 = memref.load %arg1[%c79] : memref<98xf32, #tpu.memory_space<smem>>
    %484 = vector.broadcast %483 : f32 to vector<16x128xf32>
    %485 = arith.mulf %484, %482 : vector<16x128xf32>
    %486 = arith.addf %465, %485 : vector<16x128xf32>
    %c80_225 = arith.constant 80 : index
    %487 = memref.load %arg1[%c80_225] : memref<98xf32, #tpu.memory_space<smem>>
    %488 = vector.broadcast %487 : f32 to vector<16x128xf32>
    %489 = arith.mulf %488, %471 : vector<16x128xf32>
    %490 = arith.addf %470, %489 : vector<16x128xf32>
    %c127_i32_226 = arith.constant 127 : i32
    %491 = tpu.dynamic_rotate %471 by %c127_i32_226 dim 1 : vector<16x128xf32>, i32 -> vector<16x128xf32>
    %c81 = arith.constant 81 : index
    %492 = memref.load %arg1[%c81] : memref<98xf32, #tpu.memory_space<smem>>
    %493 = vector.broadcast %492 : f32 to vector<16x128xf32>
    %494 = arith.mulf %493, %491 : vector<16x128xf32>
    %495 = arith.addf %476, %494 : vector<16x128xf32>
    %c126_i32_227 = arith.constant 126 : i32
    %496 = tpu.dynamic_rotate %471 by %c126_i32_227 dim 1 : vector<16x128xf32>, i32 -> vector<16x128xf32>
    %c82 = arith.constant 82 : index
    %497 = memref.load %arg1[%c82] : memref<98xf32, #tpu.memory_space<smem>>
    %498 = vector.broadcast %497 : f32 to vector<16x128xf32>
    %499 = arith.mulf %498, %496 : vector<16x128xf32>
    %500 = arith.addf %481, %499 : vector<16x128xf32>
    %c125_i32_228 = arith.constant 125 : i32
    %501 = tpu.dynamic_rotate %471 by %c125_i32_228 dim 1 : vector<16x128xf32>, i32 -> vector<16x128xf32>
    %c83 = arith.constant 83 : index
    %502 = memref.load %arg1[%c83] : memref<98xf32, #tpu.memory_space<smem>>
    %503 = vector.broadcast %502 : f32 to vector<16x128xf32>
    %504 = arith.mulf %503, %501 : vector<16x128xf32>
    %505 = arith.addf %486, %504 : vector<16x128xf32>
    %c5_229 = arith.constant 5 : index
    %c0_230 = arith.constant 0 : index
    %506 = vector.load %arg8[%c5_229, %c0_230] : memref<24x128xf32, #tpu.memory_space<vmem>>, vector<16x128xf32>
    %c3_i32_231 = arith.constant 3 : i32
    %507 = tpu.dynamic_rotate %506 by %c3_i32_231 dim 1 : vector<16x128xf32>, i32 -> vector<16x128xf32>
    %c84 = arith.constant 84 : index
    %508 = memref.load %arg1[%c84] : memref<98xf32, #tpu.memory_space<smem>>
    %509 = vector.broadcast %508 : f32 to vector<16x128xf32>
    %510 = arith.mulf %509, %507 : vector<16x128xf32>
    %511 = arith.addf %490, %510 : vector<16x128xf32>
    %c2_i32_232 = arith.constant 2 : i32
    %512 = tpu.dynamic_rotate %506 by %c2_i32_232 dim 1 : vector<16x128xf32>, i32 -> vector<16x128xf32>
    %c85 = arith.constant 85 : index
    %513 = memref.load %arg1[%c85] : memref<98xf32, #tpu.memory_space<smem>>
    %514 = vector.broadcast %513 : f32 to vector<16x128xf32>
    %515 = arith.mulf %514, %512 : vector<16x128xf32>
    %516 = arith.addf %495, %515 : vector<16x128xf32>
    %c1_i32_233 = arith.constant 1 : i32
    %517 = tpu.dynamic_rotate %506 by %c1_i32_233 dim 1 : vector<16x128xf32>, i32 -> vector<16x128xf32>
    %c86 = arith.constant 86 : index
    %518 = memref.load %arg1[%c86] : memref<98xf32, #tpu.memory_space<smem>>
    %519 = vector.broadcast %518 : f32 to vector<16x128xf32>
    %520 = arith.mulf %519, %517 : vector<16x128xf32>
    %521 = arith.addf %500, %520 : vector<16x128xf32>
    %c87 = arith.constant 87 : index
    %522 = memref.load %arg1[%c87] : memref<98xf32, #tpu.memory_space<smem>>
    %523 = vector.broadcast %522 : f32 to vector<16x128xf32>
    %524 = arith.mulf %523, %506 : vector<16x128xf32>
    %525 = arith.addf %505, %524 : vector<16x128xf32>
    %c127_i32_234 = arith.constant 127 : i32
    %526 = tpu.dynamic_rotate %506 by %c127_i32_234 dim 1 : vector<16x128xf32>, i32 -> vector<16x128xf32>
    %c88 = arith.constant 88 : index
    %527 = memref.load %arg1[%c88] : memref<98xf32, #tpu.memory_space<smem>>
    %528 = vector.broadcast %527 : f32 to vector<16x128xf32>
    %529 = arith.mulf %528, %526 : vector<16x128xf32>
    %530 = arith.addf %511, %529 : vector<16x128xf32>
    %c126_i32_235 = arith.constant 126 : i32
    %531 = tpu.dynamic_rotate %506 by %c126_i32_235 dim 1 : vector<16x128xf32>, i32 -> vector<16x128xf32>
    %c89 = arith.constant 89 : index
    %532 = memref.load %arg1[%c89] : memref<98xf32, #tpu.memory_space<smem>>
    %533 = vector.broadcast %532 : f32 to vector<16x128xf32>
    %534 = arith.mulf %533, %531 : vector<16x128xf32>
    %535 = arith.addf %516, %534 : vector<16x128xf32>
    %c125_i32_236 = arith.constant 125 : i32
    %536 = tpu.dynamic_rotate %506 by %c125_i32_236 dim 1 : vector<16x128xf32>, i32 -> vector<16x128xf32>
    %c90 = arith.constant 90 : index
    %537 = memref.load %arg1[%c90] : memref<98xf32, #tpu.memory_space<smem>>
    %538 = vector.broadcast %537 : f32 to vector<16x128xf32>
    %539 = arith.mulf %538, %536 : vector<16x128xf32>
    %540 = arith.addf %521, %539 : vector<16x128xf32>
    %c6_237 = arith.constant 6 : index
    %c0_238 = arith.constant 0 : index
    %541 = vector.load %arg8[%c6_237, %c0_238] : memref<24x128xf32, #tpu.memory_space<vmem>>, vector<16x128xf32>
    %c3_i32_239 = arith.constant 3 : i32
    %542 = tpu.dynamic_rotate %541 by %c3_i32_239 dim 1 : vector<16x128xf32>, i32 -> vector<16x128xf32>
    %c91 = arith.constant 91 : index
    %543 = memref.load %arg1[%c91] : memref<98xf32, #tpu.memory_space<smem>>
    %544 = vector.broadcast %543 : f32 to vector<16x128xf32>
    %545 = arith.mulf %544, %542 : vector<16x128xf32>
    %546 = arith.addf %525, %545 : vector<16x128xf32>
    %c2_i32_240 = arith.constant 2 : i32
    %547 = tpu.dynamic_rotate %541 by %c2_i32_240 dim 1 : vector<16x128xf32>, i32 -> vector<16x128xf32>
    %c92 = arith.constant 92 : index
    %548 = memref.load %arg1[%c92] : memref<98xf32, #tpu.memory_space<smem>>
    %549 = vector.broadcast %548 : f32 to vector<16x128xf32>
    %550 = arith.mulf %549, %547 : vector<16x128xf32>
    %551 = arith.addf %530, %550 : vector<16x128xf32>
    %c1_i32_241 = arith.constant 1 : i32
    %552 = tpu.dynamic_rotate %541 by %c1_i32_241 dim 1 : vector<16x128xf32>, i32 -> vector<16x128xf32>
    %c93 = arith.constant 93 : index
    %553 = memref.load %arg1[%c93] : memref<98xf32, #tpu.memory_space<smem>>
    %554 = vector.broadcast %553 : f32 to vector<16x128xf32>
    %555 = arith.mulf %554, %552 : vector<16x128xf32>
    %556 = arith.addf %535, %555 : vector<16x128xf32>
    %c94 = arith.constant 94 : index
    %557 = memref.load %arg1[%c94] : memref<98xf32, #tpu.memory_space<smem>>
    %558 = vector.broadcast %557 : f32 to vector<16x128xf32>
    %559 = arith.mulf %558, %541 : vector<16x128xf32>
    %560 = arith.addf %540, %559 : vector<16x128xf32>
    %c127_i32_242 = arith.constant 127 : i32
    %561 = tpu.dynamic_rotate %541 by %c127_i32_242 dim 1 : vector<16x128xf32>, i32 -> vector<16x128xf32>
    %c95 = arith.constant 95 : index
    %562 = memref.load %arg1[%c95] : memref<98xf32, #tpu.memory_space<smem>>
    %563 = vector.broadcast %562 : f32 to vector<16x128xf32>
    %564 = arith.mulf %563, %561 : vector<16x128xf32>
    %565 = arith.addf %546, %564 : vector<16x128xf32>
    %c126_i32_243 = arith.constant 126 : i32
    %566 = tpu.dynamic_rotate %541 by %c126_i32_243 dim 1 : vector<16x128xf32>, i32 -> vector<16x128xf32>
    %c96_244 = arith.constant 96 : index
    %567 = memref.load %arg1[%c96_244] : memref<98xf32, #tpu.memory_space<smem>>
    %568 = vector.broadcast %567 : f32 to vector<16x128xf32>
    %569 = arith.mulf %568, %566 : vector<16x128xf32>
    %570 = arith.addf %551, %569 : vector<16x128xf32>
    %c125_i32_245 = arith.constant 125 : i32
    %571 = tpu.dynamic_rotate %541 by %c125_i32_245 dim 1 : vector<16x128xf32>, i32 -> vector<16x128xf32>
    %c97 = arith.constant 97 : index
    %572 = memref.load %arg1[%c97] : memref<98xf32, #tpu.memory_space<smem>>
    %573 = vector.broadcast %572 : f32 to vector<16x128xf32>
    %574 = arith.mulf %573, %571 : vector<16x128xf32>
    %575 = arith.addf %556, %574 : vector<16x128xf32>
    %576 = arith.addf %570, %575 : vector<16x128xf32>
    %577 = arith.addf %576, %560 : vector<16x128xf32>
    %578 = arith.addf %577, %565 : vector<16x128xf32>
    %579 = arith.negf %578 : vector<16x128xf32>
    %580 = math.exp %579 : vector<16x128xf32>
    %cst_246 = arith.constant 1.000000e+00 : f32
    %581 = vector.broadcast %cst_246 : f32 to vector<16x128xf32>
    %582 = arith.addf %581, %580 : vector<16x128xf32>
    %583 = arith.divf %581, %582 : vector<16x128xf32>
    %c0_247 = arith.constant 0 : index
    %c0_248 = arith.constant 0 : index
    %584 = vector.load %arg9[%c0_247, %c0_248] : memref<16x128xf32, #tpu.memory_space<vmem>>, vector<16x128xf32>
    tpu.vector_store %arg9[%c0_247, %c0_248], %583 {strides = array<i32>} : memref<16x128xf32, #tpu.memory_space<vmem>>, vector<16x128xf32>,
    %c0_249 = arith.constant 0 : index
    %c0_250 = arith.constant 0 : index
    %585 = vector.load %arg9[%c0_249, %c0_250] : memref<16x128xf32, #tpu.memory_space<vmem>>, vector<1x16xf32>
    %c0_251 = arith.constant 0 : index
    %c0_252 = arith.constant 0 : index
    %586 = vector.load %arg6[%c0_251, %c0_252] : memref<1x256xf32, #tpu.memory_space<vmem>>, vector<1x16xf32>
    tpu.vector_store %arg6[%c0_251, %c0_252], %585 {strides = array<i32>} : memref<1x256xf32, #tpu.memory_space<vmem>>, vector<1x16xf32>,
    %c1_253 = arith.constant 1 : index
    %c0_254 = arith.constant 0 : index
    %587 = vector.load %arg9[%c1_253, %c0_254] : memref<16x128xf32, #tpu.memory_space<vmem>>, vector<1x16xf32>
    %c0_255 = arith.constant 0 : index
    %c16_256 = arith.constant 16 : index
    %588 = vector.load %arg6[%c0_255, %c16_256] : memref<1x256xf32, #tpu.memory_space<vmem>>, vector<1x16xf32>
    tpu.vector_store %arg6[%c0_255, %c16_256], %587 {strides = array<i32>} : memref<1x256xf32, #tpu.memory_space<vmem>>, vector<1x16xf32>,
    %c2_257 = arith.constant 2 : index
    %c0_258 = arith.constant 0 : index
    %589 = vector.load %arg9[%c2_257, %c0_258] : memref<16x128xf32, #tpu.memory_space<vmem>>, vector<1x16xf32>
    %c0_259 = arith.constant 0 : index
    %c32_260 = arith.constant 32 : index
    %590 = vector.load %arg6[%c0_259, %c32_260] : memref<1x256xf32, #tpu.memory_space<vmem>>, vector<1x16xf32>
    tpu.vector_store %arg6[%c0_259, %c32_260], %589 {strides = array<i32>} : memref<1x256xf32, #tpu.memory_space<vmem>>, vector<1x16xf32>,
    %c3_261 = arith.constant 3 : index
    %c0_262 = arith.constant 0 : index
    %591 = vector.load %arg9[%c3_261, %c0_262] : memref<16x128xf32, #tpu.memory_space<vmem>>, vector<1x16xf32>
    %c0_263 = arith.constant 0 : index
    %c48_264 = arith.constant 48 : index
    %592 = vector.load %arg6[%c0_263, %c48_264] : memref<1x256xf32, #tpu.memory_space<vmem>>, vector<1x16xf32>
    tpu.vector_store %arg6[%c0_263, %c48_264], %591 {strides = array<i32>} : memref<1x256xf32, #tpu.memory_space<vmem>>, vector<1x16xf32>,
    %c4_265 = arith.constant 4 : index
    %c0_266 = arith.constant 0 : index
    %593 = vector.load %arg9[%c4_265, %c0_266] : memref<16x128xf32, #tpu.memory_space<vmem>>, vector<1x16xf32>
    %c0_267 = arith.constant 0 : index
    %c64_268 = arith.constant 64 : index
    %594 = vector.load %arg6[%c0_267, %c64_268] : memref<1x256xf32, #tpu.memory_space<vmem>>, vector<1x16xf32>
    tpu.vector_store %arg6[%c0_267, %c64_268], %593 {strides = array<i32>} : memref<1x256xf32, #tpu.memory_space<vmem>>, vector<1x16xf32>,
    %c5_269 = arith.constant 5 : index
    %c0_270 = arith.constant 0 : index
    %595 = vector.load %arg9[%c5_269, %c0_270] : memref<16x128xf32, #tpu.memory_space<vmem>>, vector<1x16xf32>
    %c0_271 = arith.constant 0 : index
    %c80_272 = arith.constant 80 : index
    %596 = vector.load %arg6[%c0_271, %c80_272] : memref<1x256xf32, #tpu.memory_space<vmem>>, vector<1x16xf32>
    tpu.vector_store %arg6[%c0_271, %c80_272], %595 {strides = array<i32>} : memref<1x256xf32, #tpu.memory_space<vmem>>, vector<1x16xf32>,
    %c6_273 = arith.constant 6 : index
    %c0_274 = arith.constant 0 : index
    %597 = vector.load %arg9[%c6_273, %c0_274] : memref<16x128xf32, #tpu.memory_space<vmem>>, vector<1x16xf32>
    %c0_275 = arith.constant 0 : index
    %c96_276 = arith.constant 96 : index
    %598 = vector.load %arg6[%c0_275, %c96_276] : memref<1x256xf32, #tpu.memory_space<vmem>>, vector<1x16xf32>
    tpu.vector_store %arg6[%c0_275, %c96_276], %597 {strides = array<i32>} : memref<1x256xf32, #tpu.memory_space<vmem>>, vector<1x16xf32>,
    %c7_277 = arith.constant 7 : index
    %c0_278 = arith.constant 0 : index
    %599 = vector.load %arg9[%c7_277, %c0_278] : memref<16x128xf32, #tpu.memory_space<vmem>>, vector<1x16xf32>
    %c0_279 = arith.constant 0 : index
    %c112_280 = arith.constant 112 : index
    %600 = vector.load %arg6[%c0_279, %c112_280] : memref<1x256xf32, #tpu.memory_space<vmem>>, vector<1x16xf32>
    tpu.vector_store %arg6[%c0_279, %c112_280], %599 {strides = array<i32>} : memref<1x256xf32, #tpu.memory_space<vmem>>, vector<1x16xf32>,
    %c8_281 = arith.constant 8 : index
    %c0_282 = arith.constant 0 : index
    %601 = vector.load %arg9[%c8_281, %c0_282] : memref<16x128xf32, #tpu.memory_space<vmem>>, vector<1x16xf32>
    %c0_283 = arith.constant 0 : index
    %c128_284 = arith.constant 128 : index
    %602 = vector.load %arg6[%c0_283, %c128_284] : memref<1x256xf32, #tpu.memory_space<vmem>>, vector<1x16xf32>
    tpu.vector_store %arg6[%c0_283, %c128_284], %601 {strides = array<i32>} : memref<1x256xf32, #tpu.memory_space<vmem>>, vector<1x16xf32>,
    %c9_285 = arith.constant 9 : index
    %c0_286 = arith.constant 0 : index
    %603 = vector.load %arg9[%c9_285, %c0_286] : memref<16x128xf32, #tpu.memory_space<vmem>>, vector<1x16xf32>
    %c0_287 = arith.constant 0 : index
    %c144_288 = arith.constant 144 : index
    %604 = vector.load %arg6[%c0_287, %c144_288] : memref<1x256xf32, #tpu.memory_space<vmem>>, vector<1x16xf32>
    tpu.vector_store %arg6[%c0_287, %c144_288], %603 {strides = array<i32>} : memref<1x256xf32, #tpu.memory_space<vmem>>, vector<1x16xf32>,
    %c10_289 = arith.constant 10 : index
    %c0_290 = arith.constant 0 : index
    %605 = vector.load %arg9[%c10_289, %c0_290] : memref<16x128xf32, #tpu.memory_space<vmem>>, vector<1x16xf32>
    %c0_291 = arith.constant 0 : index
    %c160_292 = arith.constant 160 : index
    %606 = vector.load %arg6[%c0_291, %c160_292] : memref<1x256xf32, #tpu.memory_space<vmem>>, vector<1x16xf32>
    tpu.vector_store %arg6[%c0_291, %c160_292], %605 {strides = array<i32>} : memref<1x256xf32, #tpu.memory_space<vmem>>, vector<1x16xf32>,
    %c11_293 = arith.constant 11 : index
    %c0_294 = arith.constant 0 : index
    %607 = vector.load %arg9[%c11_293, %c0_294] : memref<16x128xf32, #tpu.memory_space<vmem>>, vector<1x16xf32>
    %c0_295 = arith.constant 0 : index
    %c176_296 = arith.constant 176 : index
    %608 = vector.load %arg6[%c0_295, %c176_296] : memref<1x256xf32, #tpu.memory_space<vmem>>, vector<1x16xf32>
    tpu.vector_store %arg6[%c0_295, %c176_296], %607 {strides = array<i32>} : memref<1x256xf32, #tpu.memory_space<vmem>>, vector<1x16xf32>,
    %c12_297 = arith.constant 12 : index
    %c0_298 = arith.constant 0 : index
    %609 = vector.load %arg9[%c12_297, %c0_298] : memref<16x128xf32, #tpu.memory_space<vmem>>, vector<1x16xf32>
    %c0_299 = arith.constant 0 : index
    %c192_300 = arith.constant 192 : index
    %610 = vector.load %arg6[%c0_299, %c192_300] : memref<1x256xf32, #tpu.memory_space<vmem>>, vector<1x16xf32>
    tpu.vector_store %arg6[%c0_299, %c192_300], %609 {strides = array<i32>} : memref<1x256xf32, #tpu.memory_space<vmem>>, vector<1x16xf32>,
    %c13_301 = arith.constant 13 : index
    %c0_302 = arith.constant 0 : index
    %611 = vector.load %arg9[%c13_301, %c0_302] : memref<16x128xf32, #tpu.memory_space<vmem>>, vector<1x16xf32>
    %c0_303 = arith.constant 0 : index
    %c208_304 = arith.constant 208 : index
    %612 = vector.load %arg6[%c0_303, %c208_304] : memref<1x256xf32, #tpu.memory_space<vmem>>, vector<1x16xf32>
    tpu.vector_store %arg6[%c0_303, %c208_304], %611 {strides = array<i32>} : memref<1x256xf32, #tpu.memory_space<vmem>>, vector<1x16xf32>,
    %c14_305 = arith.constant 14 : index
    %c0_306 = arith.constant 0 : index
    %613 = vector.load %arg9[%c14_305, %c0_306] : memref<16x128xf32, #tpu.memory_space<vmem>>, vector<1x16xf32>
    %c0_307 = arith.constant 0 : index
    %c224_308 = arith.constant 224 : index
    %614 = vector.load %arg6[%c0_307, %c224_308] : memref<1x256xf32, #tpu.memory_space<vmem>>, vector<1x16xf32>
    tpu.vector_store %arg6[%c0_307, %c224_308], %613 {strides = array<i32>} : memref<1x256xf32, #tpu.memory_space<vmem>>, vector<1x16xf32>,
    %c15_309 = arith.constant 15 : index
    %c0_310 = arith.constant 0 : index
    %615 = vector.load %arg9[%c15_309, %c0_310] : memref<16x128xf32, #tpu.memory_space<vmem>>, vector<1x16xf32>
    %c0_311 = arith.constant 0 : index
    %c240_312 = arith.constant 240 : index
    %616 = vector.load %arg6[%c0_311, %c240_312] : memref<1x256xf32, #tpu.memory_space<vmem>>, vector<1x16xf32>
    tpu.vector_store %arg6[%c0_311, %c240_312], %615 {strides = array<i32>} : memref<1x256xf32, #tpu.memory_space<vmem>>, vector<1x16xf32>,
    %c0_313 = arith.constant 0 : index
    %c0_314 = arith.constant 0 : index
    %617 = vector.load %arg6[%c0_313, %c0_314] : memref<1x256xf32, #tpu.memory_space<vmem>>, vector<1x256xf32>
    %c0_315 = arith.constant 0 : index
    %c0_316 = arith.constant 0 : index
    %c0_317 = arith.constant 0 : index
    %618 = vector.load %arg2[%c0_315, %c0_316, %c0_317] : memref<1x4x256xf32, #tpu.memory_space<vmem>>, vector<1x4x256xf32>
    %619 = vector.shape_cast %618 : vector<1x4x256xf32> to vector<4x256xf32>
    %620 = vector.broadcast %617 : vector<1x256xf32> to vector<4x256xf32>
    %621 = arith.mulf %619, %620 : vector<4x256xf32>
    %c0_318 = arith.constant 0 : index
    %c0_319 = arith.constant 0 : index
    %c0_320 = arith.constant 0 : index
    %622 = vector.load %arg3[%c0_318, %c0_319, %c0_320] : memref<1x4x256xf32, #tpu.memory_space<vmem>>, vector<1x4x256xf32>
    %623 = vector.shape_cast %622 : vector<1x4x256xf32> to vector<4x256xf32>
    %624 = vector.shape_cast %621 : vector<4x256xf32> to vector<1x4x256xf32>
    tpu.vector_store %arg3[%c0_318, %c0_319, %c0_320], %624 {strides = array<i32>} : memref<1x4x256xf32, #tpu.memory_space<vmem>>, vector<1x4x256xf32>,
    return
  }
  func.func @transform_0(%arg0: i32) -> i32 {
    %c0_i32 = arith.constant 0 : i32
    %c0_i32_0 = arith.constant 0 : i32
    return %c0_i32 : i32
  }
  func.func @transform_1(%arg0: i32) -> (i32, i32, i32) {
    %c0_i32 = arith.constant 0 : i32
    %c0_i32_0 = arith.constant 0 : i32
    %c0_i32_1 = arith.constant 0 : i32
    return %arg0, %c0_i32, %c0_i32_0 : i32, i32, i32
  }
  func.func @transform_2(%arg0: i32) -> (i32, i32, i32) {
    %c0_i32 = arith.constant 0 : i32
    %c0_i32_0 = arith.constant 0 : i32
    %c0_i32_1 = arith.constant 0 : i32
    return %arg0, %c0_i32, %c0_i32_0 : i32, i32, i32
  }
}

</mosaic_0001>

<llo_original>
// kernel: tpu_custom_call.1
$region0: #{tpu_custom_call.1}
  #allocation0 [shape = 'u32[]', space=smem, size = 0x4, offset = 0x4, fixed_abs, tag = 'smem constant byte address 0x4 - core index']
  #allocation1 [shape = 'u32[144,128]{1,0:T(1,128)}', space=vmem, size = 0x12000, scoped, tag = 'internal scratch']
  #allocation2 [shape = 'f32[1,256]{1,0:T(1,128)}', space=vmem, size = 0x400, scoped, tag = 'scratch operand']
  #allocation3 [shape = 'f32[1,256]{1,0:T(1,128)}', space=vmem, size = 0x400, scoped, tag = 'scratch operand']
  #allocation4 [shape = 'f32[1,256]{1,0:T(1,128)}', space=vmem, size = 0x400, scoped, tag = 'scratch operand']
  #allocation5 [shape = 'f32[24,128]{1,0:T(8,128)}', space=vmem, size = 0x3000, scoped, tag = 'scratch operand']
  #allocation6 [shape = 'f32[24,128]{1,0:T(8,128)}', space=vmem, size = 0x3000, scoped, tag = 'scratch operand']
  #allocation7 [shape = 'f32[16,128]{1,0:T(8,128)}', space=vmem, size = 0x2000, scoped, tag = 'scratch operand']
  %s0 = inlined_call_operand.hbm [shape: f32[98], index: 0, kind: input, shape index: {}]
  %s1 = inlined_call_operand.hbm [shape: f32[2,4,256], index: 1, kind: input, shape index: {}]
  %s2 = inlined_call_operand.hbm [shape: f32[2,4,256], index: 2, kind: output, shape index: {}]
  %s3 = sld [smem:[#allocation0]]
  $region49: #{tpu_custom_call.1} parent=0
    _
  %s5 = ssub.s32 1, %s3
  %s6 = scalar_select 0, %s5, %s3
  $region1: #{tpu_custom_call.1} parent=0
    #allocation8 [shape = 'u8[512]{0}', space=smem, size = 0x200, scoped, tag = 'input window, operand 0, single buffered']
    #allocation9 [shape = 's32[2]{0}', space=sflag, size = 0x8, scoped, tag = 'scoped memory for tpu_custom_call.1']
    #allocation10 [shape = 's32[2]{0}', space=sflag, size = 0x8, scoped, tag = 'scoped memory for tpu_custom_call.1']
    #allocation11 [shape = 's32[2]{0}', space=sflag, size = 0x8, scoped, tag = 'scoped memory for tpu_custom_call.1']
    #allocation12 [shape = 'u8[8192]{0}', space=vmem, size = 0x2000, scoped, tag = 'input window, operand 1']
    #allocation13 [shape = 'u8[8192]{0}', space=vmem, size = 0x2000, scoped, tag = 'output window, operand 0']
    %7 = vsyncpa [#allocation11], 0
    %8 = vsyncpa [#allocation9], 0
    %s9 = scalar_lea.sflag [#allocation9], 1
    %10 = vsyncpa %s9, 0
    %11 = vsyncpa [#allocation10], 0
    %s12 = scalar_lea.sflag [#allocation10], 1
    %13 = vsyncpa %s12, 0
    loop: start=0, step=1, limit=4
    $region2: #{tpu_custom_call.1} parent=1 // loop_pre_header
      _
    $region3: #{tpu_custom_call.1} parent=1 // loop_header
      %s15 = sphi 0, %s19
      %p16 = scmp.ge.s32.totalorder %s15, 4
      %s23 = sphi 0, %s23
      %s25 = sphi 0, %s23
      %s26 = sphi 0, %s25
      %s40 = sphi 0, %s26
      %s46 = sphi 0, %s48
      %s49 = sphi 0, %s46
      %s50 = sphi 0, %s49
      %s66 = sphi 0, %s50
      %s72 = sphi 0, %s74
      %s75 = sphi 0, %s72
      %s76 = sphi 0, %s75
      %s92 = sphi 0, %s76
    $region4: #{tpu_custom_call.1} parent=1 // loop_header_branch
      %18 = sbr.rel (%p16) target = $region8
    $region5: #{tpu_custom_call.1} parent=1 // loop_body
      %s20 = ssub.s32 %s15, 1
      %s21 = ssub.s32 %s15, 2
      %s22 = sadd.s32 %s15, 1
      %s24 = sadd.s32 %s23, 1
      %p27 = scmp.eq.s32.totalorder %s15, 1
      %p28 = scmp.ne.s32.totalorder %s23, %s25
      %p29 = scmp.eq.s32.totalorder %s15, 0
      %p30 = por %p28, %p29
      %p31 = scmp.ne.s32.totalorder %s23, %s25
      %p32 = scmp.eq.s32.totalorder %s20, 1
      %p33 = por %p31, %p32
      %p34 = scmp.ne.s32.totalorder %s25, %s26
      %p35 = scmp.eq.s32.totalorder %s20, 0
      %p36 = por %p34, %p35
      %p37 = scmp.ne.s32.totalorder %s25, %s26
      %p38 = scmp.eq.s32.totalorder %s21, 1
      %p39 = por %p37, %p38
      %p41 = scmp.ne.s32.totalorder %s26, %s40
      %p42 = scmp.eq.s32.totalorder %s21, 0
      %p43 = por %p41, %p42
      %s44 = ssub.s32 %s15, %s22
      %p45 = scmp.eq.s32.totalorder %s44, 0
      %s47 = sadd.s32 %s46, 1
      %s48 = scalar_select %p45, %s46, %s47
      %p51 = pneg %p45
      %p52 = scmp.eq.s32.totalorder %s15, 1
      %p53 = por %p51, %p52
      %p54 = scmp.ne.s32.totalorder %s46, %s49
      %p55 = scmp.eq.s32.totalorder %s15, 0
      %p56 = por %p54, %p55
      %p57 = scmp.ne.s32.totalorder %s46, %s49
      %p58 = scmp.eq.s32.totalorder %s20, 1
      %p59 = por %p57, %p58
      %p60 = scmp.ne.s32.totalorder %s49, %s50
      %p61 = scmp.eq.s32.totalorder %s20, 0
      %p62 = por %p60, %p61
      %p63 = scmp.ne.s32.totalorder %s49, %s50
      %p64 = scmp.eq.s32.totalorder %s21, 1
      %p65 = por %p63, %p64
      %p67 = scmp.ne.s32.totalorder %s50, %s66
      %p68 = scmp.eq.s32.totalorder %s21, 0
      %p69 = por %p67, %p68
      %s70 = ssub.s32 %s15, %s22
      %p71 = scmp.eq.s32.totalorder %s70, 0
      %s73 = sadd.s32 %s72, 1
      %s74 = scalar_select %p71, %s72, %s73
      %p77 = pneg %p71
      %p78 = scmp.eq.s32.totalorder %s15, 1
      %p79 = por %p77, %p78
      %p80 = scmp.ne.s32.totalorder %s72, %s75
      %p81 = scmp.eq.s32.totalorder %s15, 0
      %p82 = por %p80, %p81
      %p83 = scmp.ne.s32.totalorder %s72, %s75
      %p84 = scmp.eq.s32.totalorder %s20, 1
      %p85 = por %p83, %p84
      %p86 = scmp.ne.s32.totalorder %s75, %s76
      %p87 = scmp.eq.s32.totalorder %s20, 0
      %p88 = por %p86, %p87
      %p89 = scmp.ne.s32.totalorder %s75, %s76
      %p90 = scmp.eq.s32.totalorder %s21, 1
      %p91 = por %p89, %p90
      %p93 = scmp.ne.s32.totalorder %s76, %s92
      %p94 = scmp.eq.s32.totalorder %s21, 0
      %p95 = por %p93, %p94
      %p96 = scmp.le.s32.totalorder 1, %s15
      %p97 = scmp.lt.s32.totalorder %s15, 3
      %p98 = pnand %p96, %p97
      %p99 = pneg %p98
      // Predicated region
      $region9: #{tpu_custom_call.1} parent=5 // pred_check
        _
      $region10: #{tpu_custom_call.1} parent=5 // pred_check_branch
        %101 = sbr.rel (%p98) target = $region12
      $region11: #{tpu_custom_call.1} parent=5 // pred_region
        %s102 = ssub.s32 %s15, 1
        // Predicated region
        $region13: #{tpu_custom_call.1} parent=11 // pred_check
          %p103 = pneg %p36
        $region14: #{tpu_custom_call.1} parent=11 // pred_check_branch
          %105 = sbr.rel (%p103) target = $region16
        $region15: #{tpu_custom_call.1} parent=11 // pred_region
          %s107 = ssub.s32 16, 16
          %108 = vsyncadd [#allocation11], %s107
          %111 = dma.hbm_to_smem %s0, 16, [#allocation8], [#allocation11]
        $region16: #{tpu_custom_call.1} parent=11 // pred_fallthru
          _
      $region12: #{tpu_custom_call.1} parent=5 // pred_fallthru
        _
      %p112 = scmp.lt.s32.totalorder %s15, 2
      // Predicated region
      $region17: #{tpu_custom_call.1} parent=5 // pred_check
        %p113 = pneg %p112
      $region18: #{tpu_custom_call.1} parent=5 // pred_check_branch
        %115 = sbr.rel (%p113) target = $region20
      $region19: #{tpu_custom_call.1} parent=5 // pred_region
        // Predicated region
        $region21: #{tpu_custom_call.1} parent=19 // pred_check
          %p116 = pneg %p56
        $region22: #{tpu_custom_call.1} parent=19 // pred_check_branch
          %118 = sbr.rel (%p116) target = $region24
        $region23: #{tpu_custom_call.1} parent=19 // pred_region
          %s119 = sand.u32 %s46, 1
          %s120 = scalar_lea.sflag [#allocation9], %s119
          %s121 = sand.u32 %s46, 1
          %s122 = smul.addr %s121, 8
          %s123 = scalar_lea.vmem [#allocation12], %s122
          %s125 = ssub.s32 128, 128
          %126 = vsyncadd %s120, %s125
          %s127 = smul.addr %s15, 2
          %s128 = smul.addr %s127, 64
          %s129 = scalar_lea.hbm %s1, %s128
          %s131 = sshll.u32 %s123, 4
          %s132 = int_to_ptr.vmem [resolvable:$true] %s131
          %134 = dma.hbm_to_vmem [thread:$0]  %s129, 128, %s132, %s120
        $region24: #{tpu_custom_call.1} parent=19 // pred_fallthru
          _
      $region20: #{tpu_custom_call.1} parent=5 // pred_fallthru
        _
      %p135 = scmp.le.s32.totalorder 1, %s15
      %p136 = scmp.lt.s32.totalorder %s15, 3
      %p137 = pnand %p135, %p136
      %p138 = pneg %p137
      // Predicated region
      $region25: #{tpu_custom_call.1} parent=5 // pred_check
        _
      $region26: #{tpu_custom_call.1} parent=5 // pred_check_branch
        %140 = sbr.rel (%p137) target = $region28
      $region27: #{tpu_custom_call.1} parent=5 // pred_region
        %s141 = ssub.s32 %s15, 1
        // Predicated region
        $region29: #{tpu_custom_call.1} parent=27 // pred_check
          %p142 = pneg %p36
        $region30: #{tpu_custom_call.1} parent=27 // pred_check_branch
          %144 = sbr.rel (%p142) target = $region32
        $region31: #{tpu_custom_call.1} parent=27 // pred_region
          %145 = dma.done [#allocation11], 16
        $region32: #{tpu_custom_call.1} parent=27 // pred_fallthru
          _
        %s146 = sand.u32 %s49, 1
        %s147 = scalar_lea.sflag [#allocation9], %s146
        %s148 = sand.u32 %s49, 1
        %s149 = smul.addr %s148, 8
        %s150 = scalar_lea.vmem [#allocation12], %s149
        // Predicated region
        $region33: #{tpu_custom_call.1} parent=27 // pred_check
          %p151 = pneg %p62
        $region34: #{tpu_custom_call.1} parent=27 // pred_check_branch
          %153 = sbr.rel (%p151) target = $region36
        $region35: #{tpu_custom_call.1} parent=27 // pred_region
          %154 = dma.done %s147, 128
        $region36: #{tpu_custom_call.1} parent=27 // pred_fallthru
          _
        %155 = sfence
        %p156 = pneg %p36
        %p157 = pneg %p33
        %s158 = sand.u32 %s49, 1
        %s159 = scalar_lea.sflag [#allocation9], %s158
        %s160 = sand.u32 %s49, 1
        %s161 = smul.addr %s160, 8
        %s162 = scalar_lea.vmem [#allocation12], %s161
        %p163 = pneg %p62
        %p164 = pneg %p59
        %p165 = pneg %p88
        %p166 = pneg %p85
        %s167 = sand.u32 %s75, 1
        %s168 = scalar_lea.sflag [#allocation10], %s167
        %s169 = sand.u32 %s75, 1
        %s170 = smul.addr %s169, 8
        %s171 = scalar_lea.vmem [#allocation13], %s170
        %v172 = vld [vmem:[%s150] sm:$0xff]
        %v174 = vcombine.high %v172, %v172
        %vm176 = vcmask 1043456
        %v177 = vsel %vm176, %v172, 0.0
        %v178 = vrot.slane %v177, 4
        %v179 = vadd.f32 %v177, %v178
        %v180 = vrot.slane %v179, 2
        %v181 = vadd.f32 %v179, %v180
        %v182 = vrot.slane %v181, 1
        %v183 = vadd.f32 %v181, %v182
        %v184 = vsel %vm176, %v174, 0.0
        %v185 = vrot.slane %v184, 4
        %v186 = vadd.f32 %v184, %v185
        %v187 = vrot.slane %v186, 2
        %v188 = vadd.f32 %v186, %v187
        %v189 = vrot.slane %v188, 1
        %v190 = vadd.f32 %v188, %v189
        %v191 = vadd.f32 %v183, 0.0
        %v192 = vadd.f32 %v190, 0.0
        %v193 = vsel %vm176, %v172, -inf
        %v194 = vrot.slane %v193, 4
        %v195 = vmax.f32 %v193, %v194
        %v196 = vrot.slane %v195, 2
        %v197 = vmax.f32 %v195, %v196
        %v198 = vrot.slane %v197, 1
        %v199 = vmax.f32 %v197, %v198
        %v200 = vsel %vm176, %v174, -inf
        %v201 = vrot.slane %v200, 4
        %v202 = vmax.f32 %v200, %v201
        %v203 = vrot.slane %v202, 2
        %v204 = vmax.f32 %v202, %v203
        %v205 = vrot.slane %v204, 1
        %v206 = vmax.f32 %v204, %v205
        %v207 = vmul.f32 %v191, 0.25
        %v208 = vmul.f32 %v192, 0.25
        %v211 = vcombine.low %v207, %v208
        %v213 = vunpack.c.l.s4 1966171168
        %v214 = vunpack.c.0.s8 %v213
        %v215 = vlaneseq
        %v216 = vshrl.u32 %v215, 7
        %v217 = vsub.s32 %v214, %v216
        %v218 = vrot.slane %v211, %v217
        %v220 = vunpack.c.l.s4 1966171168
        %v221 = vunpack.c.0.s8 %v220
        %v222 = vlaneseq
        %v223 = vshrl.u32 %v222, 7
        %v224 = vsub.s32 %v221, %v223
        %v225 = vrot.slane %v218, %v224
        %v227 = vlaneseq
        %vm228 = vcmp.ge.s32.totalorder %v227, 0
        %vm229 = vcmp.lt.s32.totalorder %v227, 256
        %vm230 = vmand %vm228, %vm229
        %231 = vst.msk [vmem:[#allocation2] sm:$0x3] %vm230, %v225
        %v234 = vcombine.low %v199, %v206
        %v236 = vunpack.c.l.s4 1966171168
        %v237 = vunpack.c.0.s8 %v236
        %v238 = vlaneseq
        %v239 = vshrl.u32 %v238, 7
        %v240 = vsub.s32 %v237, %v239
        %v241 = vrot.slane %v234, %v240
        %v243 = vunpack.c.l.s4 1966171168
        %v244 = vunpack.c.0.s8 %v243
        %v245 = vlaneseq
        %v246 = vshrl.u32 %v245, 7
        %v247 = vsub.s32 %v244, %v246
        %v248 = vrot.slane %v241, %v247
        %250 = vst.msk [vmem:[#allocation3] sm:$0x3] %vm230, %v248
        %251 = vst [vmem:[#allocation5] sm:$0xff] 0.0
        %252 = vst [vmem:[#allocation5 + $0x8] sm:$0xff] 0.0
        %253 = vst [vmem:[#allocation5 + $0x10] sm:$0xff] 0.0
        %254 = vst [vmem:[#allocation6] sm:$0xff] 0.0
        %255 = vst [vmem:[#allocation6 + $0x8] sm:$0xff] 0.0
        %256 = vst [vmem:[#allocation6 + $0x10] sm:$0xff] 0.0
        %v257 = vld [vmem:[#allocation2] sm:$0x1]
        %vm258 = vcmask 122880
        %259 = vst.msk [vmem:[#allocation5 + $0x3] sm:$0x1] %vm258, %v257
        %v260 = vld [vmem:[#allocation3] sm:$0x1]
        %261 = vst.msk [vmem:[#allocation6 + $0x3] sm:$0x1] %vm258, %v260
        %v262 = vld [vmem:[#allocation2] sm:$0x1]
        %v264 = vlaneseq
        %v265 = vshrl.u32 %v264, 7
        %v266 = vsub.s32 0, %v265
        %v267 = vrot.slane %v262, %v266
        %268 = vrot.lane.b32.xlu0 %v267, 112
        %v269 = vpop.permute.xlu0 %268
        %271 = vst.msk [vmem:[#allocation5 + $0x4] sm:$0x1] %vm258, %v269
        %v272 = vld [vmem:[#allocation3] sm:$0x1]
        %v274 = vlaneseq
        %v275 = vshrl.u32 %v274, 7
        %v276 = vsub.s32 0, %v275
        %v277 = vrot.slane %v272, %v276
        %278 = vrot.lane.b32.xlu0 %v277, 112
        %v279 = vpop.permute.xlu0 %278
        %281 = vst.msk [vmem:[#allocation6 + $0x4] sm:$0x1] %vm258, %v279
        %v282 = vld [vmem:[#allocation2] sm:$0x1]
        %v284 = vlaneseq
        %v285 = vshrl.u32 %v284, 7
        %v286 = vsub.s32 0, %v285
        %v287 = vrot.slane %v282, %v286
        %288 = vrot.lane.b32.xlu0 %v287, 96
        %v289 = vpop.permute.xlu0 %288
        %291 = vst.msk [vmem:[#allocation5 + $0x5] sm:$0x1] %vm258, %v289
        %v292 = vld [vmem:[#allocation3] sm:$0x1]
        %v294 = vlaneseq
        %v295 = vshrl.u32 %v294, 7
        %v296 = vsub.s32 0, %v295
        %v297 = vrot.slane %v292, %v296
        %298 = vrot.lane.b32.xlu0 %v297, 96
        %v299 = vpop.permute.xlu0 %298
        %301 = vst.msk [vmem:[#allocation6 + $0x5] sm:$0x1] %vm258, %v299
        %v302 = vld [vmem:[#allocation2] sm:$0x1]
        %v304 = vlaneseq
        %v305 = vshrl.u32 %v304, 7
        %v306 = vsub.s32 0, %v305
        %v307 = vrot.slane %v302, %v306
        %308 = vrot.lane.b32.xlu0 %v307, 80
        %v309 = vpop.permute.xlu0 %308
        %311 = vst.msk [vmem:[#allocation5 + $0x6] sm:$0x1] %vm258, %v309
        %v312 = vld [vmem:[#allocation3] sm:$0x1]
        %v314 = vlaneseq
        %v315 = vshrl.u32 %v314, 7
        %v316 = vsub.s32 0, %v315
        %v317 = vrot.slane %v312, %v316
        %318 = vrot.lane.b32.xlu0 %v317, 80
        %v319 = vpop.permute.xlu0 %318
        %321 = vst.msk [vmem:[#allocation6 + $0x6] sm:$0x1] %vm258, %v319
        %v322 = vld [vmem:[#allocation2] sm:$0x1]
        %v324 = vlaneseq
        %v325 = vshrl.u32 %v324, 7
        %v326 = vsub.s32 0, %v325
        %v327 = vrot.slane %v322, %v326
        %328 = vrot.lane.b32.xlu0 %v327, 64
        %v329 = vpop.permute.xlu0 %328
        %331 = vst.msk [vmem:[#allocation5 + $0x7] sm:$0x1] %vm258, %v329
        %v332 = vld [vmem:[#allocation3] sm:$0x1]
        %v334 = vlaneseq
        %v335 = vshrl.u32 %v334, 7
        %v336 = vsub.s32 0, %v335
        %v337 = vrot.slane %v332, %v336
        %338 = vrot.lane.b32.xlu0 %v337, 64
        %v339 = vpop.permute.xlu0 %338
        %341 = vst.msk [vmem:[#allocation6 + $0x7] sm:$0x1] %vm258, %v339
        %v342 = vld [vmem:[#allocation2] sm:$0x1]
        %v344 = vlaneseq
        %v345 = vshrl.u32 %v344, 7
        %v346 = vsub.s32 0, %v345
        %v347 = vrot.slane %v342, %v346
        %348 = vrot.lane.b32.xlu0 %v347, 48
        %v349 = vpop.permute.xlu0 %348
        %351 = vst.msk [vmem:[#allocation5 + $0x8] sm:$0x1] %vm258, %v349
        %v352 = vld [vmem:[#allocation3] sm:$0x1]
        %v354 = vlaneseq
        %v355 = vshrl.u32 %v354, 7
        %v356 = vsub.s32 0, %v355
        %v357 = vrot.slane %v352, %v356
        %358 = vrot.lane.b32.xlu0 %v357, 48
        %v359 = vpop.permute.xlu0 %358
        %361 = vst.msk [vmem:[#allocation6 + $0x8] sm:$0x1] %vm258, %v359
        %v362 = vld [vmem:[#allocation2] sm:$0x1]
        %v364 = vlaneseq
        %v365 = vshrl.u32 %v364, 7
        %v366 = vsub.s32 0, %v365
        %v367 = vrot.slane %v362, %v366
        %368 = vrot.lane.b32.xlu0 %v367, 32
        %v369 = vpop.permute.xlu0 %368
        %371 = vst.msk [vmem:[#allocation5 + $0x9] sm:$0x1] %vm258, %v369
        %v372 = vld [vmem:[#allocation3] sm:$0x1]
        %v374 = vlaneseq
        %v375 = vshrl.u32 %v374, 7
        %v376 = vsub.s32 0, %v375
        %v377 = vrot.slane %v372, %v376
        %378 = vrot.lane.b32.xlu0 %v377, 32
        %v379 = vpop.permute.xlu0 %378
        %381 = vst.msk [vmem:[#allocation6 + $0x9] sm:$0x1] %vm258, %v379
        %v382 = vld [vmem:[#allocation2] sm:$0x1]
        %v384 = vlaneseq
        %v385 = vshrl.u32 %v384, 7
        %v386 = vsub.s32 0, %v385
        %v387 = vrot.slane %v382, %v386
        %388 = vrot.lane.b32.xlu0 %v387, 16
        %v389 = vpop.permute.xlu0 %388
        %391 = vst.msk [vmem:[#allocation5 + $0xa] sm:$0x1] %vm258, %v389
        %v392 = vld [vmem:[#allocation3] sm:$0x1]
        %v394 = vlaneseq
        %v395 = vshrl.u32 %v394, 7
        %v396 = vsub.s32 0, %v395
        %v397 = vrot.slane %v392, %v396
        %398 = vrot.lane.b32.xlu0 %v397, 16
        %v399 = vpop.permute.xlu0 %398
        %401 = vst.msk [vmem:[#allocation6 + $0xa] sm:$0x1] %vm258, %v399
        %v402 = vld [vmem:[#allocation2 + $0x1] sm:$0x1]
        %403 = vst.msk [vmem:[#allocation5 + $0xb] sm:$0x1] %vm258, %v402
        %v404 = vld [vmem:[#allocation3 + $0x1] sm:$0x1]
        %405 = vst.msk [vmem:[#allocation6 + $0xb] sm:$0x1] %vm258, %v404
        %v406 = vld [vmem:[#allocation2 + $0x1] sm:$0x1]
        %v408 = vlaneseq
        %v409 = vshrl.u32 %v408, 7
        %v410 = vsub.s32 0, %v409
        %v411 = vrot.slane %v406, %v410
        %412 = vrot.lane.b32.xlu0 %v411, 112
        %v413 = vpop.permute.xlu0 %412
        %415 = vst.msk [vmem:[#allocation5 + $0xc] sm:$0x1] %vm258, %v413
        %v416 = vld [vmem:[#allocation3 + $0x1] sm:$0x1]
        %v418 = vlaneseq
        %v419 = vshrl.u32 %v418, 7
        %v420 = vsub.s32 0, %v419
        %v421 = vrot.slane %v416, %v420
        %422 = vrot.lane.b32.xlu0 %v421, 112
        %v423 = vpop.permute.xlu0 %422
        %425 = vst.msk [vmem:[#allocation6 + $0xc] sm:$0x1] %vm258, %v423
        %v426 = vld [vmem:[#allocation2 + $0x1] sm:$0x1]
        %v428 = vlaneseq
        %v429 = vshrl.u32 %v428, 7
        %v430 = vsub.s32 0, %v429
        %v431 = vrot.slane %v426, %v430
        %432 = vrot.lane.b32.xlu0 %v431, 96
        %v433 = vpop.permute.xlu0 %432
        %435 = vst.msk [vmem:[#allocation5 + $0xd] sm:$0x1] %vm258, %v433
        %v436 = vld [vmem:[#allocation3 + $0x1] sm:$0x1]
        %v438 = vlaneseq
        %v439 = vshrl.u32 %v438, 7
        %v440 = vsub.s32 0, %v439
        %v441 = vrot.slane %v436, %v440
        %442 = vrot.lane.b32.xlu0 %v441, 96
        %v443 = vpop.permute.xlu0 %442
        %445 = vst.msk [vmem:[#allocation6 + $0xd] sm:$0x1] %vm258, %v443
        %v446 = vld [vmem:[#allocation2 + $0x1] sm:$0x1]
        %v448 = vlaneseq
        %v449 = vshrl.u32 %v448, 7
        %v450 = vsub.s32 0, %v449
        %v451 = vrot.slane %v446, %v450
        %452 = vrot.lane.b32.xlu0 %v451, 80
        %v453 = vpop.permute.xlu0 %452
        %455 = vst.msk [vmem:[#allocation5 + $0xe] sm:$0x1] %vm258, %v453
        %v456 = vld [vmem:[#allocation3 + $0x1] sm:$0x1]
        %v458 = vlaneseq
        %v459 = vshrl.u32 %v458, 7
        %v460 = vsub.s32 0, %v459
        %v461 = vrot.slane %v456, %v460
        %462 = vrot.lane.b32.xlu0 %v461, 80
        %v463 = vpop.permute.xlu0 %462
        %465 = vst.msk [vmem:[#allocation6 + $0xe] sm:$0x1] %vm258, %v463
        %v466 = vld [vmem:[#allocation2 + $0x1] sm:$0x1]
        %v468 = vlaneseq
        %v469 = vshrl.u32 %v468, 7
        %v470 = vsub.s32 0, %v469
        %v471 = vrot.slane %v466, %v470
        %472 = vrot.lane.b32.xlu0 %v471, 64
        %v473 = vpop.permute.xlu0 %472
        %475 = vst.msk [vmem:[#allocation5 + $0xf] sm:$0x1] %vm258, %v473
        %v476 = vld [vmem:[#allocation3 + $0x1] sm:$0x1]
        %v478 = vlaneseq
        %v479 = vshrl.u32 %v478, 7
        %v480 = vsub.s32 0, %v479
        %v481 = vrot.slane %v476, %v480
        %482 = vrot.lane.b32.xlu0 %v481, 64
        %v483 = vpop.permute.xlu0 %482
        %485 = vst.msk [vmem:[#allocation6 + $0xf] sm:$0x1] %vm258, %v483
        %v486 = vld [vmem:[#allocation2 + $0x1] sm:$0x1]
        %v488 = vlaneseq
        %v489 = vshrl.u32 %v488, 7
        %v490 = vsub.s32 0, %v489
        %v491 = vrot.slane %v486, %v490
        %492 = vrot.lane.b32.xlu0 %v491, 48
        %v493 = vpop.permute.xlu0 %492
        %495 = vst.msk [vmem:[#allocation5 + $0x10] sm:$0x1] %vm258, %v493
        %v496 = vld [vmem:[#allocation3 + $0x1] sm:$0x1]
        %v498 = vlaneseq
        %v499 = vshrl.u32 %v498, 7
        %v500 = vsub.s32 0, %v499
        %v501 = vrot.slane %v496, %v500
        %502 = vrot.lane.b32.xlu0 %v501, 48
        %v503 = vpop.permute.xlu0 %502
        %505 = vst.msk [vmem:[#allocation6 + $0x10] sm:$0x1] %vm258, %v503
        %v506 = vld [vmem:[#allocation2 + $0x1] sm:$0x1]
        %v508 = vlaneseq
        %v509 = vshrl.u32 %v508, 7
        %v510 = vsub.s32 0, %v509
        %v511 = vrot.slane %v506, %v510
        %512 = vrot.lane.b32.xlu0 %v511, 32
        %v513 = vpop.permute.xlu0 %512
        %515 = vst.msk [vmem:[#allocation5 + $0x11] sm:$0x1] %vm258, %v513
        %v516 = vld [vmem:[#allocation3 + $0x1] sm:$0x1]
        %v518 = vlaneseq
        %v519 = vshrl.u32 %v518, 7
        %v520 = vsub.s32 0, %v519
        %v521 = vrot.slane %v516, %v520
        %522 = vrot.lane.b32.xlu0 %v521, 32
        %v523 = vpop.permute.xlu0 %522
        %525 = vst.msk [vmem:[#allocation6 + $0x11] sm:$0x1] %vm258, %v523
        %v526 = vld [vmem:[#allocation2 + $0x1] sm:$0x1]
        %v528 = vlaneseq
        %v529 = vshrl.u32 %v528, 7
        %v530 = vsub.s32 0, %v529
        %v531 = vrot.slane %v526, %v530
        %532 = vrot.lane.b32.xlu0 %v531, 16
        %v533 = vpop.permute.xlu0 %532
        %535 = vst.msk [vmem:[#allocation5 + $0x12] sm:$0x1] %vm258, %v533
        %v536 = vld [vmem:[#allocation3 + $0x1] sm:$0x1]
        %v538 = vlaneseq
        %v539 = vshrl.u32 %v538, 7
        %v540 = vsub.s32 0, %v539
        %v541 = vrot.slane %v536, %v540
        %542 = vrot.lane.b32.xlu0 %v541, 16
        %v543 = vpop.permute.xlu0 %542
        %545 = vst.msk [vmem:[#allocation6 + $0x12] sm:$0x1] %vm258, %v543
        %v546 = vld [vmem:[#allocation5] sm:$0xff]
        %v547 = vld [vmem:[#allocation5 + $0x8] sm:$0xff]
        %548 = vrot.lane.b32.xlu0 %v546, 3
        %v549 = vpop.permute.xlu0 %548
        %550 = vrot.lane.b32.xlu0 %v547, 3
        %v551 = vpop.permute.xlu0 %550
        %s552 = sld [smem:[#allocation8]]
        %v553 = vstv %s552
        %v554 = vmul.f32 %v553, %v549
        %v555 = vmul.f32 %v553, %v551
        %v556 = vadd.f32 %v554, 0.0
        %v557 = vadd.f32 %v555, 0.0
        %558 = vrot.lane.b32.xlu0 %v546, 2
        %v559 = vpop.permute.xlu0 %558
        %560 = vrot.lane.b32.xlu0 %v547, 2
        %v561 = vpop.permute.xlu0 %560
        %s562 = sld [smem:[#allocation8 + $0x1]]
        %v563 = vstv %s562
        %v564 = vmul.f32 %v563, %v559
        %v565 = vmul.f32 %v563, %v561
        %v566 = vadd.f32 %v564, 0.0
        %v567 = vadd.f32 %v565, 0.0
        %568 = vrot.lane.b32.xlu0 %v546, 1
        %v569 = vpop.permute.xlu0 %568
        %570 = vrot.lane.b32.xlu0 %v547, 1
        %v571 = vpop.permute.xlu0 %570
        %s572 = sld [smem:[#allocation8 + $0x2]]
        %v573 = vstv %s572
        %v574 = vmul.f32 %v573, %v569
        %v575 = vmul.f32 %v573, %v571
        %v576 = vadd.f32 %v574, 0.0
        %v577 = vadd.f32 %v575, 0.0
        %s578 = sld [smem:[#allocation8 + $0x3]]
        %v579 = vstv %s578
        %v580 = vmul.f32 %v579, %v546
        %v581 = vmul.f32 %v579, %v547
        %v582 = vadd.f32 %v580, 0.0
        %v583 = vadd.f32 %v581, 0.0
        %584 = vrot.lane.b32.xlu0 %v546, 127
        %v585 = vpop.permute.xlu0 %584
        %586 = vrot.lane.b32.xlu0 %v547, 127
        %v587 = vpop.permute.xlu0 %586
        %s588 = sld [smem:[#allocation8 + $0x4]]
        %v589 = vstv %s588
        %v590 = vmul.f32 %v589, %v585
        %v591 = vmul.f32 %v589, %v587
        %v592 = vadd.f32 %v556, %v590
        %v593 = vadd.f32 %v557, %v591
        %594 = vrot.lane.b32.xlu0 %v546, 126
        %v595 = vpop.permute.xlu0 %594
        %596 = vrot.lane.b32.xlu0 %v547, 126
        %v597 = vpop.permute.xlu0 %596
        %s598 = sld [smem:[#allocation8 + $0x5]]
        %v599 = vstv %s598
        %v600 = vmul.f32 %v599, %v595
        %v601 = vmul.f32 %v599, %v597
        %v602 = vadd.f32 %v566, %v600
        %v603 = vadd.f32 %v567, %v601
        %604 = vrot.lane.b32.xlu0 %v546, 125
        %v605 = vpop.permute.xlu0 %604
        %606 = vrot.lane.b32.xlu0 %v547, 125
        %v607 = vpop.permute.xlu0 %606
        %s608 = sld [smem:[#allocation8 + $0x6]]
        %v609 = vstv %s608
        %v610 = vmul.f32 %v609, %v605
        %v611 = vmul.f32 %v609, %v607
        %v612 = vadd.f32 %v576, %v610
        %v613 = vadd.f32 %v577, %v611
        %v614 = vld [vmem:[#allocation5 + $0x1] sm:$0xff]
        %v615 = vld [vmem:[#allocation5 + $0x9] sm:$0xff]
        %616 = vrot.lane.b32.xlu0 %v614, 3
        %v617 = vpop.permute.xlu0 %616
        %618 = vrot.lane.b32.xlu0 %v615, 3
        %v619 = vpop.permute.xlu0 %618
        %s620 = sld [smem:[#allocation8 + $0x7]]
        %v621 = vstv %s620
        %v622 = vmul.f32 %v621, %v617
        %v623 = vmul.f32 %v621, %v619
        %v624 = vadd.f32 %v582, %v622
        %v625 = vadd.f32 %v583, %v623
        %626 = vrot.lane.b32.xlu0 %v614, 2
        %v627 = vpop.permute.xlu0 %626
        %628 = vrot.lane.b32.xlu0 %v615, 2
        %v629 = vpop.permute.xlu0 %628
        %s630 = sld [smem:[#allocation8 + $0x8]]
        %v631 = vstv %s630
        %v632 = vmul.f32 %v631, %v627
        %v633 = vmul.f32 %v631, %v629
        %v634 = vadd.f32 %v592, %v632
        %v635 = vadd.f32 %v593, %v633
        %636 = vrot.lane.b32.xlu0 %v614, 1
        %v637 = vpop.permute.xlu0 %636
        %638 = vrot.lane.b32.xlu0 %v615, 1
        %v639 = vpop.permute.xlu0 %638
        %s640 = sld [smem:[#allocation8 + $0x9]]
        %v641 = vstv %s640
        %v642 = vmul.f32 %v641, %v637
        %v643 = vmul.f32 %v641, %v639
        %v644 = vadd.f32 %v602, %v642
        %v645 = vadd.f32 %v603, %v643
        %s646 = sld [smem:[#allocation8 + $0xa]]
        %v647 = vstv %s646
        %v648 = vmul.f32 %v647, %v614
        %v649 = vmul.f32 %v647, %v615
        %v650 = vadd.f32 %v612, %v648
        %v651 = vadd.f32 %v613, %v649
        %652 = vrot.lane.b32.xlu0 %v614, 127
        %v653 = vpop.permute.xlu0 %652
        %654 = vrot.lane.b32.xlu0 %v615, 127
        %v655 = vpop.permute.xlu0 %654
        %s656 = sld [smem:[#allocation8 + $0xb]]
        %v657 = vstv %s656
        %v658 = vmul.f32 %v657, %v653
        %v659 = vmul.f32 %v657, %v655
        %v660 = vadd.f32 %v624, %v658
        %v661 = vadd.f32 %v625, %v659
        %662 = vrot.lane.b32.xlu0 %v614, 126
        %v663 = vpop.permute.xlu0 %662
        %664 = vrot.lane.b32.xlu0 %v615, 126
        %v665 = vpop.permute.xlu0 %664
        %s666 = sld [smem:[#allocation8 + $0xc]]
        %v667 = vstv %s666
        %v668 = vmul.f32 %v667, %v663
        %v669 = vmul.f32 %v667, %v665
        %v670 = vadd.f32 %v634, %v668
        %v671 = vadd.f32 %v635, %v669
        %672 = vrot.lane.b32.xlu0 %v614, 125
        %v673 = vpop.permute.xlu0 %672
        %674 = vrot.lane.b32.xlu0 %v615, 125
        %v675 = vpop.permute.xlu0 %674
        %s676 = sld [smem:[#allocation8 + $0xd]]
        %v677 = vstv %s676
        %v678 = vmul.f32 %v677, %v673
        %v679 = vmul.f32 %v677, %v675
        %v680 = vadd.f32 %v644, %v678
        %v681 = vadd.f32 %v645, %v679
        %v682 = vld [vmem:[#allocation5 + $0x2] sm:$0xff]
        %v683 = vld [vmem:[#allocation5 + $0xa] sm:$0xff]
        %684 = vrot.lane.b32.xlu0 %v682, 3
        %v685 = vpop.permute.xlu0 %684
        %686 = vrot.lane.b32.xlu0 %v683, 3
        %v687 = vpop.permute.xlu0 %686
        %s688 = sld [smem:[#allocation8 + $0xe]]
        %v689 = vstv %s688
        %v690 = vmul.f32 %v689, %v685
        %v691 = vmul.f32 %v689, %v687
        %v692 = vadd.f32 %v650, %v690
        %v693 = vadd.f32 %v651, %v691
        %694 = vrot.lane.b32.xlu0 %v682, 2
        %v695 = vpop.permute.xlu0 %694
        %696 = vrot.lane.b32.xlu0 %v683, 2
        %v697 = vpop.permute.xlu0 %696
        %s698 = sld [smem:[#allocation8 + $0xf]]
        %v699 = vstv %s698
        %v700 = vmul.f32 %v699, %v695
        %v701 = vmul.f32 %v699, %v697
        %v702 = vadd.f32 %v660, %v700
        %v703 = vadd.f32 %v661, %v701
        %704 = vrot.lane.b32.xlu0 %v682, 1
        %v705 = vpop.permute.xlu0 %704
        %706 = vrot.lane.b32.xlu0 %v683, 1
        %v707 = vpop.permute.xlu0 %706
        %s708 = sld [smem:[#allocation8 + $0x10]]
        %v709 = vstv %s708
        %v710 = vmul.f32 %v709, %v705
        %v711 = vmul.f32 %v709, %v707
        %v712 = vadd.f32 %v670, %v710
        %v713 = vadd.f32 %v671, %v711
        %s714 = sld [smem:[#allocation8 + $0x11]]
        %v715 = vstv %s714
        %v716 = vmul.f32 %v715, %v682
        %v717 = vmul.f32 %v715, %v683
        %v718 = vadd.f32 %v680, %v716
        %v719 = vadd.f32 %v681, %v717
        %720 = vrot.lane.b32.xlu0 %v682, 127
        %v721 = vpop.permute.xlu0 %720
        %722 = vrot.lane.b32.xlu0 %v683, 127
        %v723 = vpop.permute.xlu0 %722
        %s724 = sld [smem:[#allocation8 + $0x12]]
        %v725 = vstv %s724
        %v726 = vmul.f32 %v725, %v721
        %v727 = vmul.f32 %v725, %v723
        %v728 = vadd.f32 %v692, %v726
        %v729 = vadd.f32 %v693, %v727
        %730 = vrot.lane.b32.xlu0 %v682, 126
        %v731 = vpop.permute.xlu0 %730
        %732 = vrot.lane.b32.xlu0 %v683, 126
        %v733 = vpop.permute.xlu0 %732
        %s734 = sld [smem:[#allocation8 + $0x13]]
        %v735 = vstv %s734
        %v736 = vmul.f32 %v735, %v731
        %v737 = vmul.f32 %v735, %v733
        %v738 = vadd.f32 %v702, %v736
        %v739 = vadd.f32 %v703, %v737
        %740 = vrot.lane.b32.xlu0 %v682, 125
        %v741 = vpop.permute.xlu0 %740
        %742 = vrot.lane.b32.xlu0 %v683, 125
        %v743 = vpop.permute.xlu0 %742
        %s744 = sld [smem:[#allocation8 + $0x14]]
        %v745 = vstv %s744
        %v746 = vmul.f32 %v745, %v741
        %v747 = vmul.f32 %v745, %v743
        %v748 = vadd.f32 %v712, %v746
        %v749 = vadd.f32 %v713, %v747
        %v750 = vld [vmem:[#allocation5 + $0x3] sm:$0xff]
        %v751 = vld [vmem:[#allocation5 + $0xb] sm:$0xff]
        %752 = vrot.lane.b32.xlu0 %v750, 3
        %v753 = vpop.permute.xlu0 %752
        %754 = vrot.lane.b32.xlu0 %v751, 3
        %v755 = vpop.permute.xlu0 %754
        %s756 = sld [smem:[#allocation8 + $0x15]]
        %v757 = vstv %s756
        %v758 = vmul.f32 %v757, %v753
        %v759 = vmul.f32 %v757, %v755
        %v760 = vadd.f32 %v718, %v758
        %v761 = vadd.f32 %v719, %v759
        %762 = vrot.lane.b32.xlu0 %v750, 2
        %v763 = vpop.permute.xlu0 %762
        %764 = vrot.lane.b32.xlu0 %v751, 2
        %v765 = vpop.permute.xlu0 %764
        %s766 = sld [smem:[#allocation8 + $0x16]]
        %v767 = vstv %s766
        %v768 = vmul.f32 %v767, %v763
        %v769 = vmul.f32 %v767, %v765
        %v770 = vadd.f32 %v728, %v768
        %v771 = vadd.f32 %v729, %v769
        %772 = vrot.lane.b32.xlu0 %v750, 1
        %v773 = vpop.permute.xlu0 %772
        %774 = vrot.lane.b32.xlu0 %v751, 1
        %v775 = vpop.permute.xlu0 %774
        %s776 = sld [smem:[#allocation8 + $0x17]]
        %v777 = vstv %s776
        %v778 = vmul.f32 %v777, %v773
        %v779 = vmul.f32 %v777, %v775
        %v780 = vadd.f32 %v738, %v778
        %v781 = vadd.f32 %v739, %v779
        %s782 = sld [smem:[#allocation8 + $0x18]]
        %v783 = vstv %s782
        %v784 = vmul.f32 %v783, %v750
        %v785 = vmul.f32 %v783, %v751
        %v786 = vadd.f32 %v748, %v784
        %v787 = vadd.f32 %v749, %v785
        %788 = vrot.lane.b32.xlu0 %v750, 127
        %v789 = vpop.permute.xlu0 %788
        %790 = vrot.lane.b32.xlu0 %v751, 127
        %v791 = vpop.permute.xlu0 %790
        %s792 = sld [smem:[#allocation8 + $0x19]]
        %v793 = vstv %s792
        %v794 = vmul.f32 %v793, %v789
        %v795 = vmul.f32 %v793, %v791
        %v796 = vadd.f32 %v760, %v794
        %v797 = vadd.f32 %v761, %v795
        %798 = vrot.lane.b32.xlu0 %v750, 126
        %v799 = vpop.permute.xlu0 %798
        %800 = vrot.lane.b32.xlu0 %v751, 126
        %v801 = vpop.permute.xlu0 %800
        %s802 = sld [smem:[#allocation8 + $0x1a]]
        %v803 = vstv %s802
        %v804 = vmul.f32 %v803, %v799
        %v805 = vmul.f32 %v803, %v801
        %v806 = vadd.f32 %v770, %v804
        %v807 = vadd.f32 %v771, %v805
        %808 = vrot.lane.b32.xlu0 %v750, 125
        %v809 = vpop.permute.xlu0 %808
        %810 = vrot.lane.b32.xlu0 %v751, 125
        %v811 = vpop.permute.xlu0 %810
        %s812 = sld [smem:[#allocation8 + $0x1b]]
        %v813 = vstv %s812
        %v814 = vmul.f32 %v813, %v809
        %v815 = vmul.f32 %v813, %v811
        %v816 = vadd.f32 %v780, %v814
        %v817 = vadd.f32 %v781, %v815
        %v818 = vld [vmem:[#allocation5 + $0x4] sm:$0xff]
        %v819 = vld [vmem:[#allocation5 + $0xc] sm:$0xff]
        %820 = vrot.lane.b32.xlu0 %v818, 3
        %v821 = vpop.permute.xlu0 %820
        %822 = vrot.lane.b32.xlu0 %v819, 3
        %v823 = vpop.permute.xlu0 %822
        %s824 = sld [smem:[#allocation8 + $0x1c]]
        %v825 = vstv %s824
        %v826 = vmul.f32 %v825, %v821
        %v827 = vmul.f32 %v825, %v823
        %v828 = vadd.f32 %v786, %v826
        %v829 = vadd.f32 %v787, %v827
        %830 = vrot.lane.b32.xlu0 %v818, 2
        %v831 = vpop.permute.xlu0 %830
        %832 = vrot.lane.b32.xlu0 %v819, 2
        %v833 = vpop.permute.xlu0 %832
        %s834 = sld [smem:[#allocation8 + $0x1d]]
        %v835 = vstv %s834
        %v836 = vmul.f32 %v835, %v831
        %v837 = vmul.f32 %v835, %v833
        %v838 = vadd.f32 %v796, %v836
        %v839 = vadd.f32 %v797, %v837
        %840 = vrot.lane.b32.xlu0 %v818, 1
        %v841 = vpop.permute.xlu0 %840
        %842 = vrot.lane.b32.xlu0 %v819, 1
        %v843 = vpop.permute.xlu0 %842
        %s844 = sld [smem:[#allocation8 + $0x1e]]
        %v845 = vstv %s844
        %v846 = vmul.f32 %v845, %v841
        %v847 = vmul.f32 %v845, %v843
        %v848 = vadd.f32 %v806, %v846
        %v849 = vadd.f32 %v807, %v847
        %s850 = sld [smem:[#allocation8 + $0x1f]]
        %v851 = vstv %s850
        %v852 = vmul.f32 %v851, %v818
        %v853 = vmul.f32 %v851, %v819
        %v854 = vadd.f32 %v816, %v852
        %v855 = vadd.f32 %v817, %v853
        %856 = vrot.lane.b32.xlu0 %v818, 127
        %v857 = vpop.permute.xlu0 %856
        %858 = vrot.lane.b32.xlu0 %v819, 127
        %v859 = vpop.permute.xlu0 %858
        %s860 = sld [smem:[#allocation8 + $0x20]]
        %v861 = vstv %s860
        %v862 = vmul.f32 %v861, %v857
        %v863 = vmul.f32 %v861, %v859
        %v864 = vadd.f32 %v828, %v862
        %v865 = vadd.f32 %v829, %v863
        %866 = vrot.lane.b32.xlu0 %v818, 126
        %v867 = vpop.permute.xlu0 %866
        %868 = vrot.lane.b32.xlu0 %v819, 126
        %v869 = vpop.permute.xlu0 %868
        %s870 = sld [smem:[#allocation8 + $0x21]]
        %v871 = vstv %s870
        %v872 = vmul.f32 %v871, %v867
        %v873 = vmul.f32 %v871, %v869
        %v874 = vadd.f32 %v838, %v872
        %v875 = vadd.f32 %v839, %v873
        %876 = vrot.lane.b32.xlu0 %v818, 125
        %v877 = vpop.permute.xlu0 %876
        %878 = vrot.lane.b32.xlu0 %v819, 125
        %v879 = vpop.permute.xlu0 %878
        %s880 = sld [smem:[#allocation8 + $0x22]]
        %v881 = vstv %s880
        %v882 = vmul.f32 %v881, %v877
        %v883 = vmul.f32 %v881, %v879
        %v884 = vadd.f32 %v848, %v882
        %v885 = vadd.f32 %v849, %v883
        %v886 = vld [vmem:[#allocation5 + $0x5] sm:$0xff]
        %v887 = vld [vmem:[#allocation5 + $0xd] sm:$0xff]
        %888 = vrot.lane.b32.xlu0 %v886, 3
        %v889 = vpop.permute.xlu0 %888
        %890 = vrot.lane.b32.xlu0 %v887, 3
        %v891 = vpop.permute.xlu0 %890
        %s892 = sld [smem:[#allocation8 + $0x23]]
        %v893 = vstv %s892
        %v894 = vmul.f32 %v893, %v889
        %v895 = vmul.f32 %v893, %v891
        %v896 = vadd.f32 %v854, %v894
        %v897 = vadd.f32 %v855, %v895
        %898 = vrot.lane.b32.xlu0 %v886, 2
        %v899 = vpop.permute.xlu0 %898
        %900 = vrot.lane.b32.xlu0 %v887, 2
        %v901 = vpop.permute.xlu0 %900
        %s902 = sld [smem:[#allocation8 + $0x24]]
        %v903 = vstv %s902
        %v904 = vmul.f32 %v903, %v899
        %v905 = vmul.f32 %v903, %v901
        %v906 = vadd.f32 %v864, %v904
        %v907 = vadd.f32 %v865, %v905
        %908 = vrot.lane.b32.xlu0 %v886, 1
        %v909 = vpop.permute.xlu0 %908
        %910 = vrot.lane.b32.xlu0 %v887, 1
        %v911 = vpop.permute.xlu0 %910
        %s912 = sld [smem:[#allocation8 + $0x25]]
        %v913 = vstv %s912
        %v914 = vmul.f32 %v913, %v909
        %v915 = vmul.f32 %v913, %v911
        %v916 = vadd.f32 %v874, %v914
        %v917 = vadd.f32 %v875, %v915
        %s918 = sld [smem:[#allocation8 + $0x26]]
        %v919 = vstv %s918
        %v920 = vmul.f32 %v919, %v886
        %v921 = vmul.f32 %v919, %v887
        %v922 = vadd.f32 %v884, %v920
        %v923 = vadd.f32 %v885, %v921
        %924 = vrot.lane.b32.xlu0 %v886, 127
        %v925 = vpop.permute.xlu0 %924
        %926 = vrot.lane.b32.xlu0 %v887, 127
        %v927 = vpop.permute.xlu0 %926
        %s928 = sld [smem:[#allocation8 + $0x27]]
        %v929 = vstv %s928
        %v930 = vmul.f32 %v929, %v925
        %v931 = vmul.f32 %v929, %v927
        %v932 = vadd.f32 %v896, %v930
        %v933 = vadd.f32 %v897, %v931
        %934 = vrot.lane.b32.xlu0 %v886, 126
        %v935 = vpop.permute.xlu0 %934
        %936 = vrot.lane.b32.xlu0 %v887, 126
        %v937 = vpop.permute.xlu0 %936
        %s938 = sld [smem:[#allocation8 + $0x28]]
        %v939 = vstv %s938
        %v940 = vmul.f32 %v939, %v935
        %v941 = vmul.f32 %v939, %v937
        %v942 = vadd.f32 %v906, %v940
        %v943 = vadd.f32 %v907, %v941
        %944 = vrot.lane.b32.xlu0 %v886, 125
        %v945 = vpop.permute.xlu0 %944
        %946 = vrot.lane.b32.xlu0 %v887, 125
        %v947 = vpop.permute.xlu0 %946
        %s948 = sld [smem:[#allocation8 + $0x29]]
        %v949 = vstv %s948
        %v950 = vmul.f32 %v949, %v945
        %v951 = vmul.f32 %v949, %v947
        %v952 = vadd.f32 %v916, %v950
        %v953 = vadd.f32 %v917, %v951
        %v954 = vld [vmem:[#allocation5 + $0x6] sm:$0xff]
        %v955 = vld [vmem:[#allocation5 + $0xe] sm:$0xff]
        %956 = vrot.lane.b32.xlu0 %v954, 3
        %v957 = vpop.permute.xlu0 %956
        %958 = vrot.lane.b32.xlu0 %v955, 3
        %v959 = vpop.permute.xlu0 %958
        %s960 = sld [smem:[#allocation8 + $0x2a]]
        %v961 = vstv %s960
        %v962 = vmul.f32 %v961, %v957
        %v963 = vmul.f32 %v961, %v959
        %v964 = vadd.f32 %v922, %v962
        %v965 = vadd.f32 %v923, %v963
        %966 = vrot.lane.b32.xlu0 %v954, 2
        %v967 = vpop.permute.xlu0 %966
        %968 = vrot.lane.b32.xlu0 %v955, 2
        %v969 = vpop.permute.xlu0 %968
        %s970 = sld [smem:[#allocation8 + $0x2b]]
        %v971 = vstv %s970
        %v972 = vmul.f32 %v971, %v967
        %v973 = vmul.f32 %v971, %v969
        %v974 = vadd.f32 %v932, %v972
        %v975 = vadd.f32 %v933, %v973
        %976 = vrot.lane.b32.xlu0 %v954, 1
        %v977 = vpop.permute.xlu0 %976
        %978 = vrot.lane.b32.xlu0 %v955, 1
        %v979 = vpop.permute.xlu0 %978
        %s980 = sld [smem:[#allocation8 + $0x2c]]
        %v981 = vstv %s980
        %v982 = vmul.f32 %v981, %v977
        %v983 = vmul.f32 %v981, %v979
        %v984 = vadd.f32 %v942, %v982
        %v985 = vadd.f32 %v943, %v983
        %s986 = sld [smem:[#allocation8 + $0x2d]]
        %v987 = vstv %s986
        %v988 = vmul.f32 %v987, %v954
        %v989 = vmul.f32 %v987, %v955
        %v990 = vadd.f32 %v952, %v988
        %v991 = vadd.f32 %v953, %v989
        %992 = vrot.lane.b32.xlu0 %v954, 127
        %v993 = vpop.permute.xlu0 %992
        %994 = vrot.lane.b32.xlu0 %v955, 127
        %v995 = vpop.permute.xlu0 %994
        %s996 = sld [smem:[#allocation8 + $0x2e]]
        %v997 = vstv %s996
        %v998 = vmul.f32 %v997, %v993
        %v999 = vmul.f32 %v997, %v995
        %v1000 = vadd.f32 %v964, %v998
        %v1001 = vadd.f32 %v965, %v999
        %1002 = vrot.lane.b32.xlu0 %v954, 126
        %v1003 = vpop.permute.xlu0 %1002
        %1004 = vrot.lane.b32.xlu0 %v955, 126
        %v1005 = vpop.permute.xlu0 %1004
        %s1006 = sld [smem:[#allocation8 + $0x2f]]
        %v1007 = vstv %s1006
        %v1008 = vmul.f32 %v1007, %v1003
        %v1009 = vmul.f32 %v1007, %v1005
        %v1010 = vadd.f32 %v974, %v1008
        %v1011 = vadd.f32 %v975, %v1009
        %1012 = vrot.lane.b32.xlu0 %v954, 125
        %v1013 = vpop.permute.xlu0 %1012
        %1014 = vrot.lane.b32.xlu0 %v955, 125
        %v1015 = vpop.permute.xlu0 %1014
        %s1016 = sld [smem:[#allocation8 + $0x30]]
        %v1017 = vstv %s1016
        %v1018 = vmul.f32 %v1017, %v1013
        %v1019 = vmul.f32 %v1017, %v1015
        %v1020 = vadd.f32 %v984, %v1018
        %v1021 = vadd.f32 %v985, %v1019
        %v1022 = vld [vmem:[#allocation6] sm:$0xff]
        %v1023 = vld [vmem:[#allocation6 + $0x8] sm:$0xff]
        %1024 = vrot.lane.b32.xlu0 %v1022, 3
        %v1025 = vpop.permute.xlu0 %1024
        %1026 = vrot.lane.b32.xlu0 %v1023, 3
        %v1027 = vpop.permute.xlu0 %1026
        %s1028 = sld [smem:[#allocation8 + $0x31]]
        %v1029 = vstv %s1028
        %v1030 = vmul.f32 %v1029, %v1025
        %v1031 = vmul.f32 %v1029, %v1027
        %v1032 = vadd.f32 %v990, %v1030
        %v1033 = vadd.f32 %v991, %v1031
        %1034 = vrot.lane.b32.xlu0 %v1022, 2
        %v1035 = vpop.permute.xlu0 %1034
        %1036 = vrot.lane.b32.xlu0 %v1023, 2
        %v1037 = vpop.permute.xlu0 %1036
        %s1038 = sld [smem:[#allocation8 + $0x32]]
        %v1039 = vstv %s1038
        %v1040 = vmul.f32 %v1039, %v1035
        %v1041 = vmul.f32 %v1039, %v1037
        %v1042 = vadd.f32 %v1000, %v1040
        %v1043 = vadd.f32 %v1001, %v1041
        %1044 = vrot.lane.b32.xlu0 %v1022, 1
        %v1045 = vpop.permute.xlu0 %1044
        %1046 = vrot.lane.b32.xlu0 %v1023, 1
        %v1047 = vpop.permute.xlu0 %1046
        %s1048 = sld [smem:[#allocation8 + $0x33]]
        %v1049 = vstv %s1048
        %v1050 = vmul.f32 %v1049, %v1045
        %v1051 = vmul.f32 %v1049, %v1047
        %v1052 = vadd.f32 %v1010, %v1050
        %v1053 = vadd.f32 %v1011, %v1051
        %s1054 = sld [smem:[#allocation8 + $0x34]]
        %v1055 = vstv %s1054
        %v1056 = vmul.f32 %v1055, %v1022
        %v1057 = vmul.f32 %v1055, %v1023
        %v1058 = vadd.f32 %v1020, %v1056
        %v1059 = vadd.f32 %v1021, %v1057
        %1060 = vrot.lane.b32.xlu0 %v1022, 127
        %v1061 = vpop.permute.xlu0 %1060
        %1062 = vrot.lane.b32.xlu0 %v1023, 127
        %v1063 = vpop.permute.xlu0 %1062
        %s1064 = sld [smem:[#allocation8 + $0x35]]
        %v1065 = vstv %s1064
        %v1066 = vmul.f32 %v1065, %v1061
        %v1067 = vmul.f32 %v1065, %v1063
        %v1068 = vadd.f32 %v1032, %v1066
        %v1069 = vadd.f32 %v1033, %v1067
        %1070 = vrot.lane.b32.xlu0 %v1022, 126
        %v1071 = vpop.permute.xlu0 %1070
        %1072 = vrot.lane.b32.xlu0 %v1023, 126
        %v1073 = vpop.permute.xlu0 %1072
        %s1074 = sld [smem:[#allocation8 + $0x36]]
        %v1075 = vstv %s1074
        %v1076 = vmul.f32 %v1075, %v1071
        %v1077 = vmul.f32 %v1075, %v1073
        %v1078 = vadd.f32 %v1042, %v1076
        %v1079 = vadd.f32 %v1043, %v1077
        %1080 = vrot.lane.b32.xlu0 %v1022, 125
        %v1081 = vpop.permute.xlu0 %1080
        %1082 = vrot.lane.b32.xlu0 %v1023, 125
        %v1083 = vpop.permute.xlu0 %1082
        %s1084 = sld [smem:[#allocation8 + $0x37]]
        %v1085 = vstv %s1084
        %v1086 = vmul.f32 %v1085, %v1081
        %v1087 = vmul.f32 %v1085, %v1083
        %v1088 = vadd.f32 %v1052, %v1086
        %v1089 = vadd.f32 %v1053, %v1087
        %v1090 = vld [vmem:[#allocation6 + $0x1] sm:$0xff]
        %v1091 = vld [vmem:[#allocation6 + $0x9] sm:$0xff]
        %1092 = vrot.lane.b32.xlu0 %v1090, 3
        %v1093 = vpop.permute.xlu0 %1092
        %1094 = vrot.lane.b32.xlu0 %v1091, 3
        %v1095 = vpop.permute.xlu0 %1094
        %s1096 = sld [smem:[#allocation8 + $0x38]]
        %v1097 = vstv %s1096
        %v1098 = vmul.f32 %v1097, %v1093
        %v1099 = vmul.f32 %v1097, %v1095
        %v1100 = vadd.f32 %v1058, %v1098
        %v1101 = vadd.f32 %v1059, %v1099
        %1102 = vrot.lane.b32.xlu0 %v1090, 2
        %v1103 = vpop.permute.xlu0 %1102
        %1104 = vrot.lane.b32.xlu0 %v1091, 2
        %v1105 = vpop.permute.xlu0 %1104
        %s1106 = sld [smem:[#allocation8 + $0x39]]
        %v1107 = vstv %s1106
        %v1108 = vmul.f32 %v1107, %v1103
        %v1109 = vmul.f32 %v1107, %v1105
        %v1110 = vadd.f32 %v1068, %v1108
        %v1111 = vadd.f32 %v1069, %v1109
        %1112 = vrot.lane.b32.xlu0 %v1090, 1
        %v1113 = vpop.permute.xlu0 %1112
        %1114 = vrot.lane.b32.xlu0 %v1091, 1
        %v1115 = vpop.permute.xlu0 %1114
        %s1116 = sld [smem:[#allocation8 + $0x3a]]
        %v1117 = vstv %s1116
        %v1118 = vmul.f32 %v1117, %v1113
        %v1119 = vmul.f32 %v1117, %v1115
        %v1120 = vadd.f32 %v1078, %v1118
        %v1121 = vadd.f32 %v1079, %v1119
        %s1122 = sld [smem:[#allocation8 + $0x3b]]
        %v1123 = vstv %s1122
        %v1124 = vmul.f32 %v1123, %v1090
        %v1125 = vmul.f32 %v1123, %v1091
        %v1126 = vadd.f32 %v1088, %v1124
        %v1127 = vadd.f32 %v1089, %v1125
        %1128 = vrot.lane.b32.xlu0 %v1090, 127
        %v1129 = vpop.permute.xlu0 %1128
        %1130 = vrot.lane.b32.xlu0 %v1091, 127
        %v1131 = vpop.permute.xlu0 %1130
        %s1132 = sld [smem:[#allocation8 + $0x3c]]
        %v1133 = vstv %s1132
        %v1134 = vmul.f32 %v1133, %v1129
        %v1135 = vmul.f32 %v1133, %v1131
        %v1136 = vadd.f32 %v1100, %v1134
        %v1137 = vadd.f32 %v1101, %v1135
        %1138 = vrot.lane.b32.xlu0 %v1090, 126
        %v1139 = vpop.permute.xlu0 %1138
        %1140 = vrot.lane.b32.xlu0 %v1091, 126
        %v1141 = vpop.permute.xlu0 %1140
        %s1142 = sld [smem:[#allocation8 + $0x3d]]
        %v1143 = vstv %s1142
        %v1144 = vmul.f32 %v1143, %v1139
        %v1145 = vmul.f32 %v1143, %v1141
        %v1146 = vadd.f32 %v1110, %v1144
        %v1147 = vadd.f32 %v1111, %v1145
        %1148 = vrot.lane.b32.xlu0 %v1090, 125
        %v1149 = vpop.permute.xlu0 %1148
        %1150 = vrot.lane.b32.xlu0 %v1091, 125
        %v1151 = vpop.permute.xlu0 %1150
        %s1152 = sld [smem:[#allocation8 + $0x3e]]
        %v1153 = vstv %s1152
        %v1154 = vmul.f32 %v1153, %v1149
        %v1155 = vmul.f32 %v1153, %v1151
        %v1156 = vadd.f32 %v1120, %v1154
        %v1157 = vadd.f32 %v1121, %v1155
        %v1158 = vld [vmem:[#allocation6 + $0x2] sm:$0xff]
        %v1159 = vld [vmem:[#allocation6 + $0xa] sm:$0xff]
        %1160 = vrot.lane.b32.xlu0 %v1158, 3
        %v1161 = vpop.permute.xlu0 %1160
        %1162 = vrot.lane.b32.xlu0 %v1159, 3
        %v1163 = vpop.permute.xlu0 %1162
        %s1164 = sld [smem:[#allocation8 + $0x3f]]
        %v1165 = vstv %s1164
        %v1166 = vmul.f32 %v1165, %v1161
        %v1167 = vmul.f32 %v1165, %v1163
        %v1168 = vadd.f32 %v1126, %v1166
        %v1169 = vadd.f32 %v1127, %v1167
        %1170 = vrot.lane.b32.xlu0 %v1158, 2
        %v1171 = vpop.permute.xlu0 %1170
        %1172 = vrot.lane.b32.xlu0 %v1159, 2
        %v1173 = vpop.permute.xlu0 %1172
        %s1174 = sld [smem:[#allocation8 + $0x40]]
        %v1175 = vstv %s1174
        %v1176 = vmul.f32 %v1175, %v1171
        %v1177 = vmul.f32 %v1175, %v1173
        %v1178 = vadd.f32 %v1136, %v1176
        %v1179 = vadd.f32 %v1137, %v1177
        %1180 = vrot.lane.b32.xlu0 %v1158, 1
        %v1181 = vpop.permute.xlu0 %1180
        %1182 = vrot.lane.b32.xlu0 %v1159, 1
        %v1183 = vpop.permute.xlu0 %1182
        %s1184 = sld [smem:[#allocation8 + $0x41]]
        %v1185 = vstv %s1184
        %v1186 = vmul.f32 %v1185, %v1181
        %v1187 = vmul.f32 %v1185, %v1183
        %v1188 = vadd.f32 %v1146, %v1186
        %v1189 = vadd.f32 %v1147, %v1187
        %s1190 = sld [smem:[#allocation8 + $0x42]]
        %v1191 = vstv %s1190
        %v1192 = vmul.f32 %v1191, %v1158
        %v1193 = vmul.f32 %v1191, %v1159
        %v1194 = vadd.f32 %v1156, %v1192
        %v1195 = vadd.f32 %v1157, %v1193
        %1196 = vrot.lane.b32.xlu0 %v1158, 127
        %v1197 = vpop.permute.xlu0 %1196
        %1198 = vrot.lane.b32.xlu0 %v1159, 127
        %v1199 = vpop.permute.xlu0 %1198
        %s1200 = sld [smem:[#allocation8 + $0x43]]
        %v1201 = vstv %s1200
        %v1202 = vmul.f32 %v1201, %v1197
        %v1203 = vmul.f32 %v1201, %v1199
        %v1204 = vadd.f32 %v1168, %v1202
        %v1205 = vadd.f32 %v1169, %v1203
        %1206 = vrot.lane.b32.xlu0 %v1158, 126
        %v1207 = vpop.permute.xlu0 %1206
        %1208 = vrot.lane.b32.xlu0 %v1159, 126
        %v1209 = vpop.permute.xlu0 %1208
        %s1210 = sld [smem:[#allocation8 + $0x44]]
        %v1211 = vstv %s1210
        %v1212 = vmul.f32 %v1211, %v1207
        %v1213 = vmul.f32 %v1211, %v1209
        %v1214 = vadd.f32 %v1178, %v1212
        %v1215 = vadd.f32 %v1179, %v1213
        %1216 = vrot.lane.b32.xlu0 %v1158, 125
        %v1217 = vpop.permute.xlu0 %1216
        %1218 = vrot.lane.b32.xlu0 %v1159, 125
        %v1219 = vpop.permute.xlu0 %1218
        %s1220 = sld [smem:[#allocation8 + $0x45]]
        %v1221 = vstv %s1220
        %v1222 = vmul.f32 %v1221, %v1217
        %v1223 = vmul.f32 %v1221, %v1219
        %v1224 = vadd.f32 %v1188, %v1222
        %v1225 = vadd.f32 %v1189, %v1223
        %v1226 = vld [vmem:[#allocation6 + $0x3] sm:$0xff]
        %v1227 = vld [vmem:[#allocation6 + $0xb] sm:$0xff]
        %1228 = vrot.lane.b32.xlu0 %v1226, 3
        %v1229 = vpop.permute.xlu0 %1228
        %1230 = vrot.lane.b32.xlu0 %v1227, 3
        %v1231 = vpop.permute.xlu0 %1230
        %s1232 = sld [smem:[#allocation8 + $0x46]]
        %v1233 = vstv %s1232
        %v1234 = vmul.f32 %v1233, %v1229
        %v1235 = vmul.f32 %v1233, %v1231
        %v1236 = vadd.f32 %v1194, %v1234
        %v1237 = vadd.f32 %v1195, %v1235
        %1238 = vrot.lane.b32.xlu0 %v1226, 2
        %v1239 = vpop.permute.xlu0 %1238
        %1240 = vrot.lane.b32.xlu0 %v1227, 2
        %v1241 = vpop.permute.xlu0 %1240
        %s1242 = sld [smem:[#allocation8 + $0x47]]
        %v1243 = vstv %s1242
        %v1244 = vmul.f32 %v1243, %v1239
        %v1245 = vmul.f32 %v1243, %v1241
        %v1246 = vadd.f32 %v1204, %v1244
        %v1247 = vadd.f32 %v1205, %v1245
        %1248 = vrot.lane.b32.xlu0 %v1226, 1
        %v1249 = vpop.permute.xlu0 %1248
        %1250 = vrot.lane.b32.xlu0 %v1227, 1
        %v1251 = vpop.permute.xlu0 %1250
        %s1252 = sld [smem:[#allocation8 + $0x48]]
        %v1253 = vstv %s1252
        %v1254 = vmul.f32 %v1253, %v1249
        %v1255 = vmul.f32 %v1253, %v1251
        %v1256 = vadd.f32 %v1214, %v1254
        %v1257 = vadd.f32 %v1215, %v1255
        %s1258 = sld [smem:[#allocation8 + $0x49]]
        %v1259 = vstv %s1258
        %v1260 = vmul.f32 %v1259, %v1226
        %v1261 = vmul.f32 %v1259, %v1227
        %v1262 = vadd.f32 %v1224, %v1260
        %v1263 = vadd.f32 %v1225, %v1261
        %1264 = vrot.lane.b32.xlu0 %v1226, 127
        %v1265 = vpop.permute.xlu0 %1264
        %1266 = vrot.lane.b32.xlu0 %v1227, 127
        %v1267 = vpop.permute.xlu0 %1266
        %s1268 = sld [smem:[#allocation8 + $0x4a]]
        %v1269 = vstv %s1268
        %v1270 = vmul.f32 %v1269, %v1265
        %v1271 = vmul.f32 %v1269, %v1267
        %v1272 = vadd.f32 %v1236, %v1270
        %v1273 = vadd.f32 %v1237, %v1271
        %1274 = vrot.lane.b32.xlu0 %v1226, 126
        %v1275 = vpop.permute.xlu0 %1274
        %1276 = vrot.lane.b32.xlu0 %v1227, 126
        %v1277 = vpop.permute.xlu0 %1276
        %s1278 = sld [smem:[#allocation8 + $0x4b]]
        %v1279 = vstv %s1278
        %v1280 = vmul.f32 %v1279, %v1275
        %v1281 = vmul.f32 %v1279, %v1277
        %v1282 = vadd.f32 %v1246, %v1280
        %v1283 = vadd.f32 %v1247, %v1281
        %1284 = vrot.lane.b32.xlu0 %v1226, 125
        %v1285 = vpop.permute.xlu0 %1284
        %1286 = vrot.lane.b32.xlu0 %v1227, 125
        %v1287 = vpop.permute.xlu0 %1286
        %s1288 = sld [smem:[#allocation8 + $0x4c]]
        %v1289 = vstv %s1288
        %v1290 = vmul.f32 %v1289, %v1285
        %v1291 = vmul.f32 %v1289, %v1287
        %v1292 = vadd.f32 %v1256, %v1290
        %v1293 = vadd.f32 %v1257, %v1291
        %v1294 = vld [vmem:[#allocation6 + $0x4] sm:$0xff]
        %v1295 = vld [vmem:[#allocation6 + $0xc] sm:$0xff]
        %1296 = vrot.lane.b32.xlu0 %v1294, 3
        %v1297 = vpop.permute.xlu0 %1296
        %1298 = vrot.lane.b32.xlu0 %v1295, 3
        %v1299 = vpop.permute.xlu0 %1298
        %s1300 = sld [smem:[#allocation8 + $0x4d]]
        %v1301 = vstv %s1300
        %v1302 = vmul.f32 %v1301, %v1297
        %v1303 = vmul.f32 %v1301, %v1299
        %v1304 = vadd.f32 %v1262, %v1302
        %v1305 = vadd.f32 %v1263, %v1303
        %1306 = vrot.lane.b32.xlu0 %v1294, 2
        %v1307 = vpop.permute.xlu0 %1306
        %1308 = vrot.lane.b32.xlu0 %v1295, 2
        %v1309 = vpop.permute.xlu0 %1308
        %s1310 = sld [smem:[#allocation8 + $0x4e]]
        %v1311 = vstv %s1310
        %v1312 = vmul.f32 %v1311, %v1307
        %v1313 = vmul.f32 %v1311, %v1309
        %v1314 = vadd.f32 %v1272, %v1312
        %v1315 = vadd.f32 %v1273, %v1313
        %1316 = vrot.lane.b32.xlu0 %v1294, 1
        %v1317 = vpop.permute.xlu0 %1316
        %1318 = vrot.lane.b32.xlu0 %v1295, 1
        %v1319 = vpop.permute.xlu0 %1318
        %s1320 = sld [smem:[#allocation8 + $0x4f]]
        %v1321 = vstv %s1320
        %v1322 = vmul.f32 %v1321, %v1317
        %v1323 = vmul.f32 %v1321, %v1319
        %v1324 = vadd.f32 %v1282, %v1322
        %v1325 = vadd.f32 %v1283, %v1323
        %s1326 = sld [smem:[#allocation8 + $0x50]]
        %v1327 = vstv %s1326
        %v1328 = vmul.f32 %v1327, %v1294
        %v1329 = vmul.f32 %v1327, %v1295
        %v1330 = vadd.f32 %v1292, %v1328
        %v1331 = vadd.f32 %v1293, %v1329
        %1332 = vrot.lane.b32.xlu0 %v1294, 127
        %v1333 = vpop.permute.xlu0 %1332
        %1334 = vrot.lane.b32.xlu0 %v1295, 127
        %v1335 = vpop.permute.xlu0 %1334
        %s1336 = sld [smem:[#allocation8 + $0x51]]
        %v1337 = vstv %s1336
        %v1338 = vmul.f32 %v1337, %v1333
        %v1339 = vmul.f32 %v1337, %v1335
        %v1340 = vadd.f32 %v1304, %v1338
        %v1341 = vadd.f32 %v1305, %v1339
        %1342 = vrot.lane.b32.xlu0 %v1294, 126
        %v1343 = vpop.permute.xlu0 %1342
        %1344 = vrot.lane.b32.xlu0 %v1295, 126
        %v1345 = vpop.permute.xlu0 %1344
        %s1346 = sld [smem:[#allocation8 + $0x52]]
        %v1347 = vstv %s1346
        %v1348 = vmul.f32 %v1347, %v1343
        %v1349 = vmul.f32 %v1347, %v1345
        %v1350 = vadd.f32 %v1314, %v1348
        %v1351 = vadd.f32 %v1315, %v1349
        %1352 = vrot.lane.b32.xlu0 %v1294, 125
        %v1353 = vpop.permute.xlu0 %1352
        %1354 = vrot.lane.b32.xlu0 %v1295, 125
        %v1355 = vpop.permute.xlu0 %1354
        %s1356 = sld [smem:[#allocation8 + $0x53]]
        %v1357 = vstv %s1356
        %v1358 = vmul.f32 %v1357, %v1353
        %v1359 = vmul.f32 %v1357, %v1355
        %v1360 = vadd.f32 %v1324, %v1358
        %v1361 = vadd.f32 %v1325, %v1359
        %v1362 = vld [vmem:[#allocation6 + $0x5] sm:$0xff]
        %v1363 = vld [vmem:[#allocation6 + $0xd] sm:$0xff]
        %1364 = vrot.lane.b32.xlu0 %v1362, 3
        %v1365 = vpop.permute.xlu0 %1364
        %1366 = vrot.lane.b32.xlu0 %v1363, 3
        %v1367 = vpop.permute.xlu0 %1366
        %s1368 = sld [smem:[#allocation8 + $0x54]]
        %v1369 = vstv %s1368
        %v1370 = vmul.f32 %v1369, %v1365
        %v1371 = vmul.f32 %v1369, %v1367
        %v1372 = vadd.f32 %v1330, %v1370
        %v1373 = vadd.f32 %v1331, %v1371
        %1374 = vrot.lane.b32.xlu0 %v1362, 2
        %v1375 = vpop.permute.xlu0 %1374
        %1376 = vrot.lane.b32.xlu0 %v1363, 2
        %v1377 = vpop.permute.xlu0 %1376
        %s1378 = sld [smem:[#allocation8 + $0x55]]
        %v1379 = vstv %s1378
        %v1380 = vmul.f32 %v1379, %v1375
        %v1381 = vmul.f32 %v1379, %v1377
        %v1382 = vadd.f32 %v1340, %v1380
        %v1383 = vadd.f32 %v1341, %v1381
        %1384 = vrot.lane.b32.xlu0 %v1362, 1
        %v1385 = vpop.permute.xlu0 %1384
        %1386 = vrot.lane.b32.xlu0 %v1363, 1
        %v1387 = vpop.permute.xlu0 %1386
        %s1388 = sld [smem:[#allocation8 + $0x56]]
        %v1389 = vstv %s1388
        %v1390 = vmul.f32 %v1389, %v1385
        %v1391 = vmul.f32 %v1389, %v1387
        %v1392 = vadd.f32 %v1350, %v1390
        %v1393 = vadd.f32 %v1351, %v1391
        %s1394 = sld [smem:[#allocation8 + $0x57]]
        %v1395 = vstv %s1394
        %v1396 = vmul.f32 %v1395, %v1362
        %v1397 = vmul.f32 %v1395, %v1363
        %v1398 = vadd.f32 %v1360, %v1396
        %v1399 = vadd.f32 %v1361, %v1397
        %1400 = vrot.lane.b32.xlu0 %v1362, 127
        %v1401 = vpop.permute.xlu0 %1400
        %1402 = vrot.lane.b32.xlu0 %v1363, 127
        %v1403 = vpop.permute.xlu0 %1402
        %s1404 = sld [smem:[#allocation8 + $0x58]]
        %v1405 = vstv %s1404
        %v1406 = vmul.f32 %v1405, %v1401
        %v1407 = vmul.f32 %v1405, %v1403
        %v1408 = vadd.f32 %v1372, %v1406
        %v1409 = vadd.f32 %v1373, %v1407
        %1410 = vrot.lane.b32.xlu0 %v1362, 126
        %v1411 = vpop.permute.xlu0 %1410
        %1412 = vrot.lane.b32.xlu0 %v1363, 126
        %v1413 = vpop.permute.xlu0 %1412
        %s1414 = sld [smem:[#allocation8 + $0x59]]
        %v1415 = vstv %s1414
        %v1416 = vmul.f32 %v1415, %v1411
        %v1417 = vmul.f32 %v1415, %v1413
        %v1418 = vadd.f32 %v1382, %v1416
        %v1419 = vadd.f32 %v1383, %v1417
        %1420 = vrot.lane.b32.xlu0 %v1362, 125
        %v1421 = vpop.permute.xlu0 %1420
        %1422 = vrot.lane.b32.xlu0 %v1363, 125
        %v1423 = vpop.permute.xlu0 %1422
        %s1424 = sld [smem:[#allocation8 + $0x5a]]
        %v1425 = vstv %s1424
        %v1426 = vmul.f32 %v1425, %v1421
        %v1427 = vmul.f32 %v1425, %v1423
        %v1428 = vadd.f32 %v1392, %v1426
        %v1429 = vadd.f32 %v1393, %v1427
        %v1430 = vld [vmem:[#allocation6 + $0x6] sm:$0xff]
        %v1431 = vld [vmem:[#allocation6 + $0xe] sm:$0xff]
        %1432 = vrot.lane.b32.xlu0 %v1430, 3
        %v1433 = vpop.permute.xlu0 %1432
        %1434 = vrot.lane.b32.xlu0 %v1431, 3
        %v1435 = vpop.permute.xlu0 %1434
        %s1436 = sld [smem:[#allocation8 + $0x5b]]
        %v1437 = vstv %s1436
        %v1438 = vmul.f32 %v1437, %v1433
        %v1439 = vmul.f32 %v1437, %v1435
        %v1440 = vadd.f32 %v1398, %v1438
        %v1441 = vadd.f32 %v1399, %v1439
        %1442 = vrot.lane.b32.xlu0 %v1430, 2
        %v1443 = vpop.permute.xlu0 %1442
        %1444 = vrot.lane.b32.xlu0 %v1431, 2
        %v1445 = vpop.permute.xlu0 %1444
        %s1446 = sld [smem:[#allocation8 + $0x5c]]
        %v1447 = vstv %s1446
        %v1448 = vmul.f32 %v1447, %v1443
        %v1449 = vmul.f32 %v1447, %v1445
        %v1450 = vadd.f32 %v1408, %v1448
        %v1451 = vadd.f32 %v1409, %v1449
        %1452 = vrot.lane.b32.xlu0 %v1430, 1
        %v1453 = vpop.permute.xlu0 %1452
        %1454 = vrot.lane.b32.xlu0 %v1431, 1
        %v1455 = vpop.permute.xlu0 %1454
        %s1456 = sld [smem:[#allocation8 + $0x5d]]
        %v1457 = vstv %s1456
        %v1458 = vmul.f32 %v1457, %v1453
        %v1459 = vmul.f32 %v1457, %v1455
        %v1460 = vadd.f32 %v1418, %v1458
        %v1461 = vadd.f32 %v1419, %v1459
        %s1462 = sld [smem:[#allocation8 + $0x5e]]
        %v1463 = vstv %s1462
        %v1464 = vmul.f32 %v1463, %v1430
        %v1465 = vmul.f32 %v1463, %v1431
        %v1466 = vadd.f32 %v1428, %v1464
        %v1467 = vadd.f32 %v1429, %v1465
        %1468 = vrot.lane.b32.xlu0 %v1430, 127
        %v1469 = vpop.permute.xlu0 %1468
        %1470 = vrot.lane.b32.xlu0 %v1431, 127
        %v1471 = vpop.permute.xlu0 %1470
        %s1472 = sld [smem:[#allocation8 + $0x5f]]
        %v1473 = vstv %s1472
        %v1474 = vmul.f32 %v1473, %v1469
        %v1475 = vmul.f32 %v1473, %v1471
        %v1476 = vadd.f32 %v1440, %v1474
        %v1477 = vadd.f32 %v1441, %v1475
        %1478 = vrot.lane.b32.xlu0 %v1430, 126
        %v1479 = vpop.permute.xlu0 %1478
        %1480 = vrot.lane.b32.xlu0 %v1431, 126
        %v1481 = vpop.permute.xlu0 %1480
        %s1482 = sld [smem:[#allocation8 + $0x60]]
        %v1483 = vstv %s1482
        %v1484 = vmul.f32 %v1483, %v1479
        %v1485 = vmul.f32 %v1483, %v1481
        %v1486 = vadd.f32 %v1450, %v1484
        %v1487 = vadd.f32 %v1451, %v1485
        %1488 = vrot.lane.b32.xlu0 %v1430, 125
        %v1489 = vpop.permute.xlu0 %1488
        %1490 = vrot.lane.b32.xlu0 %v1431, 125
        %v1491 = vpop.permute.xlu0 %1490
        %s1492 = sld [smem:[#allocation8 + $0x61]]
        %v1493 = vstv %s1492
        %v1494 = vmul.f32 %v1493, %v1489
        %v1495 = vmul.f32 %v1493, %v1491
        %v1496 = vadd.f32 %v1460, %v1494
        %v1497 = vadd.f32 %v1461, %v1495
        %v1498 = vadd.f32 %v1486, %v1496
        %v1499 = vadd.f32 %v1487, %v1497
        %v1500 = vadd.f32 %v1498, %v1466
        %v1501 = vadd.f32 %v1499, %v1467
        %v1502 = vadd.f32 %v1500, %v1476
        %v1503 = vadd.f32 %v1501, %v1477
        %v1504 = vxor.u32 %v1502, 2147483648
        %v1505 = vxor.u32 %v1503, 2147483648
        %v1506 = vmul.f32 %v1504, 1.442695
        %v1507 = vpow.pop %v1506
        %v1508 = vmul.f32 %v1505, 1.442695
        %v1509 = vpow.pop %v1508
        %v1510 = vadd.f32 %v1507, 1.0
        %v1511 = vadd.f32 %v1509, 1.0
        %v1512 = vrcp.pop %v1510
        %v1513 = vmul.f32 1.0, %v1512
        %v1514 = vrcp.pop %v1511
        %v1515 = vmul.f32 1.0, %v1514
        %1516 = vst [vmem:[#allocation7] sm:$0xff] %v1513
        %1517 = vst [vmem:[#allocation7 + $0x8] sm:$0xff] %v1515
        %v1518 = vld [vmem:[#allocation7] sm:$0x1]
        %vm1519 = vcmp.lt.s32.totalorder %v227, 16
        %vm1520 = vmand %vm228, %vm1519
        %1521 = vst.msk [vmem:[#allocation4] sm:$0x1] %vm1520, %v1518
        %v1522 = vld [vmem:[#allocation7 + $0x1] sm:$0x1]
        %v1525 = vunpack.c.l.s4 1966171168
        %v1526 = vunpack.c.0.s8 %v1525
        %v1527 = vlaneseq
        %v1528 = vshrl.u32 %v1527, 7
        %v1529 = vsub.s32 %v1526, %v1528
        %v1530 = vrot.slane %v1522, %v1529
        %v1532 = vunpack.c.l.s4 1966171168
        %v1533 = vunpack.c.0.s8 %v1532
        %v1534 = vlaneseq
        %v1535 = vshrl.u32 %v1534, 7
        %v1536 = vsub.s32 %v1533, %v1535
        %v1537 = vrot.slane %v1530, %v1536
        %1538 = vrot.lane.b32.xlu0 %v1537, 16
        %v1539 = vpop.permute.xlu0 %1538
        %vm1541 = vcmp.ge.s32.totalorder %v227, 16
        %vm1542 = vcmp.lt.s32.totalorder %v227, 32
        %vm1543 = vmand %vm1541, %vm1542
        %1544 = vst.msk [vmem:[#allocation4] sm:$0x1] %vm1543, %v1539
        %v1545 = vld [vmem:[#allocation7 + $0x2] sm:$0x1]
        %v1548 = vunpack.c.l.s4 1966171168
        %v1549 = vunpack.c.0.s8 %v1548
        %v1550 = vlaneseq
        %v1551 = vshrl.u32 %v1550, 7
        %v1552 = vsub.s32 %v1549, %v1551
        %v1553 = vrot.slane %v1545, %v1552
        %v1555 = vunpack.c.l.s4 1966171168
        %v1556 = vunpack.c.0.s8 %v1555
        %v1557 = vlaneseq
        %v1558 = vshrl.u32 %v1557, 7
        %v1559 = vsub.s32 %v1556, %v1558
        %v1560 = vrot.slane %v1553, %v1559
        %1561 = vrot.lane.b32.xlu0 %v1560, 32
        %v1562 = vpop.permute.xlu0 %1561
        %vm1564 = vcmp.ge.s32.totalorder %v227, 32
        %vm1565 = vcmp.lt.s32.totalorder %v227, 48
        %vm1566 = vmand %vm1564, %vm1565
        %1567 = vst.msk [vmem:[#allocation4] sm:$0x1] %vm1566, %v1562
        %v1568 = vld [vmem:[#allocation7 + $0x3] sm:$0x1]
        %v1571 = vunpack.c.l.s4 1966171168
        %v1572 = vunpack.c.0.s8 %v1571
        %v1573 = vlaneseq
        %v1574 = vshrl.u32 %v1573, 7
        %v1575 = vsub.s32 %v1572, %v1574
        %v1576 = vrot.slane %v1568, %v1575
        %v1578 = vunpack.c.l.s4 1966171168
        %v1579 = vunpack.c.0.s8 %v1578
        %v1580 = vlaneseq
        %v1581 = vshrl.u32 %v1580, 7
        %v1582 = vsub.s32 %v1579, %v1581
        %v1583 = vrot.slane %v1576, %v1582
        %1584 = vrot.lane.b32.xlu0 %v1583, 48
        %v1585 = vpop.permute.xlu0 %1584
        %vm1587 = vcmp.ge.s32.totalorder %v227, 48
        %vm1588 = vcmp.lt.s32.totalorder %v227, 64
        %vm1589 = vmand %vm1587, %vm1588
        %1590 = vst.msk [vmem:[#allocation4] sm:$0x1] %vm1589, %v1585
        %v1591 = vld [vmem:[#allocation7 + $0x4] sm:$0x1]
        %v1594 = vunpack.c.l.s4 1966171168
        %v1595 = vunpack.c.0.s8 %v1594
        %v1596 = vlaneseq
        %v1597 = vshrl.u32 %v1596, 7
        %v1598 = vsub.s32 %v1595, %v1597
        %v1599 = vrot.slane %v1591, %v1598
        %v1601 = vunpack.c.l.s4 1966171168
        %v1602 = vunpack.c.0.s8 %v1601
        %v1603 = vlaneseq
        %v1604 = vshrl.u32 %v1603, 7
        %v1605 = vsub.s32 %v1602, %v1604
        %v1606 = vrot.slane %v1599, %v1605
        %1607 = vrot.lane.b32.xlu0 %v1606, 64
        %v1608 = vpop.permute.xlu0 %1607
        %vm1610 = vcmp.ge.s32.totalorder %v227, 64
        %vm1611 = vcmp.lt.s32.totalorder %v227, 80
        %vm1612 = vmand %vm1610, %vm1611
        %1613 = vst.msk [vmem:[#allocation4] sm:$0x1] %vm1612, %v1608
        %v1614 = vld [vmem:[#allocation7 + $0x5] sm:$0x1]
        %v1617 = vunpack.c.l.s4 1966171168
        %v1618 = vunpack.c.0.s8 %v1617
        %v1619 = vlaneseq
        %v1620 = vshrl.u32 %v1619, 7
        %v1621 = vsub.s32 %v1618, %v1620
        %v1622 = vrot.slane %v1614, %v1621
        %v1624 = vunpack.c.l.s4 1966171168
        %v1625 = vunpack.c.0.s8 %v1624
        %v1626 = vlaneseq
        %v1627 = vshrl.u32 %v1626, 7
        %v1628 = vsub.s32 %v1625, %v1627
        %v1629 = vrot.slane %v1622, %v1628
        %1630 = vrot.lane.b32.xlu0 %v1629, 80
        %v1631 = vpop.permute.xlu0 %1630
        %vm1633 = vcmp.ge.s32.totalorder %v227, 80
        %vm1634 = vcmp.lt.s32.totalorder %v227, 96
        %vm1635 = vmand %vm1633, %vm1634
        %1636 = vst.msk [vmem:[#allocation4] sm:$0x1] %vm1635, %v1631
        %v1637 = vld [vmem:[#allocation7 + $0x6] sm:$0x1]
        %v1640 = vunpack.c.l.s4 1966171168
        %v1641 = vunpack.c.0.s8 %v1640
        %v1642 = vlaneseq
        %v1643 = vshrl.u32 %v1642, 7
        %v1644 = vsub.s32 %v1641, %v1643
        %v1645 = vrot.slane %v1637, %v1644
        %v1647 = vunpack.c.l.s4 1966171168
        %v1648 = vunpack.c.0.s8 %v1647
        %v1649 = vlaneseq
        %v1650 = vshrl.u32 %v1649, 7
        %v1651 = vsub.s32 %v1648, %v1650
        %v1652 = vrot.slane %v1645, %v1651
        %1653 = vrot.lane.b32.xlu0 %v1652, 96
        %v1654 = vpop.permute.xlu0 %1653
        %vm1656 = vcmp.ge.s32.totalorder %v227, 96
        %vm1657 = vcmp.lt.s32.totalorder %v227, 112
        %vm1658 = vmand %vm1656, %vm1657
        %1659 = vst.msk [vmem:[#allocation4] sm:$0x1] %vm1658, %v1654
        %v1660 = vld [vmem:[#allocation7 + $0x7] sm:$0x1]
        %v1663 = vunpack.c.l.s4 1966171168
        %v1664 = vunpack.c.0.s8 %v1663
        %v1665 = vlaneseq
        %v1666 = vshrl.u32 %v1665, 7
        %v1667 = vsub.s32 %v1664, %v1666
        %v1668 = vrot.slane %v1660, %v1667
        %v1670 = vunpack.c.l.s4 1966171168
        %v1671 = vunpack.c.0.s8 %v1670
        %v1672 = vlaneseq
        %v1673 = vshrl.u32 %v1672, 7
        %v1674 = vsub.s32 %v1671, %v1673
        %v1675 = vrot.slane %v1668, %v1674
        %1676 = vrot.lane.b32.xlu0 %v1675, 112
        %v1677 = vpop.permute.xlu0 %1676
        %vm1679 = vcmp.ge.s32.totalorder %v227, 112
        %vm1680 = vcmp.lt.s32.totalorder %v227, 128
        %vm1681 = vmand %vm1679, %vm1680
        %1682 = vst.msk [vmem:[#allocation4] sm:$0x1] %vm1681, %v1677
        %v1683 = vld [vmem:[#allocation7 + $0x8] sm:$0x1]
        %1684 = vst.msk [vmem:[#allocation4 + $0x1] sm:$0x1] %vm1520, %v1683
        %v1685 = vld [vmem:[#allocation7 + $0x9] sm:$0x1]
        %v1688 = vunpack.c.l.s4 1966171168
        %v1689 = vunpack.c.0.s8 %v1688
        %v1690 = vlaneseq
        %v1691 = vshrl.u32 %v1690, 7
        %v1692 = vsub.s32 %v1689, %v1691
        %v1693 = vrot.slane %v1685, %v1692
        %v1695 = vunpack.c.l.s4 1966171168
        %v1696 = vunpack.c.0.s8 %v1695
        %v1697 = vlaneseq
        %v1698 = vshrl.u32 %v1697, 7
        %v1699 = vsub.s32 %v1696, %v1698
        %v1700 = vrot.slane %v1693, %v1699
        %1701 = vrot.lane.b32.xlu0 %v1700, 16
        %v1702 = vpop.permute.xlu0 %1701
        %1704 = vst.msk [vmem:[#allocation4 + $0x1] sm:$0x1] %vm1543, %v1702
        %v1705 = vld [vmem:[#allocation7 + $0xa] sm:$0x1]
        %v1708 = vunpack.c.l.s4 1966171168
        %v1709 = vunpack.c.0.s8 %v1708
        %v1710 = vlaneseq
        %v1711 = vshrl.u32 %v1710, 7
        %v1712 = vsub.s32 %v1709, %v1711
        %v1713 = vrot.slane %v1705, %v1712
        %v1715 = vunpack.c.l.s4 1966171168
        %v1716 = vunpack.c.0.s8 %v1715
        %v1717 = vlaneseq
        %v1718 = vshrl.u32 %v1717, 7
        %v1719 = vsub.s32 %v1716, %v1718
        %v1720 = vrot.slane %v1713, %v1719
        %1721 = vrot.lane.b32.xlu0 %v1720, 32
        %v1722 = vpop.permute.xlu0 %1721
        %1724 = vst.msk [vmem:[#allocation4 + $0x1] sm:$0x1] %vm1566, %v1722
        %v1725 = vld [vmem:[#allocation7 + $0xb] sm:$0x1]
        %v1728 = vunpack.c.l.s4 1966171168
        %v1729 = vunpack.c.0.s8 %v1728
        %v1730 = vlaneseq
        %v1731 = vshrl.u32 %v1730, 7
        %v1732 = vsub.s32 %v1729, %v1731
        %v1733 = vrot.slane %v1725, %v1732
        %v1735 = vunpack.c.l.s4 1966171168
        %v1736 = vunpack.c.0.s8 %v1735
        %v1737 = vlaneseq
        %v1738 = vshrl.u32 %v1737, 7
        %v1739 = vsub.s32 %v1736, %v1738
        %v1740 = vrot.slane %v1733, %v1739
        %1741 = vrot.lane.b32.xlu0 %v1740, 48
        %v1742 = vpop.permute.xlu0 %1741
        %1744 = vst.msk [vmem:[#allocation4 + $0x1] sm:$0x1] %vm1589, %v1742
        %v1745 = vld [vmem:[#allocation7 + $0xc] sm:$0x1]
        %v1748 = vunpack.c.l.s4 1966171168
        %v1749 = vunpack.c.0.s8 %v1748
        %v1750 = vlaneseq
        %v1751 = vshrl.u32 %v1750, 7
        %v1752 = vsub.s32 %v1749, %v1751
        %v1753 = vrot.slane %v1745, %v1752
        %v1755 = vunpack.c.l.s4 1966171168
        %v1756 = vunpack.c.0.s8 %v1755
        %v1757 = vlaneseq
        %v1758 = vshrl.u32 %v1757, 7
        %v1759 = vsub.s32 %v1756, %v1758
        %v1760 = vrot.slane %v1753, %v1759
        %1761 = vrot.lane.b32.xlu0 %v1760, 64
        %v1762 = vpop.permute.xlu0 %1761
        %1764 = vst.msk [vmem:[#allocation4 + $0x1] sm:$0x1] %vm1612, %v1762
        %v1765 = vld [vmem:[#allocation7 + $0xd] sm:$0x1]
        %v1768 = vunpack.c.l.s4 1966171168
        %v1769 = vunpack.c.0.s8 %v1768
        %v1770 = vlaneseq
        %v1771 = vshrl.u32 %v1770, 7
        %v1772 = vsub.s32 %v1769, %v1771
        %v1773 = vrot.slane %v1765, %v1772
        %v1775 = vunpack.c.l.s4 1966171168
        %v1776 = vunpack.c.0.s8 %v1775
        %v1777 = vlaneseq
        %v1778 = vshrl.u32 %v1777, 7
        %v1779 = vsub.s32 %v1776, %v1778
        %v1780 = vrot.slane %v1773, %v1779
        %1781 = vrot.lane.b32.xlu0 %v1780, 80
        %v1782 = vpop.permute.xlu0 %1781
        %1784 = vst.msk [vmem:[#allocation4 + $0x1] sm:$0x1] %vm1635, %v1782
        %v1785 = vld [vmem:[#allocation7 + $0xe] sm:$0x1]
        %v1788 = vunpack.c.l.s4 1966171168
        %v1789 = vunpack.c.0.s8 %v1788
        %v1790 = vlaneseq
        %v1791 = vshrl.u32 %v1790, 7
        %v1792 = vsub.s32 %v1789, %v1791
        %v1793 = vrot.slane %v1785, %v1792
        %v1795 = vunpack.c.l.s4 1966171168
        %v1796 = vunpack.c.0.s8 %v1795
        %v1797 = vlaneseq
        %v1798 = vshrl.u32 %v1797, 7
        %v1799 = vsub.s32 %v1796, %v1798
        %v1800 = vrot.slane %v1793, %v1799
        %1801 = vrot.lane.b32.xlu0 %v1800, 96
        %v1802 = vpop.permute.xlu0 %1801
        %1804 = vst.msk [vmem:[#allocation4 + $0x1] sm:$0x1] %vm1658, %v1802
        %v1805 = vld [vmem:[#allocation7 + $0xf] sm:$0x1]
        %v1808 = vunpack.c.l.s4 1966171168
        %v1809 = vunpack.c.0.s8 %v1808
        %v1810 = vlaneseq
        %v1811 = vshrl.u32 %v1810, 7
        %v1812 = vsub.s32 %v1809, %v1811
        %v1813 = vrot.slane %v1805, %v1812
        %v1815 = vunpack.c.l.s4 1966171168
        %v1816 = vunpack.c.0.s8 %v1815
        %v1817 = vlaneseq
        %v1818 = vshrl.u32 %v1817, 7
        %v1819 = vsub.s32 %v1816, %v1818
        %v1820 = vrot.slane %v1813, %v1819
        %1821 = vrot.lane.b32.xlu0 %v1820, 112
        %v1822 = vpop.permute.xlu0 %1821
        %1824 = vst.msk [vmem:[#allocation4 + $0x1] sm:$0x1] %vm1681, %v1822
        %v1825 = vld [vmem:[#allocation4] sm:$0x3]
        %v1826 = vld [vmem:[%s150] sm:$0xff]
        %v1828 = vlaneseq
        %v1829 = vshrl.u32 %v1828, 7
        %v1830 = vsub.s32 0, %v1829
        %v1831 = vrot.slane %v1825, %v1830
        %v1832 = vlaneseq
        %v1833 = vshrl.u32 %v1832, 7
        %v1834 = vsub.s32 1, %v1833
        %v1835 = vrot.slane %v1825, %v1834
        %v1836 = vcombine.low %v1831, %v1835
        %v1838 = vmul.f32 %v1826, %v1836
        %1839 = vst [vmem:[%s171] sm:$0xff] %v1838
        %s1840 = sand.u32 %s75, 1
        %s1841 = scalar_lea.sflag [#allocation10], %s1840
        %s1842 = sand.u32 %s75, 1
        %s1843 = smul.addr %s1842, 8
        %s1844 = scalar_lea.vmem [#allocation13], %s1843
        // Predicated region
        $region37: #{tpu_custom_call.1} parent=27 // pred_check
          %p1845 = pneg %p85
        $region38: #{tpu_custom_call.1} parent=27 // pred_check_branch
          %1847 = sbr.rel (%p1845) target = $region40
        $region39: #{tpu_custom_call.1} parent=27 // pred_region
          %s1849 = ssub.s32 128, 128
          %1850 = vsyncadd %s1841, %s1849
          %s1851 = smul.addr %s20, 2
          %s1852 = smul.addr %s1851, 64
          %s1853 = scalar_lea.hbm %s2, %s1852
          %s1855 = sshll.u32 %s1844, 4
          %s1856 = int_to_ptr.vmem [resolvable:$true] %s1855
          %1858 = dma.vmem_to_hbm [thread:$0]  %s1856, 128, %s1853, %s1841
        $region40: #{tpu_custom_call.1} parent=27 // pred_fallthru
          _
      $region28: #{tpu_custom_call.1} parent=5 // pred_fallthru
        _
      %p1859 = scmp.le.s32.totalorder 2, %s15
      // Predicated region
      $region41: #{tpu_custom_call.1} parent=5 // pred_check
        %p1860 = pneg %p1859
      $region42: #{tpu_custom_call.1} parent=5 // pred_check_branch
        %1862 = sbr.rel (%p1860) target = $region44
      $region43: #{tpu_custom_call.1} parent=5 // pred_region
        %s1863 = ssub.s32 %s15, 2
        // Predicated region
        $region45: #{tpu_custom_call.1} parent=43 // pred_check
          %p1864 = pneg %p91
        $region46: #{tpu_custom_call.1} parent=43 // pred_check_branch
          %1866 = sbr.rel (%p1864) target = $region48
        $region47: #{tpu_custom_call.1} parent=43 // pred_region
          %s1867 = sand.u32 %s76, 1
          %s1868 = scalar_lea.sflag [#allocation10], %s1867
          %s1869 = sand.u32 %s76, 1
          %s1870 = smul.addr %s1869, 8
          %s1871 = scalar_lea.vmem [#allocation13], %s1870
          %1872 = dma.done %s1868, 128
        $region48: #{tpu_custom_call.1} parent=43 // pred_fallthru
          _
      $region44: #{tpu_custom_call.1} parent=5 // pred_fallthru
        _
    $region6: #{tpu_custom_call.1} parent=1 // loop_footer
      %s19 = sadd.s32 1, %s15
    $region7: #{tpu_custom_call.1} parent=1 // loop_footer_branch
      %14 = sbr.rel target = $region3
    $region8: #{tpu_custom_call.1} parent=1 // loop_exit
      _
    %1873 = vsyncpa [#allocation9], 1
    %s1874 = scalar_lea.sflag [#allocation9], 1
    %1875 = vsyncpa %s1874, 1
    %1876 = vsyncpa [#allocation10], 1
    %s1877 = scalar_lea.sflag [#allocation10], 1
    %1878 = vsyncpa %s1877, 1
    %1879 = vsyncpa [#allocation11], 1
    %s1880 = scalar_lea.sflag [#allocation11], 1
    %1881 = vsyncpa %s1880, 1

</llo_original>
